<compile_context>
chip_gen: v6e
topology: v6e:2x2x1
jax: 0.10.0
libtpu: 0.0.40
codegen_flags: <defaults>
</compile_context>

<pallas_src>
import math
import functools

import jax
import jax.numpy as jnp
from jax.experimental import pallas as pl
from jax.experimental.pallas import tpu as pltpu


# ----------------------------------------------------------------------------
# Single fused generator kernel: mapping MLP (optional) + synthesis block.
# ----------------------------------------------------------------------------
def _generator_kernel(*refs, n_layers, input_is_latent, Bp, C, HW,
                      noise_strength, has_noise):
    f32, bf16 = jnp.float32, jnp.bfloat16
    R = Bp * HW
    KC = 9 * C

    it = iter(refs)
    z_ref = next(it)
    if not input_is_latent:
        map_w_ref = next(it)
        map_b_ref = next(it)
    aff_w_ref = next(it)
    aff_b_ref = next(it)
    taps_ref = next(it)
    convw_ref = next(it)
    wsq_ref = next(it)
    conv_b_ref = next(it)
    rgbaff_w_ref = next(it)
    rgbaff_b_ref = next(it)
    rgb_w_ref = next(it)
    rgb_b_ref = next(it)
    noise_ref = next(it) if has_noise else None
    o_ref = next(it)

    # ---- mapping network: PixelNorm + L x (EqualLinear + lrelu) -------------
    # bf16 MXU operands, f32 accumulate/epilogue; sqrt(2) gain is folded into
    # the (bf16) weights and biases at weight-prep time.
    x = z_ref[...].astype(f32)
    if not input_is_latent:
        x = x * jax.lax.rsqrt(jnp.mean(x * x, axis=-1, keepdims=True) + 1e-8)
        for i in range(n_layers):                       # static unroll (toy L)
            x = jnp.dot(x.astype(bf16), map_w_ref[i],
                        preferred_element_type=f32) + map_b_ref[i]
            x = jnp.where(x >= 0.0, x, 0.2 * x)

    # ---- style affines (MXU, bf16 operands) ----------------------------------
    wb = x.astype(bf16)
    s_conv = jnp.dot(wb, aff_w_ref[...], preferred_element_type=f32) + aff_b_ref[...]
    s_rgb = jnp.dot(wb, rgbaff_w_ref[...], preferred_element_type=f32) + rgbaff_b_ref[...]

    # demod[b,o] = rsqrt( sum_i s[b,i]^2 * wsq[i,o] + eps ), wsq precomputed.
    # Kept fully f32 (tiny matmul) so the rsqrt path doesn't eat the tolerance.
    demod = jax.lax.rsqrt(
        jnp.dot(s_conv * s_conv, wsq_ref[...], preferred_element_type=f32) + 1e-8)

    # ---- modulated 3x3 conv as ONE (R, 9C) x (9C, C) matmul ------------------
    # Row broadcasts are VPU broadcasts + leading-dim collapses (Bp,HW)->R;
    # no MXU work is spent on expansion matrices any more.
    s9 = jnp.concatenate([s_conv] * 9, axis=-1)                        # (Bp, 9C)
    mod = (taps_ref[...].astype(f32)[None, :, :] *
           s9[:, None, :]).reshape(R, KC).astype(bf16)                 # (R, 9C)
    acc = jnp.dot(mod, convw_ref[...], preferred_element_type=f32)     # (R, C)

    # ---- epilogue: demod + (noise) + bias + lrelu (gain folded into ToRGB) ---
    demod_rows = jnp.broadcast_to(demod[:, None, :], (Bp, HW, C)).reshape(R, C)
    y = acc * demod_rows
    if has_noise:  # compile-time branch: elided entirely when strength == 0.0
        noise_rows = jnp.broadcast_to(
            noise_ref[...][None, :, :], (Bp, HW, C)).reshape(R, C)
        y = y + noise_rows * noise_strength
    y = y + conv_b_ref[...]
    y = jnp.where(y >= 0.0, y, 0.2 * y)

    # ---- ToRGB: modulated 1x1 conv, lane-dense (R, 128) output ---------------
    s_rgb_rows = jnp.broadcast_to(s_rgb[:, None, :], (Bp, HW, C)).reshape(R, C)
    rgb = jnp.dot((y * s_rgb_rows).astype(bf16), rgb_w_ref[...],
                  preferred_element_type=f32) + rgb_b_ref[...]
    o_ref[...] = rgb.astype(o_ref.dtype)


# ----------------------------------------------------------------------------
# Synthetic StyleGAN2 generator (deterministic parameters built in-script)
# ----------------------------------------------------------------------------
class StyleGAN2WrapperPallas:
    DIM_Z = 512          # as in the PyTorch wrapper (self.dim_z = 512)
    N_MAPPING = 2        # small synthetic mapping depth (real model uses 8)
    CH = 64              # synthesis channels
    RES = 4              # spatial resolution of the single synthesis block
    RGB_LANES = 128      # lane-dense padded output width (real channels = 3)

    def __init__(self, key):
        self.dim_z = self.DIM_Z
        C, D, H = self.CH, self.DIM_Z, self.RES
        HW = H * H
        keys = jax.random.split(key, 16)
        f32, bf16 = jnp.float32, jnp.bfloat16
        gain = math.sqrt(2.0)

        # ---- raw parameters (also used by the pure-JAX reference) ----------
        self.map_w, self.map_b = [], []
        for i in range(self.N_MAPPING):
            self.map_w.append(jax.random.normal(keys[i], (D, D), f32) / math.sqrt(D))
            self.map_b.append(jnp.zeros((1, D), f32))

        self.const = jax.random.normal(keys[8], (1, C, H, H), f32)

        self.aff_w = jax.random.normal(keys[9], (D, C), f32) / math.sqrt(D)
        self.aff_b = jnp.ones((1, C), f32)

        self.conv_w = jax.random.normal(keys[10], (C, C, 3, 3), f32) / math.sqrt(C * 9)
        self.conv_b = jnp.zeros((1, C), f32)
        self.noise_strength = 0.0  # StyleGAN2 init

        self.rgb_aff_w = jax.random.normal(keys[11], (D, C), f32) / math.sqrt(D)
        self.rgb_aff_b = jnp.ones((1, C), f32)
        self.rgb_w = jax.random.normal(keys[12], (C, 3), f32) / math.sqrt(C)
        self.rgb_b = jnp.zeros((1, 3), f32)

        self.noise = jax.random.normal(keys[13], (1, 1, H, H), f32)

        # ---- one-time kernel-friendly repacks (weight prep, not per-forward)
        # Mapping: fold the lrelu gain into weights/biases (lrelu(a*t)=a*lrelu(t)
        # for a>0), cast MXU operands to bf16.
        self.map_w_stack = (jnp.stack(self.map_w, 0) * gain).astype(bf16)   # (L,D,D)
        self.map_b_stack = jnp.stack(self.map_b, 0) * gain                  # (L,1,D) f32

        # 9 zero-padded shifted views of the learned const, stacked k-major
        # along lanes: taps[p, k*C + i] = const[i, h+ky-1, w+kx-1]
        cpad = jnp.pad(self.const[0], ((0, 0), (1, 1), (1, 1)))             # (C,H+2,W+2)
        taps = []
        for ky in range(3):
            for kx in range(3):
                taps.append(cpad[:, ky:ky + H, kx:kx + H]
                            .transpose(1, 2, 0).reshape(HW, C))
        self.taps_stacked = jnp.concatenate(taps, axis=1).astype(bf16)      # (HW, 9C)

        # conv weight stacked k-major: (9C, C_out), plus precomputed wsq
        wk = [self.conv_w[:, :, ky, kx].T for ky in range(3) for kx in range(3)]
        self.conv_w_stacked = jnp.concatenate(wk, axis=0).astype(bf16)      # (9C, C)
        self.wsq = jnp.sum(jnp.stack(wk, 0) ** 2, axis=0)                   # (C, C) f32

        self.aff_w_bf16 = self.aff_w.astype(bf16)
        self.rgb_aff_w_bf16 = self.rgb_aff_w.astype(bf16)

        # ToRGB: lrelu gain folded into rgb_w; lane-dense 128-wide slab, bf16.
        self.rgb_w_pad = (jnp.zeros((C, self.RGB_LANES), f32)
                          .at[:, :3].set(self.rgb_w * gain)).astype(bf16)
        self.rgb_b_pad = jnp.zeros((1, self.RGB_LANES), f32).at[:, :3].set(self.rgb_b)

        # raw per-pixel noise, broadcast happens inside the kernel
        self.noise_hw = self.noise.reshape(HW, 1)                           # (HW, 1)

    # ---- fully fused forward: ONE pallas_call --------------------------------
    def _generator_call(self, x, Bp, input_is_latent):
        C, D, L = self.CH, self.dim_z, self.N_MAPPING
        HW = self.RES * self.RES
        R = Bp * HW
        OUT = self.RGB_LANES
        KC = 9 * C
        has_noise = (float(self.noise_strength) != 0.0)

        kernel = functools.partial(
            _generator_kernel, n_layers=L, input_is_latent=input_is_latent,
            Bp=Bp, C=C, HW=HW, noise_strength=float(self.noise_strength),
            has_noise=has_noise)

        inputs = [x]
        in_specs = [pl.BlockSpec((Bp, D), lambda i: (0, 0))]
        if not input_is_latent:
            inputs += [self.map_w_stack, self.map_b_stack]
            in_specs += [pl.BlockSpec((L, D, D), lambda i: (0, 0, 0)),
                         pl.BlockSpec((L, 1, D), lambda i: (0, 0, 0))]
        inputs += [self.aff_w_bf16, self.aff_b, self.taps_stacked,
                   self.conv_w_stacked, self.wsq, self.conv_b,
                   self.rgb_aff_w_bf16, self.rgb_aff_b,
                   self.rgb_w_pad, self.rgb_b_pad]
        in_specs += [
            pl.BlockSpec((D, C), lambda i: (0, 0)),
            pl.BlockSpec((1, C), lambda i: (0, 0)),
            pl.BlockSpec((HW, KC), lambda i: (0, 0)),
            pl.BlockSpec((KC, C), lambda i: (0, 0)),
            pl.BlockSpec((C, C), lambda i: (0, 0)),
            pl.BlockSpec((1, C), lambda i: (0, 0)),
            pl.BlockSpec((D, C), lambda i: (0, 0)),
            pl.BlockSpec((1, C), lambda i: (0, 0)),
            pl.BlockSpec((C, OUT), lambda i: (0, 0)),
            pl.BlockSpec((1, OUT), lambda i: (0, 0)),
        ]
        if has_noise:
            inputs.append(self.noise_hw)
            in_specs.append(pl.BlockSpec((HW, 1), lambda i: (0, 0)))

        return pl.pallas_call(
            kernel,
            out_shape=jax.ShapeDtypeStruct((R, OUT), jnp.float32),
            grid=(1,),
            in_specs=in_specs,
            out_specs=pl.BlockSpec((R, OUT), lambda i: (0, 0)),
            compiler_params=pltpu.CompilerParams(
                dimension_semantics=("arbitrary",)),
        )(*inputs)

    # ---- wrapper forward (matches StyleGAN2Wrapper.forward) ------------------
    def __call__(self, inp, input_is_latent=False):
        B, D = inp.shape
        assert D == self.dim_z
        Bp = max(8, ((B + 7) // 8) * 8)            # pad rows to f32 sublanes
        x = jnp.pad(inp.astype(jnp.float32), ((0, Bp - B), (0, 0)))
        rgb_rows = self._generator_call(x, Bp, input_is_latent)   # (Bp*HW, 128)
        H = self.RES
        rgb = rgb_rows[:B * H * H, :3].reshape(B, H, H, 3)
        return rgb.transpose(0, 3, 1, 2)           # NCHW, (B, 3, H, W)

    # ---- pure-JAX reference (independent math path, for correctness check) --
    def _reference(self, inp, input_is_latent=False):
        x = inp.astype(jnp.float32)
        if not input_is_latent:
            x = x * jax.lax.rsqrt(jnp.mean(x * x, axis=-1, keepdims=True) + 1e-8)
            for i in range(self.N_MAPPING):
                x = x @ self.map_w[i] + self.map_b[i]
                x = jnp.where(x >= 0.0, x, 0.2 * x) * math.sqrt(2.0)
        w_lat = x
        B = w_lat.shape[0]
        C, H = self.CH, self.RES
        s_conv = w_lat @ self.aff_w + self.aff_b
        s_rgb = w_lat @ self.rgb_aff_w + self.rgb_aff_b
        xm = jnp.broadcast_to(self.const, (B, C, H, H)) * s_conv[:, :, None, None]
        w_sq = (self.conv_w[None] * s_conv[:, None, :, None, None]) ** 2
        demod = jax.lax.rsqrt(jnp.sum(w_sq, axis=(2, 3, 4)) + 1e-8)
        xp = jnp.pad(xm, ((0, 0), (0, 0), (1, 1), (1, 1)))
        y = jnp.zeros((B, C, H, H), jnp.float32)
        for ky in range(3):
            for kx in range(3):
                patch = xp[:, :, ky:ky + H, kx:kx + H]
                y = y + jnp.einsum('bihw,oi->bohw', patch, self.conv_w[:, :, ky, kx])
        y = y * demod[:, :, None, None]
        y = y + self.noise_strength * self.noise
        y = y + self.conv_b.reshape(1, C, 1, 1)
        y = jnp.where(y >= 0.0, y, 0.2 * y) * math.sqrt(2.0)
        y = y * s_rgb[:, :, None, None]
        rgb = jnp.einsum('bchw,co->bohw', y, self.rgb_w) + self.rgb_b.reshape(1, 3, 1, 1)
        return rgb


# ----------------------------------------------------------------------------
if __name__ == "__main__":
    key = jax.random.PRNGKey(0)
    k_params, k_z = jax.random.split(key)

    gen = StyleGAN2WrapperPallas(k_params)

    batch = 2
    z = jax.random.normal(k_z, (batch, gen.dim_z), jnp.float32)     # (2, 512)

    fwd_z = jax.jit(lambda t: gen(t, input_is_latent=False))
    fwd_w = jax.jit(lambda t: gen(t, input_is_latent=True))

    # z -> mapping -> synthesis
    img = jax.block_until_ready(fwd_z(z))
    assert img.shape == (batch, 3, gen.RES, gen.RES)
    assert img.dtype == jnp.float32
    assert bool(jnp.all(jnp.isfinite(img)))
    ref = gen._reference(z, input_is_latent=False)
    err = float(jnp.max(jnp.abs(img - ref)) / (jnp.max(jnp.abs(ref)) + 1e-6))
    assert err < 5e-2, f"mapping-path mismatch, rel max err={err}"

    # input_is_latent=True path of the wrapper
    w_lat = jax.random.normal(k_z, (batch, gen.dim_z), jnp.float32)
    img2 = jax.block_until_ready(fwd_w(w_lat))
    assert img2.shape == (batch, 3, gen.RES, gen.RES)
    ref2 = gen._reference(w_lat, input_is_latent=True)
    err2 = float(jnp.max(jnp.abs(img2 - ref2)) / (jnp.max(jnp.abs(ref2)) + 1e-6))
    assert err2 < 5e-2, f"latent-path mismatch, rel max err={err2}"

    print("KERNEL_OK")
</pallas_src>

<mosaic_0001>
module attributes {stable_mosaic.version = 11 : i64} {
  func.func @_generator_kernel(%arg0: i32, %arg1: memref<8x512xf32, #tpu.memory_space<vmem>>, %arg2: memref<2x512x512xbf16, #tpu.memory_space<vmem>>, %arg3: memref<2x1x512xf32, #tpu.memory_space<vmem>>, %arg4: memref<512x64xbf16, #tpu.memory_space<vmem>>, %arg5: memref<1x64xf32, #tpu.memory_space<vmem>>, %arg6: memref<16x576xbf16, #tpu.memory_space<vmem>>, %arg7: memref<576x64xbf16, #tpu.memory_space<vmem>>, %arg8: memref<64x64xf32, #tpu.memory_space<vmem>>, %arg9: memref<1x64xf32, #tpu.memory_space<vmem>>, %arg10: memref<512x64xbf16, #tpu.memory_space<vmem>>, %arg11: memref<1x64xf32, #tpu.memory_space<vmem>>, %arg12: memref<64x128xbf16, #tpu.memory_space<vmem>>, %arg13: memref<1x128xf32, #tpu.memory_space<vmem>>, %arg14: memref<128x128xf32, #tpu.memory_space<vmem>>) attributes {dimension_semantics = [#tpu.dimension_semantics<arbitrary>], iteration_bounds = array<i64: 1>, scalar_prefetch = 0 : i64, scratch_operands = 0 : i64, tpu.core_type = #tpu.core_type<tc>, window_params = [{pipeline_mode = #tpu.pipeline_mode<synchronous>, transform_indices = @transform_0, window_bounds = array<i64: 8, 512>}, {pipeline_mode = #tpu.pipeline_mode<synchronous>, transform_indices = @transform_1, window_bounds = array<i64: 2, 512, 512>}, {pipeline_mode = #tpu.pipeline_mode<synchronous>, transform_indices = @transform_2, window_bounds = array<i64: 2, 1, 512>}, {pipeline_mode = #tpu.pipeline_mode<synchronous>, transform_indices = @transform_3, window_bounds = array<i64: 512, 64>}, {pipeline_mode = #tpu.pipeline_mode<synchronous>, transform_indices = @transform_4, window_bounds = array<i64: 1, 64>}, {pipeline_mode = #tpu.pipeline_mode<synchronous>, transform_indices = @transform_5, window_bounds = array<i64: 16, 576>}, {pipeline_mode = #tpu.pipeline_mode<synchronous>, transform_indices = @transform_6, window_bounds = array<i64: 576, 64>}, {pipeline_mode = #tpu.pipeline_mode<synchronous>, transform_indices = @transform_7, window_bounds = array<i64: 64, 64>}, {pipeline_mode = #tpu.pipeline_mode<synchronous>, transform_indices = @transform_8, window_bounds = array<i64: 1, 64>}, {pipeline_mode = #tpu.pipeline_mode<synchronous>, transform_indices = @transform_9, window_bounds = array<i64: 512, 64>}, {pipeline_mode = #tpu.pipeline_mode<synchronous>, transform_indices = @transform_10, window_bounds = array<i64: 1, 64>}, {pipeline_mode = #tpu.pipeline_mode<synchronous>, transform_indices = @transform_11, window_bounds = array<i64: 64, 128>}, {pipeline_mode = #tpu.pipeline_mode<synchronous>, transform_indices = @transform_12, window_bounds = array<i64: 1, 128>}, {pipeline_mode = #tpu.pipeline_mode<synchronous>, transform_indices = @transform_13, window_bounds = array<i64: 128, 128>}]} {
    %c0 = arith.constant 0 : index
    %c0_0 = arith.constant 0 : index
    %0 = vector.load %arg1[%c0, %c0_0] : memref<8x512xf32, #tpu.memory_space<vmem>>, vector<8x512xf32>
    %1 = arith.mulf %0, %0 : vector<8x512xf32>
    %cst = arith.constant dense<0.000000e+00> : vector<8xf32>
    %2 = vector.multi_reduction <add>, %1, %cst [1] : vector<8x512xf32> to vector<8xf32>
    %3 = vector.shape_cast %2 : vector<8xf32> to vector<8x1xf32>
    %cst_1 = arith.constant 5.120000e+02 : f32
    %4 = vector.broadcast %cst_1 : f32 to vector<8x1xf32>
    %5 = arith.divf %3, %4 : vector<8x1xf32>
    %cst_2 = arith.constant 9.99999993E-9 : f32
    %6 = vector.broadcast %cst_2 : f32 to vector<8x1xf32>
    %7 = arith.addf %5, %6 : vector<8x1xf32>
    %8 = math.rsqrt %7 : vector<8x1xf32>
    %9 = vector.broadcast %8 : vector<8x1xf32> to vector<8x512xf32>
    %10 = arith.mulf %0, %9 : vector<8x512xf32>
    %11 = arith.truncf %10 : vector<8x512xf32> to vector<8x512xbf16>
    %c0_3 = arith.constant 0 : index
    %c0_4 = arith.constant 0 : index
    %c0_5 = arith.constant 0 : index
    %12 = vector.load %arg2[%c0_3, %c0_4, %c0_5] : memref<2x512x512xbf16, #tpu.memory_space<vmem>>, vector<1x512x512xbf16>
    %13 = vector.shape_cast %12 : vector<1x512x512xbf16> to vector<512x512xbf16>
    %cst_6 = arith.constant dense<0.000000e+00> : vector<8x512xf32>
    %14 = tpu.matmul %11, %13, %cst_6 {dimension_numbers = #tpu.dot_dimension_numbers<[1], [0], [0], [1], [0, 0, 1, 1], [], []>} : vector<8x512xbf16>, vector<512x512xbf16>, vector<8x512xf32> -> vector<8x512xf32>
    %c0_7 = arith.constant 0 : index
    %c0_8 = arith.constant 0 : index
    %c0_9 = arith.constant 0 : index
    %15 = vector.load %arg3[%c0_7, %c0_8, %c0_9] : memref<2x1x512xf32, #tpu.memory_space<vmem>>, vector<1x1x512xf32>
    %16 = vector.shape_cast %15 : vector<1x1x512xf32> to vector<1x512xf32>
    %17 = vector.broadcast %16 : vector<1x512xf32> to vector<8x512xf32>
    %18 = arith.addf %14, %17 : vector<8x512xf32>
    %cst_10 = arith.constant 0.000000e+00 : f32
    %19 = vector.broadcast %cst_10 : f32 to vector<8x512xf32>
    %20 = arith.cmpf oge, %18, %19 : vector<8x512xf32>
    %cst_11 = arith.constant 2.000000e-01 : f32
    %21 = vector.broadcast %cst_11 : f32 to vector<8x512xf32>
    %22 = arith.mulf %21, %18 : vector<8x512xf32>
    %23 = arith.select %20, %18, %22 : vector<8x512xi1>, vector<8x512xf32>
    %24 = arith.truncf %23 : vector<8x512xf32> to vector<8x512xbf16>
    %c1 = arith.constant 1 : index
    %c0_12 = arith.constant 0 : index
    %c0_13 = arith.constant 0 : index
    %25 = vector.load %arg2[%c1, %c0_12, %c0_13] : memref<2x512x512xbf16, #tpu.memory_space<vmem>>, vector<1x512x512xbf16>
    %26 = vector.shape_cast %25 : vector<1x512x512xbf16> to vector<512x512xbf16>
    %cst_14 = arith.constant dense<0.000000e+00> : vector<8x512xf32>
    %27 = tpu.matmul %24, %26, %cst_14 {dimension_numbers = #tpu.dot_dimension_numbers<[1], [0], [0], [1], [0, 0, 1, 1], [], []>} : vector<8x512xbf16>, vector<512x512xbf16>, vector<8x512xf32> -> vector<8x512xf32>
    %c1_15 = arith.constant 1 : index
    %c0_16 = arith.constant 0 : index
    %c0_17 = arith.constant 0 : index
    %28 = vector.load %arg3[%c1_15, %c0_16, %c0_17] : memref<2x1x512xf32, #tpu.memory_space<vmem>>, vector<1x1x512xf32>
    %29 = vector.shape_cast %28 : vector<1x1x512xf32> to vector<1x512xf32>
    %30 = vector.broadcast %29 : vector<1x512xf32> to vector<8x512xf32>
    %31 = arith.addf %27, %30 : vector<8x512xf32>
    %cst_18 = arith.constant 0.000000e+00 : f32
    %32 = vector.broadcast %cst_18 : f32 to vector<8x512xf32>
    %33 = arith.cmpf oge, %31, %32 : vector<8x512xf32>
    %cst_19 = arith.constant 2.000000e-01 : f32
    %34 = vector.broadcast %cst_19 : f32 to vector<8x512xf32>
    %35 = arith.mulf %34, %31 : vector<8x512xf32>
    %36 = arith.select %33, %31, %35 : vector<8x512xi1>, vector<8x512xf32>
    %37 = arith.truncf %36 : vector<8x512xf32> to vector<8x512xbf16>
    %c0_20 = arith.constant 0 : index
    %c0_21 = arith.constant 0 : index
    %38 = vector.load %arg4[%c0_20, %c0_21] : memref<512x64xbf16, #tpu.memory_space<vmem>>, vector<512x64xbf16>
    %cst_22 = arith.constant dense<0.000000e+00> : vector<8x64xf32>
    %39 = tpu.matmul %37, %38, %cst_22 {dimension_numbers = #tpu.dot_dimension_numbers<[1], [0], [0], [1], [0, 0, 1, 1], [], []>} : vector<8x512xbf16>, vector<512x64xbf16>, vector<8x64xf32> -> vector<8x64xf32>
    %c0_23 = arith.constant 0 : index
    %c0_24 = arith.constant 0 : index
    %40 = vector.load %arg5[%c0_23, %c0_24] : memref<1x64xf32, #tpu.memory_space<vmem>>, vector<1x64xf32>
    %41 = vector.broadcast %40 : vector<1x64xf32> to vector<8x64xf32>
    %42 = arith.addf %39, %41 : vector<8x64xf32>
    %c0_25 = arith.constant 0 : index
    %c0_26 = arith.constant 0 : index
    %43 = vector.load %arg10[%c0_25, %c0_26] : memref<512x64xbf16, #tpu.memory_space<vmem>>, vector<512x64xbf16>
    %cst_27 = arith.constant dense<0.000000e+00> : vector<8x64xf32>
    %44 = tpu.matmul %37, %43, %cst_27 {dimension_numbers = #tpu.dot_dimension_numbers<[1], [0], [0], [1], [0, 0, 1, 1], [], []>} : vector<8x512xbf16>, vector<512x64xbf16>, vector<8x64xf32> -> vector<8x64xf32>
    %c0_28 = arith.constant 0 : index
    %c0_29 = arith.constant 0 : index
    %45 = vector.load %arg11[%c0_28, %c0_29] : memref<1x64xf32, #tpu.memory_space<vmem>>, vector<1x64xf32>
    %46 = vector.broadcast %45 : vector<1x64xf32> to vector<8x64xf32>
    %47 = arith.addf %44, %46 : vector<8x64xf32>
    %48 = arith.mulf %42, %42 : vector<8x64xf32>
    %c0_30 = arith.constant 0 : index
    %c0_31 = arith.constant 0 : index
    %49 = vector.load %arg8[%c0_30, %c0_31] : memref<64x64xf32, #tpu.memory_space<vmem>>, vector<64x64xf32>
    %cst_32 = arith.constant dense<0.000000e+00> : vector<8x64xf32>
    %50 = tpu.matmul %48, %49, %cst_32 {dimension_numbers = #tpu.dot_dimension_numbers<[1], [0], [0], [1], [0, 0, 1, 1], [], []>} : vector<8x64xf32>, vector<64x64xf32>, vector<8x64xf32> -> vector<8x64xf32>
    %cst_33 = arith.constant 9.99999993E-9 : f32
    %51 = vector.broadcast %cst_33 : f32 to vector<8x64xf32>
    %52 = arith.addf %50, %51 : vector<8x64xf32>
    %53 = math.rsqrt %52 : vector<8x64xf32>
    %54 = tpu.concatenate %42, %42, %42, %42, %42, %42, %42, %42, %42 in 1 : vector<8x64xf32>, vector<8x64xf32>, vector<8x64xf32>, vector<8x64xf32>, vector<8x64xf32>, vector<8x64xf32>, vector<8x64xf32>, vector<8x64xf32>, vector<8x64xf32> -> vector<8x576xf32>
    %c0_34 = arith.constant 0 : index
    %c0_35 = arith.constant 0 : index
    %55 = vector.load %arg6[%c0_34, %c0_35] : memref<16x576xbf16, #tpu.memory_space<vmem>>, vector<16x576xbf16>
    %56 = arith.extf %55 : vector<16x576xbf16> to vector<16x576xf32>
    %57 = vector.shape_cast %56 : vector<16x576xf32> to vector<1x16x576xf32>
    %58 = vector.shape_cast %54 : vector<8x576xf32> to vector<8x1x576xf32>
    %59 = vector.broadcast %57 : vector<1x16x576xf32> to vector<8x16x576xf32>
    %60 = vector.broadcast %58 : vector<8x1x576xf32> to vector<8x16x576xf32>
    %61 = arith.mulf %59, %60 : vector<8x16x576xf32>
    %62 = vector.shape_cast %61 : vector<8x16x576xf32> to vector<128x576xf32>
    %63 = arith.truncf %62 : vector<128x576xf32> to vector<128x576xbf16>
    %c0_36 = arith.constant 0 : index
    %c0_37 = arith.constant 0 : index
    %64 = vector.load %arg7[%c0_36, %c0_37] : memref<576x64xbf16, #tpu.memory_space<vmem>>, vector<576x64xbf16>
    %cst_38 = arith.constant dense<0.000000e+00> : vector<128x64xf32>
    %65 = tpu.matmul %63, %64, %cst_38 {dimension_numbers = #tpu.dot_dimension_numbers<[1], [0], [0], [1], [0, 0, 1, 1], [], []>} : vector<128x576xbf16>, vector<576x64xbf16>, vector<128x64xf32> -> vector<128x64xf32>
    %66 = vector.shape_cast %53 : vector<8x64xf32> to vector<8x1x64xf32>
    %67 = vector.shape_cast %66 : vector<8x1x64xf32> to vector<8x1x64xf32>
    %68 = vector.broadcast %67 : vector<8x1x64xf32> to vector<8x16x64xf32>
    %69 = vector.shape_cast %68 : vector<8x16x64xf32> to vector<128x64xf32>
    %70 = arith.mulf %65, %69 : vector<128x64xf32>
    %c0_39 = arith.constant 0 : index
    %c0_40 = arith.constant 0 : index
    %71 = vector.load %arg9[%c0_39, %c0_40] : memref<1x64xf32, #tpu.memory_space<vmem>>, vector<1x64xf32>
    %72 = vector.broadcast %71 : vector<1x64xf32> to vector<128x64xf32>
    %73 = arith.addf %70, %72 : vector<128x64xf32>
    %cst_41 = arith.constant 0.000000e+00 : f32
    %74 = vector.broadcast %cst_41 : f32 to vector<128x64xf32>
    %75 = arith.cmpf oge, %73, %74 : vector<128x64xf32>
    %cst_42 = arith.constant 2.000000e-01 : f32
    %76 = vector.broadcast %cst_42 : f32 to vector<128x64xf32>
    %77 = arith.mulf %76, %73 : vector<128x64xf32>
    %78 = arith.select %75, %73, %77 : vector<128x64xi1>, vector<128x64xf32>
    %79 = vector.shape_cast %47 : vector<8x64xf32> to vector<8x1x64xf32>
    %80 = vector.shape_cast %79 : vector<8x1x64xf32> to vector<8x1x64xf32>
    %81 = vector.broadcast %80 : vector<8x1x64xf32> to vector<8x16x64xf32>
    %82 = vector.shape_cast %81 : vector<8x16x64xf32> to vector<128x64xf32>
    %83 = arith.mulf %78, %82 : vector<128x64xf32>
    %84 = arith.truncf %83 : vector<128x64xf32> to vector<128x64xbf16>
    %c0_43 = arith.constant 0 : index
    %c0_44 = arith.constant 0 : index
    %85 = vector.load %arg12[%c0_43, %c0_44] : memref<64x128xbf16, #tpu.memory_space<vmem>>, vector<64x128xbf16>
    %cst_45 = arith.constant dense<0.000000e+00> : vector<128x128xf32>
    %86 = tpu.matmul %84, %85, %cst_45 {dimension_numbers = #tpu.dot_dimension_numbers<[1], [0], [0], [1], [0, 0, 1, 1], [], []>} : vector<128x64xbf16>, vector<64x128xbf16>, vector<128x128xf32> -> vector<128x128xf32>
    %c0_46 = arith.constant 0 : index
    %c0_47 = arith.constant 0 : index
    %87 = vector.load %arg13[%c0_46, %c0_47] : memref<1x128xf32, #tpu.memory_space<vmem>>, vector<1x128xf32>
    %88 = vector.broadcast %87 : vector<1x128xf32> to vector<128x128xf32>
    %89 = arith.addf %86, %88 : vector<128x128xf32>
    %c0_48 = arith.constant 0 : index
    %c0_49 = arith.constant 0 : index
    %90 = vector.load %arg14[%c0_48, %c0_49] : memref<128x128xf32, #tpu.memory_space<vmem>>, vector<128x128xf32>
    tpu.vector_store %arg14[%c0_48, %c0_49], %89 {strides = array<i32>} : memref<128x128xf32, #tpu.memory_space<vmem>>, vector<128x128xf32>,
    return
  }
  func.func @transform_0(%arg0: i32) -> (i32, i32) {
    %c0_i32 = arith.constant 0 : i32
    %c0_i32_0 = arith.constant 0 : i32
    %c0_i32_1 = arith.constant 0 : i32
    return %c0_i32, %c0_i32_0 : i32, i32
  }
  func.func @transform_1(%arg0: i32) -> (i32, i32, i32) {
    %c0_i32 = arith.constant 0 : i32
    %c0_i32_0 = arith.constant 0 : i32
    %c0_i32_1 = arith.constant 0 : i32
    %c0_i32_2 = arith.constant 0 : i32
    return %c0_i32, %c0_i32_0, %c0_i32_1 : i32, i32, i32
  }
  func.func @transform_2(%arg0: i32) -> (i32, i32, i32) {
    %c0_i32 = arith.constant 0 : i32
    %c0_i32_0 = arith.constant 0 : i32
    %c0_i32_1 = arith.constant 0 : i32
    %c0_i32_2 = arith.constant 0 : i32
    return %c0_i32, %c0_i32_0, %c0_i32_1 : i32, i32, i32
  }
  func.func @transform_3(%arg0: i32) -> (i32, i32) {
    %c0_i32 = arith.constant 0 : i32
    %c0_i32_0 = arith.constant 0 : i32
    %c0_i32_1 = arith.constant 0 : i32
    return %c0_i32, %c0_i32_0 : i32, i32
  }
  func.func @transform_4(%arg0: i32) -> (i32, i32) {
    %c0_i32 = arith.constant 0 : i32
    %c0_i32_0 = arith.constant 0 : i32
    %c0_i32_1 = arith.constant 0 : i32
    return %c0_i32, %c0_i32_0 : i32, i32
  }
  func.func @transform_5(%arg0: i32) -> (i32, i32) {
    %c0_i32 = arith.constant 0 : i32
    %c0_i32_0 = arith.constant 0 : i32
    %c0_i32_1 = arith.constant 0 : i32
    return %c0_i32, %c0_i32_0 : i32, i32
  }
  func.func @transform_6(%arg0: i32) -> (i32, i32) {
    %c0_i32 = arith.constant 0 : i32
    %c0_i32_0 = arith.constant 0 : i32
    %c0_i32_1 = arith.constant 0 : i32
    return %c0_i32, %c0_i32_0 : i32, i32
  }
  func.func @transform_7(%arg0: i32) -> (i32, i32) {
    %c0_i32 = arith.constant 0 : i32
    %c0_i32_0 = arith.constant 0 : i32
    %c0_i32_1 = arith.constant 0 : i32
    return %c0_i32, %c0_i32_0 : i32, i32
  }
  func.func @transform_8(%arg0: i32) -> (i32, i32) {
    %c0_i32 = arith.constant 0 : i32
    %c0_i32_0 = arith.constant 0 : i32
    %c0_i32_1 = arith.constant 0 : i32
    return %c0_i32, %c0_i32_0 : i32, i32
  }
  func.func @transform_9(%arg0: i32) -> (i32, i32) {
    %c0_i32 = arith.constant 0 : i32
    %c0_i32_0 = arith.constant 0 : i32
    %c0_i32_1 = arith.constant 0 : i32
    return %c0_i32, %c0_i32_0 : i32, i32
  }
  func.func @transform_10(%arg0: i32) -> (i32, i32) {
    %c0_i32 = arith.constant 0 : i32
    %c0_i32_0 = arith.constant 0 : i32
    %c0_i32_1 = arith.constant 0 : i32
    return %c0_i32, %c0_i32_0 : i32, i32
  }
  func.func @transform_11(%arg0: i32) -> (i32, i32) {
    %c0_i32 = arith.constant 0 : i32
    %c0_i32_0 = arith.constant 0 : i32
    %c0_i32_1 = arith.constant 0 : i32
    return %c0_i32, %c0_i32_0 : i32, i32
  }
  func.func @transform_12(%arg0: i32) -> (i32, i32) {
    %c0_i32 = arith.constant 0 : i32
    %c0_i32_0 = arith.constant 0 : i32
    %c0_i32_1 = arith.constant 0 : i32
    return %c0_i32, %c0_i32_0 : i32, i32
  }
  func.func @transform_13(%arg0: i32) -> (i32, i32) {
    %c0_i32 = arith.constant 0 : i32
    %c0_i32_0 = arith.constant 0 : i32
    %c0_i32_1 = arith.constant 0 : i32
    return %c0_i32, %c0_i32_0 : i32, i32
  }
}

</mosaic_0001>

<llo_original>
// kernel: _lambda_.1
$region0: #{_lambda_.1}
  #allocation0 [shape = 'u32[]', space=smem, size = 0x4, offset = 0x4, fixed_abs, tag = 'smem constant byte address 0x4 - core index']
  #allocation1 [shape = 'u32[144,128]{1,0:T(1,128)}', space=vmem, size = 0x12000, scoped, tag = 'internal scratch']
  %s0 = inlined_call_operand.vmem [shape: f32[8,512], index: 0, kind: input, shape index: {}]
  %s1 = inlined_call_operand.hbm [shape: bf16[2,512,512], index: 1, kind: input, shape index: {}]
  %s2 = inlined_call_operand.vmem [shape: f32[2,1,512], index: 2, kind: input, shape index: {}]
  %s3 = inlined_call_operand.hbm [shape: bf16[512,64], index: 3, kind: input, shape index: {}]
  %s4 = inlined_call_operand.vmem [shape: f32[1,64], index: 4, kind: input, shape index: {}, may-alias: {4,10}]
  %s5 = inlined_call_operand.hbm [shape: bf16[16,576], index: 5, kind: input, shape index: {}]
  %s6 = inlined_call_operand.hbm [shape: bf16[576,64], index: 6, kind: input, shape index: {}]
  %s7 = inlined_call_operand.vmem [shape: f32[64,64], index: 7, kind: input, shape index: {}]
  %s8 = inlined_call_operand.vmem [shape: f32[1,64], index: 8, kind: input, shape index: {}]
  %s9 = inlined_call_operand.hbm [shape: bf16[512,64], index: 9, kind: input, shape index: {}]
  %s10 = inlined_call_operand.vmem [shape: f32[1,64], index: 10, kind: input, shape index: {}, may-alias: {4,10}]
  %s11 = inlined_call_operand.hbm [shape: bf16[64,128], index: 11, kind: input, shape index: {}]
  %s12 = inlined_call_operand.vmem [shape: f32[1,128], index: 12, kind: input, shape index: {}]
  %s13 = inlined_call_operand.vmem [shape: f32[128,128], index: 13, kind: output, shape index: {}]
  %s14 = sld [smem:[#allocation0]]
  $region86: #{_lambda_.1} parent=0
    _
  %s16 = ssub.s32 1, %s14
  %s17 = scalar_select 0, %s16, %s14
  $region1: #{_lambda_.1} parent=0
    #allocation2 [shape = 'u8[1048576]{0}', space=vmem, size = 0x100000, scoped, tag = 'input window, operand 1, single buffered']
    #allocation3 [shape = 's32[1]{0}', space=sflag, size = 0x4, scoped, tag = 'scoped memory for _lambda_.1']
    #allocation4 [shape = 'u8[131072]{0}', space=vmem, size = 0x20000, scoped, tag = 'input window, operand 3, single buffered']
    #allocation5 [shape = 's32[1]{0}', space=sflag, size = 0x4, scoped, tag = 'scoped memory for _lambda_.1']
    #allocation6 [shape = 'u8[20480]{0}', space=vmem, size = 0x5000, scoped, tag = 'input window, operand 5, single buffered']
    #allocation7 [shape = 'u8[147456]{0}', space=vmem, size = 0x24000, scoped, tag = 'input window, operand 6, single buffered']
    #allocation8 [shape = 's32[1]{0}', space=sflag, size = 0x4, scoped, tag = 'scoped memory for _lambda_.1']
    #allocation9 [shape = 'u8[131072]{0}', space=vmem, size = 0x20000, scoped, tag = 'input window, operand 9, single buffered']
    #allocation10 [shape = 'u8[16384]{0}', space=vmem, size = 0x4000, scoped, tag = 'input window, operand 11, single buffered']
    #allocation11 [shape = 's32[1]{0}', space=sflag, size = 0x4, scoped, tag = 'scoped memory for _lambda_.1']
    %18 = vsyncpa [#allocation3], 0
    %19 = vsyncpa [#allocation5], 0
    %20 = vsyncpa [#allocation8], 0
    %21 = vsyncpa [#allocation11], 0
    // Predicated region
    $region2: #{_lambda_.1} parent=1 // pred_check
      _
    $region3: #{_lambda_.1} parent=1 // pred_check_branch
      %23 = sbr.rel (0) target = $region5
    $region4: #{_lambda_.1} parent=1 // pred_region
      _
    $region5: #{_lambda_.1} parent=1 // pred_fallthru
      _
    // Predicated region
    $region6: #{_lambda_.1} parent=1 // pred_check
      _
    $region7: #{_lambda_.1} parent=1 // pred_check_branch
      %25 = sbr.rel (0) target = $region9
    $region8: #{_lambda_.1} parent=1 // pred_region
      %s27 = ssub.s32 32768, 32768
      %28 = vsyncadd [#allocation3], %s27
      %s29 = sshll.u32 [#allocation2], 4
      %s30 = int_to_ptr.vmem [resolvable:$true] %s29
      %35 = dma.hbm_to_vmem [thread:$0]  %s1, 32768, %s30, [#allocation3], 256, 256, 16
    $region9: #{_lambda_.1} parent=1 // pred_fallthru
      _
    // Predicated region
    $region10: #{_lambda_.1} parent=1 // pred_check
      _
    $region11: #{_lambda_.1} parent=1 // pred_check_branch
      %37 = sbr.rel (0) target = $region13
    $region12: #{_lambda_.1} parent=1 // pred_region
      _
    $region13: #{_lambda_.1} parent=1 // pred_fallthru
      _
    // Predicated region
    $region14: #{_lambda_.1} parent=1 // pred_check
      _
    $region15: #{_lambda_.1} parent=1 // pred_check_branch
      %39 = sbr.rel (0) target = $region17
    $region16: #{_lambda_.1} parent=1 // pred_region
      %s41 = ssub.s32 4096, 4096
      %42 = vsyncadd [#allocation5], %s41
      %s43 = sshll.u32 [#allocation4], 4
      %s44 = int_to_ptr.vmem [resolvable:$true] %s43
      %49 = dma.hbm_to_vmem [thread:$0]  %s3, 4096, %s44, [#allocation5], 64, 64, 4
    $region17: #{_lambda_.1} parent=1 // pred_fallthru
      _
    // Predicated region
    $region18: #{_lambda_.1} parent=1 // pred_check
      _
    $region19: #{_lambda_.1} parent=1 // pred_check_branch
      %51 = sbr.rel (0) target = $region21
    $region20: #{_lambda_.1} parent=1 // pred_region
      _
    $region21: #{_lambda_.1} parent=1 // pred_fallthru
      _
    // Predicated region
    $region22: #{_lambda_.1} parent=1 // pred_check
      _
    $region23: #{_lambda_.1} parent=1 // pred_check_branch
      %53 = sbr.rel (0) target = $region25
    $region24: #{_lambda_.1} parent=1 // pred_region
      %s55 = ssub.s32 640, 640
      %56 = vsyncadd [#allocation5], %s55
      %s57 = sshll.u32 [#allocation6], 4
      %s58 = int_to_ptr.vmem [resolvable:$true] %s57
      %63 = dma.hbm_to_vmem [thread:$0]  %s5, 640, %s58, [#allocation5], 320, 320, 20
    $region25: #{_lambda_.1} parent=1 // pred_fallthru
      _
    // Predicated region
    $region26: #{_lambda_.1} parent=1 // pred_check
      _
    $region27: #{_lambda_.1} parent=1 // pred_check_branch
      %65 = sbr.rel (0) target = $region29
    $region28: #{_lambda_.1} parent=1 // pred_region
      %s67 = ssub.s32 4608, 4608
      %68 = vsyncadd [#allocation8], %s67
      %s69 = sshll.u32 [#allocation7], 4
      %s70 = int_to_ptr.vmem [resolvable:$true] %s69
      %75 = dma.hbm_to_vmem [thread:$0]  %s6, 4608, %s70, [#allocation8], 64, 64, 4
    $region29: #{_lambda_.1} parent=1 // pred_fallthru
      _
    // Predicated region
    $region30: #{_lambda_.1} parent=1 // pred_check
      _
    $region31: #{_lambda_.1} parent=1 // pred_check_branch
      %77 = sbr.rel (0) target = $region33
    $region32: #{_lambda_.1} parent=1 // pred_region
      _
    $region33: #{_lambda_.1} parent=1 // pred_fallthru
      _
    // Predicated region
    $region34: #{_lambda_.1} parent=1 // pred_check
      _
    $region35: #{_lambda_.1} parent=1 // pred_check_branch
      %79 = sbr.rel (0) target = $region37
    $region36: #{_lambda_.1} parent=1 // pred_region
      _
    $region37: #{_lambda_.1} parent=1 // pred_fallthru
      _
    // Predicated region
    $region38: #{_lambda_.1} parent=1 // pred_check
      _
    $region39: #{_lambda_.1} parent=1 // pred_check_branch
      %81 = sbr.rel (0) target = $region41
    $region40: #{_lambda_.1} parent=1 // pred_region
      %s83 = ssub.s32 4096, 4096
      %84 = vsyncadd [#allocation8], %s83
      %s85 = sshll.u32 [#allocation9], 4
      %s86 = int_to_ptr.vmem [resolvable:$true] %s85
      %91 = dma.hbm_to_vmem [thread:$0]  %s9, 4096, %s86, [#allocation8], 64, 64, 4
    $region41: #{_lambda_.1} parent=1 // pred_fallthru
      _
    // Predicated region
    $region42: #{_lambda_.1} parent=1 // pred_check
      _
    $region43: #{_lambda_.1} parent=1 // pred_check_branch
      %93 = sbr.rel (0) target = $region45
    $region44: #{_lambda_.1} parent=1 // pred_region
      _
    $region45: #{_lambda_.1} parent=1 // pred_fallthru
      _
    // Predicated region
    $region46: #{_lambda_.1} parent=1 // pred_check
      _
    $region47: #{_lambda_.1} parent=1 // pred_check_branch
      %95 = sbr.rel (0) target = $region49
    $region48: #{_lambda_.1} parent=1 // pred_region
      %s97 = ssub.s32 512, 512
      %98 = vsyncadd [#allocation11], %s97
      %s99 = sshll.u32 [#allocation10], 4
      %s100 = int_to_ptr.vmem [resolvable:$true] %s99
      %105 = dma.hbm_to_vmem [thread:$0]  %s11, 512, %s100, [#allocation11], 64, 64, 4
    $region49: #{_lambda_.1} parent=1 // pred_fallthru
      _
    // Predicated region
    $region50: #{_lambda_.1} parent=1 // pred_check
      _
    $region51: #{_lambda_.1} parent=1 // pred_check_branch
      %107 = sbr.rel (0) target = $region53
    $region52: #{_lambda_.1} parent=1 // pred_region
      _
    $region53: #{_lambda_.1} parent=1 // pred_fallthru
      _
    // Predicated region
    $region54: #{_lambda_.1} parent=1 // pred_check
      _
    $region55: #{_lambda_.1} parent=1 // pred_check_branch
      %109 = sbr.rel (0) target = $region57
    $region56: #{_lambda_.1} parent=1 // pred_region
      %110 = dma.done [#allocation3], 32768
    $region57: #{_lambda_.1} parent=1 // pred_fallthru
      _
    // Predicated region
    $region58: #{_lambda_.1} parent=1 // pred_check
      _
    $region59: #{_lambda_.1} parent=1 // pred_check_branch
      %112 = sbr.rel (0) target = $region61
    $region60: #{_lambda_.1} parent=1 // pred_region
      %113 = dma.done [#allocation5], 4096
    $region61: #{_lambda_.1} parent=1 // pred_fallthru
      _
    // Predicated region
    $region62: #{_lambda_.1} parent=1 // pred_check
      _
    $region63: #{_lambda_.1} parent=1 // pred_check_branch
      %115 = sbr.rel (0) target = $region65
    $region64: #{_lambda_.1} parent=1 // pred_region
      %116 = dma.done [#allocation5], 640
    $region65: #{_lambda_.1} parent=1 // pred_fallthru
      _
    // Predicated region
    $region66: #{_lambda_.1} parent=1 // pred_check
      _
    $region67: #{_lambda_.1} parent=1 // pred_check_branch
      %118 = sbr.rel (0) target = $region69
    $region68: #{_lambda_.1} parent=1 // pred_region
      %119 = dma.done [#allocation8], 4608
    $region69: #{_lambda_.1} parent=1 // pred_fallthru
      _
    // Predicated region
    $region70: #{_lambda_.1} parent=1 // pred_check
      _
    $region71: #{_lambda_.1} parent=1 // pred_check_branch
      %121 = sbr.rel (0) target = $region73
    $region72: #{_lambda_.1} parent=1 // pred_region
      %122 = dma.done [#allocation8], 4096
    $region73: #{_lambda_.1} parent=1 // pred_fallthru
      _
    // Predicated region
    $region74: #{_lambda_.1} parent=1 // pred_check
      _
    $region75: #{_lambda_.1} parent=1 // pred_check_branch
      %124 = sbr.rel (0) target = $region77
    $region76: #{_lambda_.1} parent=1 // pred_region
      %125 = dma.done [#allocation11], 512
    $region77: #{_lambda_.1} parent=1 // pred_fallthru
      _
    %v127 = vld [vmem:[%s0] sm:$0xff]
    %v128 = vld [vmem:[%s0 + $0x8] sm:$0xff]
    %v129 = vld [vmem:[%s0 + $0x10] sm:$0xff]
    %v130 = vld [vmem:[%s0 + $0x18] sm:$0xff]
    %v131 = vmul.f32 %v127, %v127
    %v132 = vmul.f32 %v128, %v128
    %v133 = vmul.f32 %v129, %v129
    %v134 = vmul.f32 %v130, %v130
    %v135 = vadd.f32 %v131, %v132
    %v136 = vadd.f32 %v135, %v133
    %v137 = vadd.f32 %v136, %v134
    %138 = vadd.xlane.f32.xlu0 %v137
    %v139 = vpop.xlane.xlu0 %138
    %v140 = vrcp.pop 512.0
    %v141 = vmul.f32 %v139, %v140
    %v142 = vadd.f32 %v141, 1e-08
    %v143 = vrsqrt.pop %v142
    %v144 = vmul.f32 %v127, %v143
    %v145 = vmul.f32 %v128, %v143
    %v146 = vmul.f32 %v129, %v143
    %v147 = vmul.f32 %v130, %v143
    %v148 = vpack.c.bf16 %v144, %v144
    %v149 = vpack.c.bf16 %v145, %v145
    %v150 = vpack.c.bf16 %v146, %v146
    %v151 = vpack.c.bf16 %v147, %v147
    %v152 = vld [vmem:[#allocation2] sm:$0xff]
    %v153 = vld [vmem:[#allocation2 + $0x8] sm:$0xff]
    %v154 = vld [vmem:[#allocation2 + $0x10] sm:$0xff]
    %v155 = vld [vmem:[#allocation2 + $0x18] sm:$0xff]
    %v156 = vld [vmem:[#allocation2 + $0x20] sm:$0xff]
    %v157 = vld [vmem:[#allocation2 + $0x28] sm:$0xff]
    %v158 = vld [vmem:[#allocation2 + $0x30] sm:$0xff]
    %v159 = vld [vmem:[#allocation2 + $0x38] sm:$0xff]
    %v160 = vld [vmem:[#allocation2 + $0x40] sm:$0xff]
    %v161 = vld [vmem:[#allocation2 + $0x48] sm:$0xff]
    %v162 = vld [vmem:[#allocation2 + $0x50] sm:$0xff]
    %v163 = vld [vmem:[#allocation2 + $0x58] sm:$0xff]
    %v164 = vld [vmem:[#allocation2 + $0x60] sm:$0xff]
    %v165 = vld [vmem:[#allocation2 + $0x68] sm:$0xff]
    %v166 = vld [vmem:[#allocation2 + $0x70] sm:$0xff]
    %v167 = vld [vmem:[#allocation2 + $0x78] sm:$0xff]
    %v168 = vld [vmem:[#allocation2 + $0x80] sm:$0xff]
    %v169 = vld [vmem:[#allocation2 + $0x88] sm:$0xff]
    %v170 = vld [vmem:[#allocation2 + $0x90] sm:$0xff]
    %v171 = vld [vmem:[#allocation2 + $0x98] sm:$0xff]
    %v172 = vld [vmem:[#allocation2 + $0xa0] sm:$0xff]
    %v173 = vld [vmem:[#allocation2 + $0xa8] sm:$0xff]
    %v174 = vld [vmem:[#allocation2 + $0xb0] sm:$0xff]
    %v175 = vld [vmem:[#allocation2 + $0xb8] sm:$0xff]
    %v176 = vld [vmem:[#allocation2 + $0xc0] sm:$0xff]
    %v177 = vld [vmem:[#allocation2 + $0xc8] sm:$0xff]
    %v178 = vld [vmem:[#allocation2 + $0xd0] sm:$0xff]
    %v179 = vld [vmem:[#allocation2 + $0xd8] sm:$0xff]
    %v180 = vld [vmem:[#allocation2 + $0xe0] sm:$0xff]
    %v181 = vld [vmem:[#allocation2 + $0xe8] sm:$0xff]
    %v182 = vld [vmem:[#allocation2 + $0xf0] sm:$0xff]
    %v183 = vld [vmem:[#allocation2 + $0xf8] sm:$0xff]
    %v184 = vld [vmem:[#allocation2 + $0x100] sm:$0xff]
    %v185 = vld [vmem:[#allocation2 + $0x108] sm:$0xff]
    %v186 = vld [vmem:[#allocation2 + $0x110] sm:$0xff]
    %v187 = vld [vmem:[#allocation2 + $0x118] sm:$0xff]
    %v188 = vld [vmem:[#allocation2 + $0x120] sm:$0xff]
    %v189 = vld [vmem:[#allocation2 + $0x128] sm:$0xff]
    %v190 = vld [vmem:[#allocation2 + $0x130] sm:$0xff]
    %v191 = vld [vmem:[#allocation2 + $0x138] sm:$0xff]
    %v192 = vld [vmem:[#allocation2 + $0x140] sm:$0xff]
    %v193 = vld [vmem:[#allocation2 + $0x148] sm:$0xff]
    %v194 = vld [vmem:[#allocation2 + $0x150] sm:$0xff]
    %v195 = vld [vmem:[#allocation2 + $0x158] sm:$0xff]
    %v196 = vld [vmem:[#allocation2 + $0x160] sm:$0xff]
    %v197 = vld [vmem:[#allocation2 + $0x168] sm:$0xff]
    %v198 = vld [vmem:[#allocation2 + $0x170] sm:$0xff]
    %v199 = vld [vmem:[#allocation2 + $0x178] sm:$0xff]
    %v200 = vld [vmem:[#allocation2 + $0x180] sm:$0xff]
    %v201 = vld [vmem:[#allocation2 + $0x188] sm:$0xff]
    %v202 = vld [vmem:[#allocation2 + $0x190] sm:$0xff]
    %v203 = vld [vmem:[#allocation2 + $0x198] sm:$0xff]
    %v204 = vld [vmem:[#allocation2 + $0x1a0] sm:$0xff]
    %v205 = vld [vmem:[#allocation2 + $0x1a8] sm:$0xff]
    %v206 = vld [vmem:[#allocation2 + $0x1b0] sm:$0xff]
    %v207 = vld [vmem:[#allocation2 + $0x1b8] sm:$0xff]
    %v208 = vld [vmem:[#allocation2 + $0x1c0] sm:$0xff]
    %v209 = vld [vmem:[#allocation2 + $0x1c8] sm:$0xff]
    %v210 = vld [vmem:[#allocation2 + $0x1d0] sm:$0xff]
    %v211 = vld [vmem:[#allocation2 + $0x1d8] sm:$0xff]
    %v212 = vld [vmem:[#allocation2 + $0x1e0] sm:$0xff]
    %v213 = vld [vmem:[#allocation2 + $0x1e8] sm:$0xff]
    %v214 = vld [vmem:[#allocation2 + $0x1f0] sm:$0xff]
    %v215 = vld [vmem:[#allocation2 + $0x1f8] sm:$0xff]
    %v216 = vld [vmem:[#allocation2 + $0x200] sm:$0xff]
    %v217 = vld [vmem:[#allocation2 + $0x208] sm:$0xff]
    %v218 = vld [vmem:[#allocation2 + $0x210] sm:$0xff]
    %v219 = vld [vmem:[#allocation2 + $0x218] sm:$0xff]
    %v220 = vld [vmem:[#allocation2 + $0x220] sm:$0xff]
    %v221 = vld [vmem:[#allocation2 + $0x228] sm:$0xff]
    %v222 = vld [vmem:[#allocation2 + $0x230] sm:$0xff]
    %v223 = vld [vmem:[#allocation2 + $0x238] sm:$0xff]
    %v224 = vld [vmem:[#allocation2 + $0x240] sm:$0xff]
    %v225 = vld [vmem:[#allocation2 + $0x248] sm:$0xff]
    %v226 = vld [vmem:[#allocation2 + $0x250] sm:$0xff]
    %v227 = vld [vmem:[#allocation2 + $0x258] sm:$0xff]
    %v228 = vld [vmem:[#allocation2 + $0x260] sm:$0xff]
    %v229 = vld [vmem:[#allocation2 + $0x268] sm:$0xff]
    %v230 = vld [vmem:[#allocation2 + $0x270] sm:$0xff]
    %v231 = vld [vmem:[#allocation2 + $0x278] sm:$0xff]
    %v232 = vld [vmem:[#allocation2 + $0x280] sm:$0xff]
    %v233 = vld [vmem:[#allocation2 + $0x288] sm:$0xff]
    %v234 = vld [vmem:[#allocation2 + $0x290] sm:$0xff]
    %v235 = vld [vmem:[#allocation2 + $0x298] sm:$0xff]
    %v236 = vld [vmem:[#allocation2 + $0x2a0] sm:$0xff]
    %v237 = vld [vmem:[#allocation2 + $0x2a8] sm:$0xff]
    %v238 = vld [vmem:[#allocation2 + $0x2b0] sm:$0xff]
    %v239 = vld [vmem:[#allocation2 + $0x2b8] sm:$0xff]
    %v240 = vld [vmem:[#allocation2 + $0x2c0] sm:$0xff]
    %v241 = vld [vmem:[#allocation2 + $0x2c8] sm:$0xff]
    %v242 = vld [vmem:[#allocation2 + $0x2d0] sm:$0xff]
    %v243 = vld [vmem:[#allocation2 + $0x2d8] sm:$0xff]
    %v244 = vld [vmem:[#allocation2 + $0x2e0] sm:$0xff]
    %v245 = vld [vmem:[#allocation2 + $0x2e8] sm:$0xff]
    %v246 = vld [vmem:[#allocation2 + $0x2f0] sm:$0xff]
    %v247 = vld [vmem:[#allocation2 + $0x2f8] sm:$0xff]
    %v248 = vld [vmem:[#allocation2 + $0x300] sm:$0xff]
    %v249 = vld [vmem:[#allocation2 + $0x308] sm:$0xff]
    %v250 = vld [vmem:[#allocation2 + $0x310] sm:$0xff]
    %v251 = vld [vmem:[#allocation2 + $0x318] sm:$0xff]
    %v252 = vld [vmem:[#allocation2 + $0x320] sm:$0xff]
    %v253 = vld [vmem:[#allocation2 + $0x328] sm:$0xff]
    %v254 = vld [vmem:[#allocation2 + $0x330] sm:$0xff]
    %v255 = vld [vmem:[#allocation2 + $0x338] sm:$0xff]
    %v256 = vld [vmem:[#allocation2 + $0x340] sm:$0xff]
    %v257 = vld [vmem:[#allocation2 + $0x348] sm:$0xff]
    %v258 = vld [vmem:[#allocation2 + $0x350] sm:$0xff]
    %v259 = vld [vmem:[#allocation2 + $0x358] sm:$0xff]
    %v260 = vld [vmem:[#allocation2 + $0x360] sm:$0xff]
    %v261 = vld [vmem:[#allocation2 + $0x368] sm:$0xff]
    %v262 = vld [vmem:[#allocation2 + $0x370] sm:$0xff]
    %v263 = vld [vmem:[#allocation2 + $0x378] sm:$0xff]
    %v264 = vld [vmem:[#allocation2 + $0x380] sm:$0xff]
    %v265 = vld [vmem:[#allocation2 + $0x388] sm:$0xff]
    %v266 = vld [vmem:[#allocation2 + $0x390] sm:$0xff]
    %v267 = vld [vmem:[#allocation2 + $0x398] sm:$0xff]
    %v268 = vld [vmem:[#allocation2 + $0x3a0] sm:$0xff]
    %v269 = vld [vmem:[#allocation2 + $0x3a8] sm:$0xff]
    %v270 = vld [vmem:[#allocation2 + $0x3b0] sm:$0xff]
    %v271 = vld [vmem:[#allocation2 + $0x3b8] sm:$0xff]
    %v272 = vld [vmem:[#allocation2 + $0x3c0] sm:$0xff]
    %v273 = vld [vmem:[#allocation2 + $0x3c8] sm:$0xff]
    %v274 = vld [vmem:[#allocation2 + $0x3d0] sm:$0xff]
    %v275 = vld [vmem:[#allocation2 + $0x3d8] sm:$0xff]
    %v276 = vld [vmem:[#allocation2 + $0x3e0] sm:$0xff]
    %v277 = vld [vmem:[#allocation2 + $0x3e8] sm:$0xff]
    %v278 = vld [vmem:[#allocation2 + $0x3f0] sm:$0xff]
    %v279 = vld [vmem:[#allocation2 + $0x3f8] sm:$0xff]
    %v280 = vld [vmem:[%s2] sm:$0xf]
    %v282 = vlaneseq
    %v283 = vshrl.u32 %v282, 7
    %v284 = vsub.s32 0, %v283
    %v285 = vrot.slane %v280, %v284
    %v286 = vlaneseq
    %v287 = vshrl.u32 %v286, 7
    %v288 = vsub.s32 1, %v287
    %v289 = vrot.slane %v280, %v288
    %v290 = vlaneseq
    %v291 = vshrl.u32 %v290, 7
    %v292 = vsub.s32 2, %v291
    %v293 = vrot.slane %v280, %v292
    %v294 = vlaneseq
    %v295 = vshrl.u32 %v294, 7
    %v296 = vsub.s32 3, %v295
    %v297 = vrot.slane %v280, %v296
    %v430 = vunpack.c.l.b16 %v152
    %v431 = vunpack.c.h.b16 %v152
    %v432 = vunpack.c.l.b16 %v153
    %v433 = vunpack.c.h.b16 %v153
    %v434 = vunpack.c.l.b16 %v154
    %v435 = vunpack.c.h.b16 %v154
    %v436 = vunpack.c.l.b16 %v155
    %v437 = vunpack.c.h.b16 %v155
    %v438 = vunpack.c.l.b16 %v156
    %v439 = vunpack.c.h.b16 %v156
    %v440 = vunpack.c.l.b16 %v157
    %v441 = vunpack.c.h.b16 %v157
    %v442 = vunpack.c.l.b16 %v158
    %v443 = vunpack.c.h.b16 %v158
    %v444 = vunpack.c.l.b16 %v159
    %v445 = vunpack.c.h.b16 %v159
    %v446 = vunpack.c.l.b16 %v160
    %v447 = vunpack.c.h.b16 %v160
    %v448 = vunpack.c.l.b16 %v161
    %v449 = vunpack.c.h.b16 %v161
    %v450 = vunpack.c.l.b16 %v162
    %v451 = vunpack.c.h.b16 %v162
    %v452 = vunpack.c.l.b16 %v163
    %v453 = vunpack.c.h.b16 %v163
    %v454 = vunpack.c.l.b16 %v164
    %v455 = vunpack.c.h.b16 %v164
    %v456 = vunpack.c.l.b16 %v165
    %v457 = vunpack.c.h.b16 %v165
    %v458 = vunpack.c.l.b16 %v166
    %v459 = vunpack.c.h.b16 %v166
    %v460 = vunpack.c.l.b16 %v167
    %v461 = vunpack.c.h.b16 %v167
    %v462 = vunpack.c.l.b16 %v168
    %v463 = vunpack.c.h.b16 %v168
    %v464 = vunpack.c.l.b16 %v169
    %v465 = vunpack.c.h.b16 %v169
    %v466 = vunpack.c.l.b16 %v170
    %v467 = vunpack.c.h.b16 %v170
    %v468 = vunpack.c.l.b16 %v171
    %v469 = vunpack.c.h.b16 %v171
    %v470 = vunpack.c.l.b16 %v172
    %v471 = vunpack.c.h.b16 %v172
    %v472 = vunpack.c.l.b16 %v173
    %v473 = vunpack.c.h.b16 %v173
    %v474 = vunpack.c.l.b16 %v174
    %v475 = vunpack.c.h.b16 %v174
    %v476 = vunpack.c.l.b16 %v175
    %v477 = vunpack.c.h.b16 %v175
    %v478 = vunpack.c.l.b16 %v176
    %v479 = vunpack.c.h.b16 %v176
    %v480 = vunpack.c.l.b16 %v177
    %v481 = vunpack.c.h.b16 %v177
    %v482 = vunpack.c.l.b16 %v178
    %v483 = vunpack.c.h.b16 %v178
    %v484 = vunpack.c.l.b16 %v179
    %v485 = vunpack.c.h.b16 %v179
    %v486 = vunpack.c.l.b16 %v180
    %v487 = vunpack.c.h.b16 %v180
    %v488 = vunpack.c.l.b16 %v181
    %v489 = vunpack.c.h.b16 %v181
    %v490 = vunpack.c.l.b16 %v182
    %v491 = vunpack.c.h.b16 %v182
    %v492 = vunpack.c.l.b16 %v183
    %v493 = vunpack.c.h.b16 %v183
    %v494 = vunpack.c.l.b16 %v184
    %v495 = vunpack.c.h.b16 %v184
    %v496 = vunpack.c.l.b16 %v185
    %v497 = vunpack.c.h.b16 %v185
    %v498 = vunpack.c.l.b16 %v186
    %v499 = vunpack.c.h.b16 %v186
    %v500 = vunpack.c.l.b16 %v187
    %v501 = vunpack.c.h.b16 %v187
    %v502 = vunpack.c.l.b16 %v188
    %v503 = vunpack.c.h.b16 %v188
    %v504 = vunpack.c.l.b16 %v189
    %v505 = vunpack.c.h.b16 %v189
    %v506 = vunpack.c.l.b16 %v190
    %v507 = vunpack.c.h.b16 %v190
    %v508 = vunpack.c.l.b16 %v191
    %v509 = vunpack.c.h.b16 %v191
    %v510 = vunpack.c.l.b16 %v192
    %v511 = vunpack.c.h.b16 %v192
    %v512 = vunpack.c.l.b16 %v193
    %v513 = vunpack.c.h.b16 %v193
    %v514 = vunpack.c.l.b16 %v194
    %v515 = vunpack.c.h.b16 %v194
    %v516 = vunpack.c.l.b16 %v195
    %v517 = vunpack.c.h.b16 %v195
    %v518 = vunpack.c.l.b16 %v196
    %v519 = vunpack.c.h.b16 %v196
    %v520 = vunpack.c.l.b16 %v197
    %v521 = vunpack.c.h.b16 %v197
    %v522 = vunpack.c.l.b16 %v198
    %v523 = vunpack.c.h.b16 %v198
    %v524 = vunpack.c.l.b16 %v199
    %v525 = vunpack.c.h.b16 %v199
    %v526 = vunpack.c.l.b16 %v200
    %v527 = vunpack.c.h.b16 %v200
    %v528 = vunpack.c.l.b16 %v201
    %v529 = vunpack.c.h.b16 %v201
    %v530 = vunpack.c.l.b16 %v202
    %v531 = vunpack.c.h.b16 %v202
    %v532 = vunpack.c.l.b16 %v203
    %v533 = vunpack.c.h.b16 %v203
    %v534 = vunpack.c.l.b16 %v204
    %v535 = vunpack.c.h.b16 %v204
    %v536 = vunpack.c.l.b16 %v205
    %v537 = vunpack.c.h.b16 %v205
    %v538 = vunpack.c.l.b16 %v206
    %v539 = vunpack.c.h.b16 %v206
    %v540 = vunpack.c.l.b16 %v207
    %v541 = vunpack.c.h.b16 %v207
    %v542 = vunpack.c.l.b16 %v208
    %v543 = vunpack.c.h.b16 %v208
    %v544 = vunpack.c.l.b16 %v209
    %v545 = vunpack.c.h.b16 %v209
    %v546 = vunpack.c.l.b16 %v210
    %v547 = vunpack.c.h.b16 %v210
    %v548 = vunpack.c.l.b16 %v211
    %v549 = vunpack.c.h.b16 %v211
    %v550 = vunpack.c.l.b16 %v212
    %v551 = vunpack.c.h.b16 %v212
    %v552 = vunpack.c.l.b16 %v213
    %v553 = vunpack.c.h.b16 %v213
    %v554 = vunpack.c.l.b16 %v214
    %v555 = vunpack.c.h.b16 %v214
    %v556 = vunpack.c.l.b16 %v215
    %v557 = vunpack.c.h.b16 %v215
    %v558 = vunpack.c.l.b16 %v216
    %v559 = vunpack.c.h.b16 %v216
    %v560 = vunpack.c.l.b16 %v217
    %v561 = vunpack.c.h.b16 %v217
    %v562 = vunpack.c.l.b16 %v218
    %v563 = vunpack.c.h.b16 %v218
    %v564 = vunpack.c.l.b16 %v219
    %v565 = vunpack.c.h.b16 %v219
    %v566 = vunpack.c.l.b16 %v220
    %v567 = vunpack.c.h.b16 %v220
    %v568 = vunpack.c.l.b16 %v221
    %v569 = vunpack.c.h.b16 %v221
    %v570 = vunpack.c.l.b16 %v222
    %v571 = vunpack.c.h.b16 %v222
    %v572 = vunpack.c.l.b16 %v223
    %v573 = vunpack.c.h.b16 %v223
    %v574 = vunpack.c.l.b16 %v224
    %v575 = vunpack.c.h.b16 %v224
    %v576 = vunpack.c.l.b16 %v225
    %v577 = vunpack.c.h.b16 %v225
    %v578 = vunpack.c.l.b16 %v226
    %v579 = vunpack.c.h.b16 %v226
    %v580 = vunpack.c.l.b16 %v227
    %v581 = vunpack.c.h.b16 %v227
    %v582 = vunpack.c.l.b16 %v228
    %v583 = vunpack.c.h.b16 %v228
    %v584 = vunpack.c.l.b16 %v229
    %v585 = vunpack.c.h.b16 %v229
    %v586 = vunpack.c.l.b16 %v230
    %v587 = vunpack.c.h.b16 %v230
    %v588 = vunpack.c.l.b16 %v231
    %v589 = vunpack.c.h.b16 %v231
    %v590 = vunpack.c.l.b16 %v232
    %v591 = vunpack.c.h.b16 %v232
    %v592 = vunpack.c.l.b16 %v233
    %v593 = vunpack.c.h.b16 %v233
    %v594 = vunpack.c.l.b16 %v234
    %v595 = vunpack.c.h.b16 %v234
    %v596 = vunpack.c.l.b16 %v235
    %v597 = vunpack.c.h.b16 %v235
    %v598 = vunpack.c.l.b16 %v236
    %v599 = vunpack.c.h.b16 %v236
    %v600 = vunpack.c.l.b16 %v237
    %v601 = vunpack.c.h.b16 %v237
    %v602 = vunpack.c.l.b16 %v238
    %v603 = vunpack.c.h.b16 %v238
    %v604 = vunpack.c.l.b16 %v239
    %v605 = vunpack.c.h.b16 %v239
    %v606 = vunpack.c.l.b16 %v240
    %v607 = vunpack.c.h.b16 %v240
    %v608 = vunpack.c.l.b16 %v241
    %v609 = vunpack.c.h.b16 %v241
    %v610 = vunpack.c.l.b16 %v242
    %v611 = vunpack.c.h.b16 %v242
    %v612 = vunpack.c.l.b16 %v243
    %v613 = vunpack.c.h.b16 %v243
    %v614 = vunpack.c.l.b16 %v244
    %v615 = vunpack.c.h.b16 %v244
    %v616 = vunpack.c.l.b16 %v245
    %v617 = vunpack.c.h.b16 %v245
    %v618 = vunpack.c.l.b16 %v246
    %v619 = vunpack.c.h.b16 %v246
    %v620 = vunpack.c.l.b16 %v247
    %v621 = vunpack.c.h.b16 %v247
    %v622 = vunpack.c.l.b16 %v248
    %v623 = vunpack.c.h.b16 %v248
    %v624 = vunpack.c.l.b16 %v249
    %v625 = vunpack.c.h.b16 %v249
    %v626 = vunpack.c.l.b16 %v250
    %v627 = vunpack.c.h.b16 %v250
    %v628 = vunpack.c.l.b16 %v251
    %v629 = vunpack.c.h.b16 %v251
    %v630 = vunpack.c.l.b16 %v252
    %v631 = vunpack.c.h.b16 %v252
    %v632 = vunpack.c.l.b16 %v253
    %v633 = vunpack.c.h.b16 %v253
    %v634 = vunpack.c.l.b16 %v254
    %v635 = vunpack.c.h.b16 %v254
    %v636 = vunpack.c.l.b16 %v255
    %v637 = vunpack.c.h.b16 %v255
    %v638 = vunpack.c.l.b16 %v256
    %v639 = vunpack.c.h.b16 %v256
    %v640 = vunpack.c.l.b16 %v257
    %v641 = vunpack.c.h.b16 %v257
    %v642 = vunpack.c.l.b16 %v258
    %v643 = vunpack.c.h.b16 %v258
    %v644 = vunpack.c.l.b16 %v259
    %v645 = vunpack.c.h.b16 %v259
    %v646 = vunpack.c.l.b16 %v260
    %v647 = vunpack.c.h.b16 %v260
    %v648 = vunpack.c.l.b16 %v261
    %v649 = vunpack.c.h.b16 %v261
    %v650 = vunpack.c.l.b16 %v262
    %v651 = vunpack.c.h.b16 %v262
    %v652 = vunpack.c.l.b16 %v263
    %v653 = vunpack.c.h.b16 %v263
    %v654 = vunpack.c.l.b16 %v264
    %v655 = vunpack.c.h.b16 %v264
    %v656 = vunpack.c.l.b16 %v265
    %v657 = vunpack.c.h.b16 %v265
    %v658 = vunpack.c.l.b16 %v266
    %v659 = vunpack.c.h.b16 %v266
    %v660 = vunpack.c.l.b16 %v267
    %v661 = vunpack.c.h.b16 %v267
    %v662 = vunpack.c.l.b16 %v268
    %v663 = vunpack.c.h.b16 %v268
    %v664 = vunpack.c.l.b16 %v269
    %v665 = vunpack.c.h.b16 %v269
    %v666 = vunpack.c.l.b16 %v270
    %v667 = vunpack.c.h.b16 %v270
    %v668 = vunpack.c.l.b16 %v271
    %v669 = vunpack.c.h.b16 %v271
    %v670 = vunpack.c.l.b16 %v272
    %v671 = vunpack.c.h.b16 %v272
    %v672 = vunpack.c.l.b16 %v273
    %v673 = vunpack.c.h.b16 %v273
    %v674 = vunpack.c.l.b16 %v274
    %v675 = vunpack.c.h.b16 %v274
    %v676 = vunpack.c.l.b16 %v275
    %v677 = vunpack.c.h.b16 %v275
    %v678 = vunpack.c.l.b16 %v276
    %v679 = vunpack.c.h.b16 %v276
    %v680 = vunpack.c.l.b16 %v277
    %v681 = vunpack.c.h.b16 %v277
    %v682 = vunpack.c.l.b16 %v278
    %v683 = vunpack.c.h.b16 %v278
    %v684 = vunpack.c.l.b16 %v279
    %v685 = vunpack.c.h.b16 %v279
    %v686 = vpack.c.b16 %v434, %v430
    %v687 = vpack.c.b16 %v435, %v431
    %v688 = vpack.c.b16 %v436, %v432
    %v689 = vpack.c.b16 %v437, %v433
    %v690 = vpack.c.b16 %v442, %v438
    %v691 = vpack.c.b16 %v443, %v439
    %v692 = vpack.c.b16 %v444, %v440
    %v693 = vpack.c.b16 %v445, %v441
    %v694 = vpack.c.b16 %v450, %v446
    %v695 = vpack.c.b16 %v451, %v447
    %v696 = vpack.c.b16 %v452, %v448
    %v697 = vpack.c.b16 %v453, %v449
    %v698 = vpack.c.b16 %v458, %v454
    %v699 = vpack.c.b16 %v459, %v455
    %v700 = vpack.c.b16 %v460, %v456
    %v701 = vpack.c.b16 %v461, %v457
    %v702 = vpack.c.b16 %v466, %v462
    %v703 = vpack.c.b16 %v467, %v463
    %v704 = vpack.c.b16 %v468, %v464
    %v705 = vpack.c.b16 %v469, %v465
    %v706 = vpack.c.b16 %v474, %v470
    %v707 = vpack.c.b16 %v475, %v471
    %v708 = vpack.c.b16 %v476, %v472
    %v709 = vpack.c.b16 %v477, %v473
    %v710 = vpack.c.b16 %v482, %v478
    %v711 = vpack.c.b16 %v483, %v479
    %v712 = vpack.c.b16 %v484, %v480
    %v713 = vpack.c.b16 %v485, %v481
    %v714 = vpack.c.b16 %v490, %v486
    %v715 = vpack.c.b16 %v491, %v487
    %v716 = vpack.c.b16 %v492, %v488
    %v717 = vpack.c.b16 %v493, %v489
    %v718 = vpack.c.b16 %v498, %v494
    %v719 = vpack.c.b16 %v499, %v495
    %v720 = vpack.c.b16 %v500, %v496
    %v721 = vpack.c.b16 %v501, %v497
    %v722 = vpack.c.b16 %v506, %v502
    %v723 = vpack.c.b16 %v507, %v503
    %v724 = vpack.c.b16 %v508, %v504
    %v725 = vpack.c.b16 %v509, %v505
    %v726 = vpack.c.b16 %v514, %v510
    %v727 = vpack.c.b16 %v515, %v511
    %v728 = vpack.c.b16 %v516, %v512
    %v729 = vpack.c.b16 %v517, %v513
    %v730 = vpack.c.b16 %v522, %v518
    %v731 = vpack.c.b16 %v523, %v519
    %v732 = vpack.c.b16 %v524, %v520
    %v733 = vpack.c.b16 %v525, %v521
    %v734 = vpack.c.b16 %v530, %v526
    %v735 = vpack.c.b16 %v531, %v527
    %v736 = vpack.c.b16 %v532, %v528
    %v737 = vpack.c.b16 %v533, %v529
    %v738 = vpack.c.b16 %v538, %v534
    %v739 = vpack.c.b16 %v539, %v535
    %v740 = vpack.c.b16 %v540, %v536
    %v741 = vpack.c.b16 %v541, %v537
    %v742 = vpack.c.b16 %v546, %v542
    %v743 = vpack.c.b16 %v547, %v543
    %v744 = vpack.c.b16 %v548, %v544
    %v745 = vpack.c.b16 %v549, %v545
    %v746 = vpack.c.b16 %v554, %v550
    %v747 = vpack.c.b16 %v555, %v551
    %v748 = vpack.c.b16 %v556, %v552
    %v749 = vpack.c.b16 %v557, %v553
    %v750 = vpack.c.b16 %v562, %v558
    %v751 = vpack.c.b16 %v563, %v559
    %v752 = vpack.c.b16 %v564, %v560
    %v753 = vpack.c.b16 %v565, %v561
    %v754 = vpack.c.b16 %v570, %v566
    %v755 = vpack.c.b16 %v571, %v567
    %v756 = vpack.c.b16 %v572, %v568
    %v757 = vpack.c.b16 %v573, %v569
    %v758 = vpack.c.b16 %v578, %v574
    %v759 = vpack.c.b16 %v579, %v575
    %v760 = vpack.c.b16 %v580, %v576
    %v761 = vpack.c.b16 %v581, %v577
    %v762 = vpack.c.b16 %v586, %v582
    %v763 = vpack.c.b16 %v587, %v583
    %v764 = vpack.c.b16 %v588, %v584
    %v765 = vpack.c.b16 %v589, %v585
    %v766 = vpack.c.b16 %v594, %v590
    %v767 = vpack.c.b16 %v595, %v591
    %v768 = vpack.c.b16 %v596, %v592
    %v769 = vpack.c.b16 %v597, %v593
    %v770 = vpack.c.b16 %v602, %v598
    %v771 = vpack.c.b16 %v603, %v599
    %v772 = vpack.c.b16 %v604, %v600
    %v773 = vpack.c.b16 %v605, %v601
    %v774 = vpack.c.b16 %v610, %v606
    %v775 = vpack.c.b16 %v611, %v607
    %v776 = vpack.c.b16 %v612, %v608
    %v777 = vpack.c.b16 %v613, %v609
    %v778 = vpack.c.b16 %v618, %v614
    %v779 = vpack.c.b16 %v619, %v615
    %v780 = vpack.c.b16 %v620, %v616
    %v781 = vpack.c.b16 %v621, %v617
    %v782 = vpack.c.b16 %v626, %v622
    %v783 = vpack.c.b16 %v627, %v623
    %v784 = vpack.c.b16 %v628, %v624
    %v785 = vpack.c.b16 %v629, %v625
    %v786 = vpack.c.b16 %v634, %v630
    %v787 = vpack.c.b16 %v635, %v631
    %v788 = vpack.c.b16 %v636, %v632
    %v789 = vpack.c.b16 %v637, %v633
    %v790 = vpack.c.b16 %v642, %v638
    %v791 = vpack.c.b16 %v643, %v639
    %v792 = vpack.c.b16 %v644, %v640
    %v793 = vpack.c.b16 %v645, %v641
    %v794 = vpack.c.b16 %v650, %v646
    %v795 = vpack.c.b16 %v651, %v647
    %v796 = vpack.c.b16 %v652, %v648
    %v797 = vpack.c.b16 %v653, %v649
    %v798 = vpack.c.b16 %v658, %v654
    %v799 = vpack.c.b16 %v659, %v655
    %v800 = vpack.c.b16 %v660, %v656
    %v801 = vpack.c.b16 %v661, %v657
    %v802 = vpack.c.b16 %v666, %v662
    %v803 = vpack.c.b16 %v667, %v663
    %v804 = vpack.c.b16 %v668, %v664
    %v805 = vpack.c.b16 %v669, %v665
    %v806 = vpack.c.b16 %v674, %v670
    %v807 = vpack.c.b16 %v675, %v671
    %v808 = vpack.c.b16 %v676, %v672
    %v809 = vpack.c.b16 %v677, %v673
    %v810 = vpack.c.b16 %v682, %v678
    %v811 = vpack.c.b16 %v683, %v679
    %v812 = vpack.c.b16 %v684, %v680
    %v813 = vpack.c.b16 %v685, %v681
    %942 = vmatprep.subr.bf16.mxu0 %v715
    %943 = vmatpush1.bf16.msra.mxu0 %v714
    %944 = vmatprep.subr.bf16.mxu0 %v711
    %945 = vmatpush1.bf16.msra.mxu0 %v710
    %946 = vmatprep.subr.bf16.mxu0 %v707
    %947 = vmatpush1.bf16.msra.mxu0 %v706
    %948 = vmatprep.subr.bf16.mxu0 %v703
    %949 = vmatpush1.bf16.msra.mxu0 %v702
    %950 = vmatprep.subr.bf16.mxu0 %v699
    %951 = vmatpush1.bf16.msra.mxu0 %v698
    %952 = vmatprep.subr.bf16.mxu0 %v695
    %953 = vmatpush1.bf16.msra.mxu0 %v694
    %954 = vmatprep.subr.bf16.mxu0 %v691
    %955 = vmatpush1.bf16.msra.mxu0 %v690
    %956 = vmatprep.subr.bf16.mxu0 %v687
    %957 = vmatpush1.bf16.msra.mxu0 %v686
    %958 = vmatprep.subr.bf16.mxu0 %v747
    %959 = vmatpush2.bf16.msra.mxu0 %v746
    %960 = vmatprep.subr.bf16.mxu0 %v743
    %961 = vmatpush2.bf16.msra.mxu0 %v742
    %962 = vmatprep.subr.bf16.mxu0 %v739
    %963 = vmatpush2.bf16.msra.mxu0 %v738
    %964 = vmatprep.subr.bf16.mxu0 %v735
    %965 = vmatpush2.bf16.msra.mxu0 %v734
    %966 = vmatprep.subr.bf16.mxu0 %v731
    %967 = vmatpush2.bf16.msra.mxu0 %v730
    %968 = vmatprep.subr.bf16.mxu0 %v727
    %969 = vmatpush2.bf16.msra.mxu0 %v726
    %970 = vmatprep.subr.bf16.mxu0 %v723
    %971 = vmatpush2.bf16.msra.mxu0 %v722
    %972 = vmatprep.subr.bf16.mxu0 %v719
    %973 = vmatpush2.bf16.msra.mxu0 %v718
    %974 = vmatprep.mubr.bf16.mxu0 %v149
    %975 = vmatmul.mubr.bf16.gmra.mxu0 %v148
    %v976 = vpop.f32.mrf.mxu0
    %v977 = vadd.f32 %v285, %v976
    %v978 = vpop.f32.mrf.mxu0
    %v979 = vadd.f32 %v289, %v978
    %v980 = vpop.f32.mrf.mxu0
    %v981 = vpop.f32.mrf.mxu0
    %982 = vdwg.mxu0
    %983 = vmatprep.subr.bf16.mxu0 %v779
    %984 = vmatpush1.bf16.msra.mxu0 %v778
    %985 = vmatprep.subr.bf16.mxu0 %v775
    %986 = vmatpush1.bf16.msra.mxu0 %v774
    %987 = vmatprep.subr.bf16.mxu0 %v771
    %988 = vmatpush1.bf16.msra.mxu0 %v770
    %989 = vmatprep.subr.bf16.mxu0 %v767
    %990 = vmatpush1.bf16.msra.mxu0 %v766
    %991 = vmatprep.subr.bf16.mxu0 %v763
    %992 = vmatpush1.bf16.msra.mxu0 %v762
    %993 = vmatprep.subr.bf16.mxu0 %v759
    %994 = vmatpush1.bf16.msra.mxu0 %v758
    %995 = vmatprep.subr.bf16.mxu0 %v755
    %996 = vmatpush1.bf16.msra.mxu0 %v754
    %997 = vmatprep.subr.bf16.mxu0 %v751
    %998 = vmatpush1.bf16.msra.mxu0 %v750
    %999 = vmatprep.subr.bf16.mxu0 %v811
    %1000 = vmatpush2.bf16.msra.mxu0 %v810
    %1001 = vmatprep.subr.bf16.mxu0 %v807
    %1002 = vmatpush2.bf16.msra.mxu0 %v806
    %1003 = vmatprep.subr.bf16.mxu0 %v803
    %1004 = vmatpush2.bf16.msra.mxu0 %v802
    %1005 = vmatprep.subr.bf16.mxu0 %v799
    %1006 = vmatpush2.bf16.msra.mxu0 %v798
    %1007 = vmatprep.subr.bf16.mxu0 %v795
    %1008 = vmatpush2.bf16.msra.mxu0 %v794
    %1009 = vmatprep.subr.bf16.mxu0 %v791
    %1010 = vmatpush2.bf16.msra.mxu0 %v790
    %1011 = vmatprep.subr.bf16.mxu0 %v787
    %1012 = vmatpush2.bf16.msra.mxu0 %v786
    %1013 = vmatprep.subr.bf16.mxu0 %v783
    %1014 = vmatpush2.bf16.msra.mxu0 %v782
    %1015 = vmatprep.mubr.bf16.mxu0 %v151
    %1016 = vmatmul.mubr.bf16.gmra.mxu0 %v150
    %v1017 = vpop.f32.mrf.mxu0
    %v1018 = vadd.f32 %v977, %v1017
    %v1019 = vpop.f32.mrf.mxu0
    %v1020 = vadd.f32 %v979, %v1019
    %v1021 = vpop.f32.mrf.mxu0
    %v1022 = vpop.f32.mrf.mxu0
    %1023 = vdwg.mxu0
    %1024 = vmatprep.subr.bf16.mxu0 %v717
    %1025 = vmatpush1.bf16.msra.mxu0 %v716
    %1026 = vmatprep.subr.bf16.mxu0 %v713
    %1027 = vmatpush1.bf16.msra.mxu0 %v712
    %1028 = vmatprep.subr.bf16.mxu0 %v709
    %1029 = vmatpush1.bf16.msra.mxu0 %v708
    %1030 = vmatprep.subr.bf16.mxu0 %v705
    %1031 = vmatpush1.bf16.msra.mxu0 %v704
    %1032 = vmatprep.subr.bf16.mxu0 %v701
    %1033 = vmatpush1.bf16.msra.mxu0 %v700
    %1034 = vmatprep.subr.bf16.mxu0 %v697
    %1035 = vmatpush1.bf16.msra.mxu0 %v696
    %1036 = vmatprep.subr.bf16.mxu0 %v693
    %1037 = vmatpush1.bf16.msra.mxu0 %v692
    %1038 = vmatprep.subr.bf16.mxu0 %v689
    %1039 = vmatpush1.bf16.msra.mxu0 %v688
    %1040 = vmatprep.subr.bf16.mxu0 %v749
    %1041 = vmatpush2.bf16.msra.mxu0 %v748
    %1042 = vmatprep.subr.bf16.mxu0 %v745
    %1043 = vmatpush2.bf16.msra.mxu0 %v744
    %1044 = vmatprep.subr.bf16.mxu0 %v741
    %1045 = vmatpush2.bf16.msra.mxu0 %v740
    %1046 = vmatprep.subr.bf16.mxu0 %v737
    %1047 = vmatpush2.bf16.msra.mxu0 %v736
    %1048 = vmatprep.subr.bf16.mxu0 %v733
    %1049 = vmatpush2.bf16.msra.mxu0 %v732
    %1050 = vmatprep.subr.bf16.mxu0 %v729
    %1051 = vmatpush2.bf16.msra.mxu0 %v728
    %1052 = vmatprep.subr.bf16.mxu0 %v725
    %1053 = vmatpush2.bf16.msra.mxu0 %v724
    %1054 = vmatprep.subr.bf16.mxu0 %v721
    %1055 = vmatpush2.bf16.msra.mxu0 %v720
    %1056 = vmatprep.mubr.bf16.mxu0 %v149
    %1057 = vmatmul.mubr.bf16.gmra.mxu0 %v148
    %v1058 = vpop.f32.mrf.mxu0
    %v1059 = vadd.f32 %v293, %v1058
    %v1060 = vpop.f32.mrf.mxu0
    %v1061 = vadd.f32 %v297, %v1060
    %v1062 = vpop.f32.mrf.mxu0
    %v1063 = vpop.f32.mrf.mxu0
    %1064 = vdwg.mxu0
    %1065 = vmatprep.subr.bf16.mxu0 %v781
    %1066 = vmatpush1.bf16.msra.mxu0 %v780
    %1067 = vmatprep.subr.bf16.mxu0 %v777
    %1068 = vmatpush1.bf16.msra.mxu0 %v776
    %1069 = vmatprep.subr.bf16.mxu0 %v773
    %1070 = vmatpush1.bf16.msra.mxu0 %v772
    %1071 = vmatprep.subr.bf16.mxu0 %v769
    %1072 = vmatpush1.bf16.msra.mxu0 %v768
    %1073 = vmatprep.subr.bf16.mxu0 %v765
    %1074 = vmatpush1.bf16.msra.mxu0 %v764
    %1075 = vmatprep.subr.bf16.mxu0 %v761
    %1076 = vmatpush1.bf16.msra.mxu0 %v760
    %1077 = vmatprep.subr.bf16.mxu0 %v757
    %1078 = vmatpush1.bf16.msra.mxu0 %v756
    %1079 = vmatprep.subr.bf16.mxu0 %v753
    %1080 = vmatpush1.bf16.msra.mxu0 %v752
    %1081 = vmatprep.subr.bf16.mxu0 %v813
    %1082 = vmatpush2.bf16.msra.mxu0 %v812
    %1083 = vmatprep.subr.bf16.mxu0 %v809
    %1084 = vmatpush2.bf16.msra.mxu0 %v808
    %1085 = vmatprep.subr.bf16.mxu0 %v805
    %1086 = vmatpush2.bf16.msra.mxu0 %v804
    %1087 = vmatprep.subr.bf16.mxu0 %v801
    %1088 = vmatpush2.bf16.msra.mxu0 %v800
    %1089 = vmatprep.subr.bf16.mxu0 %v797
    %1090 = vmatpush2.bf16.msra.mxu0 %v796
    %1091 = vmatprep.subr.bf16.mxu0 %v793
    %1092 = vmatpush2.bf16.msra.mxu0 %v792
    %1093 = vmatprep.subr.bf16.mxu0 %v789
    %1094 = vmatpush2.bf16.msra.mxu0 %v788
    %1095 = vmatprep.subr.bf16.mxu0 %v785
    %1096 = vmatpush2.bf16.msra.mxu0 %v784
    %1097 = vmatprep.mubr.bf16.mxu0 %v151
    %1098 = vmatmul.mubr.bf16.gmra.mxu0 %v150
    %v1099 = vpop.f32.mrf.mxu0
    %v1100 = vadd.f32 %v1059, %v1099
    %v1101 = vpop.f32.mrf.mxu0
    %v1102 = vadd.f32 %v1061, %v1101
    %v1103 = vpop.f32.mrf.mxu0
    %v1104 = vpop.f32.mrf.mxu0
    %1105 = vdwg.mxu0
    %vm1106 = vcmp.ge.f32.partialorder %v1018, 0.0
    %vm1107 = vcmp.ge.f32.partialorder %v1020, 0.0
    %vm1108 = vcmp.ge.f32.partialorder %v1100, 0.0
    %vm1109 = vcmp.ge.f32.partialorder %v1102, 0.0
    %v1110 = vmul.f32 %v1018, 0.2
    %v1111 = vmul.f32 %v1020, 0.2
    %v1112 = vmul.f32 %v1100, 0.2
    %v1113 = vmul.f32 %v1102, 0.2
    %v1114 = vsel %vm1106, %v1018, %v1110
    %v1115 = vsel %vm1107, %v1020, %v1111
    %v1116 = vsel %vm1108, %v1100, %v1112
    %v1117 = vsel %vm1109, %v1102, %v1113
    %v1118 = vpack.c.bf16 %v1114, %v1114
    %v1119 = vpack.c.bf16 %v1115, %v1115
    %v1120 = vpack.c.bf16 %v1116, %v1116
    %v1121 = vpack.c.bf16 %v1117, %v1117
    %s1122 = scalar_lea.vmem [#allocation2], 1024
    %v1123 = vld [vmem:[%s1122] sm:$0xff]
    %v1124 = vld [vmem:[%s1122 + $0x8] sm:$0xff]
    %v1125 = vld [vmem:[%s1122 + $0x10] sm:$0xff]
    %v1126 = vld [vmem:[%s1122 + $0x18] sm:$0xff]
    %v1127 = vld [vmem:[%s1122 + $0x20] sm:$0xff]
    %v1128 = vld [vmem:[%s1122 + $0x28] sm:$0xff]
    %v1129 = vld [vmem:[%s1122 + $0x30] sm:$0xff]
    %v1130 = vld [vmem:[%s1122 + $0x38] sm:$0xff]
    %v1131 = vld [vmem:[%s1122 + $0x40] sm:$0xff]
    %v1132 = vld [vmem:[%s1122 + $0x48] sm:$0xff]
    %v1133 = vld [vmem:[%s1122 + $0x50] sm:$0xff]
    %v1134 = vld [vmem:[%s1122 + $0x58] sm:$0xff]
    %v1135 = vld [vmem:[%s1122 + $0x60] sm:$0xff]
    %v1136 = vld [vmem:[%s1122 + $0x68] sm:$0xff]
    %v1137 = vld [vmem:[%s1122 + $0x70] sm:$0xff]
    %v1138 = vld [vmem:[%s1122 + $0x78] sm:$0xff]
    %v1139 = vld [vmem:[%s1122 + $0x80] sm:$0xff]
    %v1140 = vld [vmem:[%s1122 + $0x88] sm:$0xff]
    %v1141 = vld [vmem:[%s1122 + $0x90] sm:$0xff]
    %v1142 = vld [vmem:[%s1122 + $0x98] sm:$0xff]
    %v1143 = vld [vmem:[%s1122 + $0xa0] sm:$0xff]
    %v1144 = vld [vmem:[%s1122 + $0xa8] sm:$0xff]
    %v1145 = vld [vmem:[%s1122 + $0xb0] sm:$0xff]
    %v1146 = vld [vmem:[%s1122 + $0xb8] sm:$0xff]
    %v1147 = vld [vmem:[%s1122 + $0xc0] sm:$0xff]
    %v1148 = vld [vmem:[%s1122 + $0xc8] sm:$0xff]
    %v1149 = vld [vmem:[%s1122 + $0xd0] sm:$0xff]
    %v1150 = vld [vmem:[%s1122 + $0xd8] sm:$0xff]
    %v1151 = vld [vmem:[%s1122 + $0xe0] sm:$0xff]
    %v1152 = vld [vmem:[%s1122 + $0xe8] sm:$0xff]
    %v1153 = vld [vmem:[%s1122 + $0xf0] sm:$0xff]
    %v1154 = vld [vmem:[%s1122 + $0xf8] sm:$0xff]
    %v1155 = vld [vmem:[%s1122 + $0x100] sm:$0xff]
    %v1156 = vld [vmem:[%s1122 + $0x108] sm:$0xff]
    %v1157 = vld [vmem:[%s1122 + $0x110] sm:$0xff]
    %v1158 = vld [vmem:[%s1122 + $0x118] sm:$0xff]
    %v1159 = vld [vmem:[%s1122 + $0x120] sm:$0xff]
    %v1160 = vld [vmem:[%s1122 + $0x128] sm:$0xff]
    %v1161 = vld [vmem:[%s1122 + $0x130] sm:$0xff]
    %v1162 = vld [vmem:[%s1122 + $0x138] sm:$0xff]
    %v1163 = vld [vmem:[%s1122 + $0x140] sm:$0xff]
    %v1164 = vld [vmem:[%s1122 + $0x148] sm:$0xff]
    %v1165 = vld [vmem:[%s1122 + $0x150] sm:$0xff]
    %v1166 = vld [vmem:[%s1122 + $0x158] sm:$0xff]
    %v1167 = vld [vmem:[%s1122 + $0x160] sm:$0xff]
    %v1168 = vld [vmem:[%s1122 + $0x168] sm:$0xff]
    %v1169 = vld [vmem:[%s1122 + $0x170] sm:$0xff]
    %v1170 = vld [vmem:[%s1122 + $0x178] sm:$0xff]
    %v1171 = vld [vmem:[%s1122 + $0x180] sm:$0xff]
    %v1172 = vld [vmem:[%s1122 + $0x188] sm:$0xff]
    %v1173 = vld [vmem:[%s1122 + $0x190] sm:$0xff]
    %v1174 = vld [vmem:[%s1122 + $0x198] sm:$0xff]
    %v1175 = vld [vmem:[%s1122 + $0x1a0] sm:$0xff]
    %v1176 = vld [vmem:[%s1122 + $0x1a8] sm:$0xff]
    %v1177 = vld [vmem:[%s1122 + $0x1b0] sm:$0xff]
    %v1178 = vld [vmem:[%s1122 + $0x1b8] sm:$0xff]
    %v1179 = vld [vmem:[%s1122 + $0x1c0] sm:$0xff]
    %v1180 = vld [vmem:[%s1122 + $0x1c8] sm:$0xff]
    %v1181 = vld [vmem:[%s1122 + $0x1d0] sm:$0xff]
    %v1182 = vld [vmem:[%s1122 + $0x1d8] sm:$0xff]
    %v1183 = vld [vmem:[%s1122 + $0x1e0] sm:$0xff]
    %v1184 = vld [vmem:[%s1122 + $0x1e8] sm:$0xff]
    %v1185 = vld [vmem:[%s1122 + $0x1f0] sm:$0xff]
    %v1186 = vld [vmem:[%s1122 + $0x1f8] sm:$0xff]
    %v1187 = vld [vmem:[%s1122 + $0x200] sm:$0xff]
    %v1188 = vld [vmem:[%s1122 + $0x208] sm:$0xff]
    %v1189 = vld [vmem:[%s1122 + $0x210] sm:$0xff]
    %v1190 = vld [vmem:[%s1122 + $0x218] sm:$0xff]
    %v1191 = vld [vmem:[%s1122 + $0x220] sm:$0xff]
    %v1192 = vld [vmem:[%s1122 + $0x228] sm:$0xff]
    %v1193 = vld [vmem:[%s1122 + $0x230] sm:$0xff]
    %v1194 = vld [vmem:[%s1122 + $0x238] sm:$0xff]
    %v1195 = vld [vmem:[%s1122 + $0x240] sm:$0xff]
    %v1196 = vld [vmem:[%s1122 + $0x248] sm:$0xff]
    %v1197 = vld [vmem:[%s1122 + $0x250] sm:$0xff]
    %v1198 = vld [vmem:[%s1122 + $0x258] sm:$0xff]
    %v1199 = vld [vmem:[%s1122 + $0x260] sm:$0xff]
    %v1200 = vld [vmem:[%s1122 + $0x268] sm:$0xff]
    %v1201 = vld [vmem:[%s1122 + $0x270] sm:$0xff]
    %v1202 = vld [vmem:[%s1122 + $0x278] sm:$0xff]
    %v1203 = vld [vmem:[%s1122 + $0x280] sm:$0xff]
    %v1204 = vld [vmem:[%s1122 + $0x288] sm:$0xff]
    %v1205 = vld [vmem:[%s1122 + $0x290] sm:$0xff]
    %v1206 = vld [vmem:[%s1122 + $0x298] sm:$0xff]
    %v1207 = vld [vmem:[%s1122 + $0x2a0] sm:$0xff]
    %v1208 = vld [vmem:[%s1122 + $0x2a8] sm:$0xff]
    %v1209 = vld [vmem:[%s1122 + $0x2b0] sm:$0xff]
    %v1210 = vld [vmem:[%s1122 + $0x2b8] sm:$0xff]
    %v1211 = vld [vmem:[%s1122 + $0x2c0] sm:$0xff]
    %v1212 = vld [vmem:[%s1122 + $0x2c8] sm:$0xff]
    %v1213 = vld [vmem:[%s1122 + $0x2d0] sm:$0xff]
    %v1214 = vld [vmem:[%s1122 + $0x2d8] sm:$0xff]
    %v1215 = vld [vmem:[%s1122 + $0x2e0] sm:$0xff]
    %v1216 = vld [vmem:[%s1122 + $0x2e8] sm:$0xff]
    %v1217 = vld [vmem:[%s1122 + $0x2f0] sm:$0xff]
    %v1218 = vld [vmem:[%s1122 + $0x2f8] sm:$0xff]
    %v1219 = vld [vmem:[%s1122 + $0x300] sm:$0xff]
    %v1220 = vld [vmem:[%s1122 + $0x308] sm:$0xff]
    %v1221 = vld [vmem:[%s1122 + $0x310] sm:$0xff]
    %v1222 = vld [vmem:[%s1122 + $0x318] sm:$0xff]
    %v1223 = vld [vmem:[%s1122 + $0x320] sm:$0xff]
    %v1224 = vld [vmem:[%s1122 + $0x328] sm:$0xff]
    %v1225 = vld [vmem:[%s1122 + $0x330] sm:$0xff]
    %v1226 = vld [vmem:[%s1122 + $0x338] sm:$0xff]
    %v1227 = vld [vmem:[%s1122 + $0x340] sm:$0xff]
    %v1228 = vld [vmem:[%s1122 + $0x348] sm:$0xff]
    %v1229 = vld [vmem:[%s1122 + $0x350] sm:$0xff]
    %v1230 = vld [vmem:[%s1122 + $0x358] sm:$0xff]
    %v1231 = vld [vmem:[%s1122 + $0x360] sm:$0xff]
    %v1232 = vld [vmem:[%s1122 + $0x368] sm:$0xff]
    %v1233 = vld [vmem:[%s1122 + $0x370] sm:$0xff]
    %v1234 = vld [vmem:[%s1122 + $0x378] sm:$0xff]
    %v1235 = vld [vmem:[%s1122 + $0x380] sm:$0xff]
    %v1236 = vld [vmem:[%s1122 + $0x388] sm:$0xff]
    %v1237 = vld [vmem:[%s1122 + $0x390] sm:$0xff]
    %v1238 = vld [vmem:[%s1122 + $0x398] sm:$0xff]
    %v1239 = vld [vmem:[%s1122 + $0x3a0] sm:$0xff]
    %v1240 = vld [vmem:[%s1122 + $0x3a8] sm:$0xff]
    %v1241 = vld [vmem:[%s1122 + $0x3b0] sm:$0xff]
    %v1242 = vld [vmem:[%s1122 + $0x3b8] sm:$0xff]
    %v1243 = vld [vmem:[%s1122 + $0x3c0] sm:$0xff]
    %v1244 = vld [vmem:[%s1122 + $0x3c8] sm:$0xff]
    %v1245 = vld [vmem:[%s1122 + $0x3d0] sm:$0xff]
    %v1246 = vld [vmem:[%s1122 + $0x3d8] sm:$0xff]
    %v1247 = vld [vmem:[%s1122 + $0x3e0] sm:$0xff]
    %v1248 = vld [vmem:[%s1122 + $0x3e8] sm:$0xff]
    %v1249 = vld [vmem:[%s1122 + $0x3f0] sm:$0xff]
    %v1250 = vld [vmem:[%s1122 + $0x3f8] sm:$0xff]
    %s1251 = scalar_lea.vmem %s2, 4
    %v1252 = vld [vmem:[%s1251] sm:$0xf]
    %v1254 = vlaneseq
    %v1255 = vshrl.u32 %v1254, 7
    %v1256 = vsub.s32 0, %v1255
    %v1257 = vrot.slane %v1252, %v1256
    %v1258 = vlaneseq
    %v1259 = vshrl.u32 %v1258, 7
    %v1260 = vsub.s32 1, %v1259
    %v1261 = vrot.slane %v1252, %v1260
    %v1262 = vlaneseq
    %v1263 = vshrl.u32 %v1262, 7
    %v1264 = vsub.s32 2, %v1263
    %v1265 = vrot.slane %v1252, %v1264
    %v1266 = vlaneseq
    %v1267 = vshrl.u32 %v1266, 7
    %v1268 = vsub.s32 3, %v1267
    %v1269 = vrot.slane %v1252, %v1268
    %v1402 = vunpack.c.l.b16 %v1123
    %v1403 = vunpack.c.h.b16 %v1123
    %v1404 = vunpack.c.l.b16 %v1124
    %v1405 = vunpack.c.h.b16 %v1124
    %v1406 = vunpack.c.l.b16 %v1125
    %v1407 = vunpack.c.h.b16 %v1125
    %v1408 = vunpack.c.l.b16 %v1126
    %v1409 = vunpack.c.h.b16 %v1126
    %v1410 = vunpack.c.l.b16 %v1127
    %v1411 = vunpack.c.h.b16 %v1127
    %v1412 = vunpack.c.l.b16 %v1128
    %v1413 = vunpack.c.h.b16 %v1128
    %v1414 = vunpack.c.l.b16 %v1129
    %v1415 = vunpack.c.h.b16 %v1129
    %v1416 = vunpack.c.l.b16 %v1130
    %v1417 = vunpack.c.h.b16 %v1130
    %v1418 = vunpack.c.l.b16 %v1131
    %v1419 = vunpack.c.h.b16 %v1131
    %v1420 = vunpack.c.l.b16 %v1132
    %v1421 = vunpack.c.h.b16 %v1132
    %v1422 = vunpack.c.l.b16 %v1133
    %v1423 = vunpack.c.h.b16 %v1133
    %v1424 = vunpack.c.l.b16 %v1134
    %v1425 = vunpack.c.h.b16 %v1134
    %v1426 = vunpack.c.l.b16 %v1135
    %v1427 = vunpack.c.h.b16 %v1135
    %v1428 = vunpack.c.l.b16 %v1136
    %v1429 = vunpack.c.h.b16 %v1136
    %v1430 = vunpack.c.l.b16 %v1137
    %v1431 = vunpack.c.h.b16 %v1137
    %v1432 = vunpack.c.l.b16 %v1138
    %v1433 = vunpack.c.h.b16 %v1138
    %v1434 = vunpack.c.l.b16 %v1139
    %v1435 = vunpack.c.h.b16 %v1139
    %v1436 = vunpack.c.l.b16 %v1140
    %v1437 = vunpack.c.h.b16 %v1140
    %v1438 = vunpack.c.l.b16 %v1141
    %v1439 = vunpack.c.h.b16 %v1141
    %v1440 = vunpack.c.l.b16 %v1142
    %v1441 = vunpack.c.h.b16 %v1142
    %v1442 = vunpack.c.l.b16 %v1143
    %v1443 = vunpack.c.h.b16 %v1143
    %v1444 = vunpack.c.l.b16 %v1144
    %v1445 = vunpack.c.h.b16 %v1144
    %v1446 = vunpack.c.l.b16 %v1145
    %v1447 = vunpack.c.h.b16 %v1145
    %v1448 = vunpack.c.l.b16 %v1146
    %v1449 = vunpack.c.h.b16 %v1146
    %v1450 = vunpack.c.l.b16 %v1147
    %v1451 = vunpack.c.h.b16 %v1147
    %v1452 = vunpack.c.l.b16 %v1148
    %v1453 = vunpack.c.h.b16 %v1148
    %v1454 = vunpack.c.l.b16 %v1149
    %v1455 = vunpack.c.h.b16 %v1149
    %v1456 = vunpack.c.l.b16 %v1150
    %v1457 = vunpack.c.h.b16 %v1150
    %v1458 = vunpack.c.l.b16 %v1151
    %v1459 = vunpack.c.h.b16 %v1151
    %v1460 = vunpack.c.l.b16 %v1152
    %v1461 = vunpack.c.h.b16 %v1152
    %v1462 = vunpack.c.l.b16 %v1153
    %v1463 = vunpack.c.h.b16 %v1153
    %v1464 = vunpack.c.l.b16 %v1154
    %v1465 = vunpack.c.h.b16 %v1154
    %v1466 = vunpack.c.l.b16 %v1155
    %v1467 = vunpack.c.h.b16 %v1155
    %v1468 = vunpack.c.l.b16 %v1156
    %v1469 = vunpack.c.h.b16 %v1156
    %v1470 = vunpack.c.l.b16 %v1157
    %v1471 = vunpack.c.h.b16 %v1157
    %v1472 = vunpack.c.l.b16 %v1158
    %v1473 = vunpack.c.h.b16 %v1158
    %v1474 = vunpack.c.l.b16 %v1159
    %v1475 = vunpack.c.h.b16 %v1159
    %v1476 = vunpack.c.l.b16 %v1160
    %v1477 = vunpack.c.h.b16 %v1160
    %v1478 = vunpack.c.l.b16 %v1161
    %v1479 = vunpack.c.h.b16 %v1161
    %v1480 = vunpack.c.l.b16 %v1162
    %v1481 = vunpack.c.h.b16 %v1162
    %v1482 = vunpack.c.l.b16 %v1163
    %v1483 = vunpack.c.h.b16 %v1163
    %v1484 = vunpack.c.l.b16 %v1164
    %v1485 = vunpack.c.h.b16 %v1164
    %v1486 = vunpack.c.l.b16 %v1165
    %v1487 = vunpack.c.h.b16 %v1165
    %v1488 = vunpack.c.l.b16 %v1166
    %v1489 = vunpack.c.h.b16 %v1166
    %v1490 = vunpack.c.l.b16 %v1167
    %v1491 = vunpack.c.h.b16 %v1167
    %v1492 = vunpack.c.l.b16 %v1168
    %v1493 = vunpack.c.h.b16 %v1168
    %v1494 = vunpack.c.l.b16 %v1169
    %v1495 = vunpack.c.h.b16 %v1169
    %v1496 = vunpack.c.l.b16 %v1170
    %v1497 = vunpack.c.h.b16 %v1170
    %v1498 = vunpack.c.l.b16 %v1171
    %v1499 = vunpack.c.h.b16 %v1171
    %v1500 = vunpack.c.l.b16 %v1172
    %v1501 = vunpack.c.h.b16 %v1172
    %v1502 = vunpack.c.l.b16 %v1173
    %v1503 = vunpack.c.h.b16 %v1173
    %v1504 = vunpack.c.l.b16 %v1174
    %v1505 = vunpack.c.h.b16 %v1174
    %v1506 = vunpack.c.l.b16 %v1175
    %v1507 = vunpack.c.h.b16 %v1175
    %v1508 = vunpack.c.l.b16 %v1176
    %v1509 = vunpack.c.h.b16 %v1176
    %v1510 = vunpack.c.l.b16 %v1177
    %v1511 = vunpack.c.h.b16 %v1177
    %v1512 = vunpack.c.l.b16 %v1178
    %v1513 = vunpack.c.h.b16 %v1178
    %v1514 = vunpack.c.l.b16 %v1179
    %v1515 = vunpack.c.h.b16 %v1179
    %v1516 = vunpack.c.l.b16 %v1180
    %v1517 = vunpack.c.h.b16 %v1180
    %v1518 = vunpack.c.l.b16 %v1181
    %v1519 = vunpack.c.h.b16 %v1181
    %v1520 = vunpack.c.l.b16 %v1182
    %v1521 = vunpack.c.h.b16 %v1182
    %v1522 = vunpack.c.l.b16 %v1183
    %v1523 = vunpack.c.h.b16 %v1183
    %v1524 = vunpack.c.l.b16 %v1184
    %v1525 = vunpack.c.h.b16 %v1184
    %v1526 = vunpack.c.l.b16 %v1185
    %v1527 = vunpack.c.h.b16 %v1185
    %v1528 = vunpack.c.l.b16 %v1186
    %v1529 = vunpack.c.h.b16 %v1186
    %v1530 = vunpack.c.l.b16 %v1187
    %v1531 = vunpack.c.h.b16 %v1187
    %v1532 = vunpack.c.l.b16 %v1188
    %v1533 = vunpack.c.h.b16 %v1188
    %v1534 = vunpack.c.l.b16 %v1189
    %v1535 = vunpack.c.h.b16 %v1189
    %v1536 = vunpack.c.l.b16 %v1190
    %v1537 = vunpack.c.h.b16 %v1190
    %v1538 = vunpack.c.l.b16 %v1191
    %v1539 = vunpack.c.h.b16 %v1191
    %v1540 = vunpack.c.l.b16 %v1192
    %v1541 = vunpack.c.h.b16 %v1192
    %v1542 = vunpack.c.l.b16 %v1193
    %v1543 = vunpack.c.h.b16 %v1193
    %v1544 = vunpack.c.l.b16 %v1194
    %v1545 = vunpack.c.h.b16 %v1194
    %v1546 = vunpack.c.l.b16 %v1195
    %v1547 = vunpack.c.h.b16 %v1195
    %v1548 = vunpack.c.l.b16 %v1196
    %v1549 = vunpack.c.h.b16 %v1196
    %v1550 = vunpack.c.l.b16 %v1197
    %v1551 = vunpack.c.h.b16 %v1197
    %v1552 = vunpack.c.l.b16 %v1198
    %v1553 = vunpack.c.h.b16 %v1198
    %v1554 = vunpack.c.l.b16 %v1199
    %v1555 = vunpack.c.h.b16 %v1199
    %v1556 = vunpack.c.l.b16 %v1200
    %v1557 = vunpack.c.h.b16 %v1200
    %v1558 = vunpack.c.l.b16 %v1201
    %v1559 = vunpack.c.h.b16 %v1201
    %v1560 = vunpack.c.l.b16 %v1202
    %v1561 = vunpack.c.h.b16 %v1202
    %v1562 = vunpack.c.l.b16 %v1203
    %v1563 = vunpack.c.h.b16 %v1203
    %v1564 = vunpack.c.l.b16 %v1204
    %v1565 = vunpack.c.h.b16 %v1204
    %v1566 = vunpack.c.l.b16 %v1205
    %v1567 = vunpack.c.h.b16 %v1205
    %v1568 = vunpack.c.l.b16 %v1206
    %v1569 = vunpack.c.h.b16 %v1206
    %v1570 = vunpack.c.l.b16 %v1207
    %v1571 = vunpack.c.h.b16 %v1207
    %v1572 = vunpack.c.l.b16 %v1208
    %v1573 = vunpack.c.h.b16 %v1208
    %v1574 = vunpack.c.l.b16 %v1209
    %v1575 = vunpack.c.h.b16 %v1209
    %v1576 = vunpack.c.l.b16 %v1210
    %v1577 = vunpack.c.h.b16 %v1210
    %v1578 = vunpack.c.l.b16 %v1211
    %v1579 = vunpack.c.h.b16 %v1211
    %v1580 = vunpack.c.l.b16 %v1212
    %v1581 = vunpack.c.h.b16 %v1212
    %v1582 = vunpack.c.l.b16 %v1213
    %v1583 = vunpack.c.h.b16 %v1213
    %v1584 = vunpack.c.l.b16 %v1214
    %v1585 = vunpack.c.h.b16 %v1214
    %v1586 = vunpack.c.l.b16 %v1215
    %v1587 = vunpack.c.h.b16 %v1215
    %v1588 = vunpack.c.l.b16 %v1216
    %v1589 = vunpack.c.h.b16 %v1216
    %v1590 = vunpack.c.l.b16 %v1217
    %v1591 = vunpack.c.h.b16 %v1217
    %v1592 = vunpack.c.l.b16 %v1218
    %v1593 = vunpack.c.h.b16 %v1218
    %v1594 = vunpack.c.l.b16 %v1219
    %v1595 = vunpack.c.h.b16 %v1219
    %v1596 = vunpack.c.l.b16 %v1220
    %v1597 = vunpack.c.h.b16 %v1220
    %v1598 = vunpack.c.l.b16 %v1221
    %v1599 = vunpack.c.h.b16 %v1221
    %v1600 = vunpack.c.l.b16 %v1222
    %v1601 = vunpack.c.h.b16 %v1222
    %v1602 = vunpack.c.l.b16 %v1223
    %v1603 = vunpack.c.h.b16 %v1223
    %v1604 = vunpack.c.l.b16 %v1224
    %v1605 = vunpack.c.h.b16 %v1224
    %v1606 = vunpack.c.l.b16 %v1225
    %v1607 = vunpack.c.h.b16 %v1225
    %v1608 = vunpack.c.l.b16 %v1226
    %v1609 = vunpack.c.h.b16 %v1226
    %v1610 = vunpack.c.l.b16 %v1227
    %v1611 = vunpack.c.h.b16 %v1227
    %v1612 = vunpack.c.l.b16 %v1228
    %v1613 = vunpack.c.h.b16 %v1228
    %v1614 = vunpack.c.l.b16 %v1229
    %v1615 = vunpack.c.h.b16 %v1229
    %v1616 = vunpack.c.l.b16 %v1230
    %v1617 = vunpack.c.h.b16 %v1230
    %v1618 = vunpack.c.l.b16 %v1231
    %v1619 = vunpack.c.h.b16 %v1231
    %v1620 = vunpack.c.l.b16 %v1232
    %v1621 = vunpack.c.h.b16 %v1232
    %v1622 = vunpack.c.l.b16 %v1233
    %v1623 = vunpack.c.h.b16 %v1233
    %v1624 = vunpack.c.l.b16 %v1234
    %v1625 = vunpack.c.h.b16 %v1234
    %v1626 = vunpack.c.l.b16 %v1235
    %v1627 = vunpack.c.h.b16 %v1235
    %v1628 = vunpack.c.l.b16 %v1236
    %v1629 = vunpack.c.h.b16 %v1236
    %v1630 = vunpack.c.l.b16 %v1237
    %v1631 = vunpack.c.h.b16 %v1237
    %v1632 = vunpack.c.l.b16 %v1238
    %v1633 = vunpack.c.h.b16 %v1238
    %v1634 = vunpack.c.l.b16 %v1239
    %v1635 = vunpack.c.h.b16 %v1239
    %v1636 = vunpack.c.l.b16 %v1240
    %v1637 = vunpack.c.h.b16 %v1240
    %v1638 = vunpack.c.l.b16 %v1241
    %v1639 = vunpack.c.h.b16 %v1241
    %v1640 = vunpack.c.l.b16 %v1242
    %v1641 = vunpack.c.h.b16 %v1242
    %v1642 = vunpack.c.l.b16 %v1243
    %v1643 = vunpack.c.h.b16 %v1243
    %v1644 = vunpack.c.l.b16 %v1244
    %v1645 = vunpack.c.h.b16 %v1244
    %v1646 = vunpack.c.l.b16 %v1245
    %v1647 = vunpack.c.h.b16 %v1245
    %v1648 = vunpack.c.l.b16 %v1246
    %v1649 = vunpack.c.h.b16 %v1246
    %v1650 = vunpack.c.l.b16 %v1247
    %v1651 = vunpack.c.h.b16 %v1247
    %v1652 = vunpack.c.l.b16 %v1248
    %v1653 = vunpack.c.h.b16 %v1248
    %v1654 = vunpack.c.l.b16 %v1249
    %v1655 = vunpack.c.h.b16 %v1249
    %v1656 = vunpack.c.l.b16 %v1250
    %v1657 = vunpack.c.h.b16 %v1250
    %v1658 = vpack.c.b16 %v1406, %v1402
    %v1659 = vpack.c.b16 %v1407, %v1403
    %v1660 = vpack.c.b16 %v1408, %v1404
    %v1661 = vpack.c.b16 %v1409, %v1405
    %v1662 = vpack.c.b16 %v1414, %v1410
    %v1663 = vpack.c.b16 %v1415, %v1411
    %v1664 = vpack.c.b16 %v1416, %v1412
    %v1665 = vpack.c.b16 %v1417, %v1413
    %v1666 = vpack.c.b16 %v1422, %v1418
    %v1667 = vpack.c.b16 %v1423, %v1419
    %v1668 = vpack.c.b16 %v1424, %v1420
    %v1669 = vpack.c.b16 %v1425, %v1421
    %v1670 = vpack.c.b16 %v1430, %v1426
    %v1671 = vpack.c.b16 %v1431, %v1427
    %v1672 = vpack.c.b16 %v1432, %v1428
    %v1673 = vpack.c.b16 %v1433, %v1429
    %v1674 = vpack.c.b16 %v1438, %v1434
    %v1675 = vpack.c.b16 %v1439, %v1435
    %v1676 = vpack.c.b16 %v1440, %v1436
    %v1677 = vpack.c.b16 %v1441, %v1437
    %v1678 = vpack.c.b16 %v1446, %v1442
    %v1679 = vpack.c.b16 %v1447, %v1443
    %v1680 = vpack.c.b16 %v1448, %v1444
    %v1681 = vpack.c.b16 %v1449, %v1445
    %v1682 = vpack.c.b16 %v1454, %v1450
    %v1683 = vpack.c.b16 %v1455, %v1451
    %v1684 = vpack.c.b16 %v1456, %v1452
    %v1685 = vpack.c.b16 %v1457, %v1453
    %v1686 = vpack.c.b16 %v1462, %v1458
    %v1687 = vpack.c.b16 %v1463, %v1459
    %v1688 = vpack.c.b16 %v1464, %v1460
    %v1689 = vpack.c.b16 %v1465, %v1461
    %v1690 = vpack.c.b16 %v1470, %v1466
    %v1691 = vpack.c.b16 %v1471, %v1467
    %v1692 = vpack.c.b16 %v1472, %v1468
    %v1693 = vpack.c.b16 %v1473, %v1469
    %v1694 = vpack.c.b16 %v1478, %v1474
    %v1695 = vpack.c.b16 %v1479, %v1475
    %v1696 = vpack.c.b16 %v1480, %v1476
    %v1697 = vpack.c.b16 %v1481, %v1477
    %v1698 = vpack.c.b16 %v1486, %v1482
    %v1699 = vpack.c.b16 %v1487, %v1483
    %v1700 = vpack.c.b16 %v1488, %v1484
    %v1701 = vpack.c.b16 %v1489, %v1485
    %v1702 = vpack.c.b16 %v1494, %v1490
    %v1703 = vpack.c.b16 %v1495, %v1491
    %v1704 = vpack.c.b16 %v1496, %v1492
    %v1705 = vpack.c.b16 %v1497, %v1493
    %v1706 = vpack.c.b16 %v1502, %v1498
    %v1707 = vpack.c.b16 %v1503, %v1499
    %v1708 = vpack.c.b16 %v1504, %v1500
    %v1709 = vpack.c.b16 %v1505, %v1501
    %v1710 = vpack.c.b16 %v1510, %v1506
    %v1711 = vpack.c.b16 %v1511, %v1507
    %v1712 = vpack.c.b16 %v1512, %v1508
    %v1713 = vpack.c.b16 %v1513, %v1509
    %v1714 = vpack.c.b16 %v1518, %v1514
    %v1715 = vpack.c.b16 %v1519, %v1515
    %v1716 = vpack.c.b16 %v1520, %v1516
    %v1717 = vpack.c.b16 %v1521, %v1517
    %v1718 = vpack.c.b16 %v1526, %v1522
    %v1719 = vpack.c.b16 %v1527, %v1523
    %v1720 = vpack.c.b16 %v1528, %v1524
    %v1721 = vpack.c.b16 %v1529, %v1525
    %v1722 = vpack.c.b16 %v1534, %v1530
    %v1723 = vpack.c.b16 %v1535, %v1531
    %v1724 = vpack.c.b16 %v1536, %v1532
    %v1725 = vpack.c.b16 %v1537, %v1533
    %v1726 = vpack.c.b16 %v1542, %v1538
    %v1727 = vpack.c.b16 %v1543, %v1539
    %v1728 = vpack.c.b16 %v1544, %v1540
    %v1729 = vpack.c.b16 %v1545, %v1541
    %v1730 = vpack.c.b16 %v1550, %v1546
    %v1731 = vpack.c.b16 %v1551, %v1547
    %v1732 = vpack.c.b16 %v1552, %v1548
    %v1733 = vpack.c.b16 %v1553, %v1549
    %v1734 = vpack.c.b16 %v1558, %v1554
    %v1735 = vpack.c.b16 %v1559, %v1555
    %v1736 = vpack.c.b16 %v1560, %v1556
    %v1737 = vpack.c.b16 %v1561, %v1557
    %v1738 = vpack.c.b16 %v1566, %v1562
    %v1739 = vpack.c.b16 %v1567, %v1563
    %v1740 = vpack.c.b16 %v1568, %v1564
    %v1741 = vpack.c.b16 %v1569, %v1565
    %v1742 = vpack.c.b16 %v1574, %v1570
    %v1743 = vpack.c.b16 %v1575, %v1571
    %v1744 = vpack.c.b16 %v1576, %v1572
    %v1745 = vpack.c.b16 %v1577, %v1573
    %v1746 = vpack.c.b16 %v1582, %v1578
    %v1747 = vpack.c.b16 %v1583, %v1579
    %v1748 = vpack.c.b16 %v1584, %v1580
    %v1749 = vpack.c.b16 %v1585, %v1581
    %v1750 = vpack.c.b16 %v1590, %v1586
    %v1751 = vpack.c.b16 %v1591, %v1587
    %v1752 = vpack.c.b16 %v1592, %v1588
    %v1753 = vpack.c.b16 %v1593, %v1589
    %v1754 = vpack.c.b16 %v1598, %v1594
    %v1755 = vpack.c.b16 %v1599, %v1595
    %v1756 = vpack.c.b16 %v1600, %v1596
    %v1757 = vpack.c.b16 %v1601, %v1597
    %v1758 = vpack.c.b16 %v1606, %v1602
    %v1759 = vpack.c.b16 %v1607, %v1603
    %v1760 = vpack.c.b16 %v1608, %v1604
    %v1761 = vpack.c.b16 %v1609, %v1605
    %v1762 = vpack.c.b16 %v1614, %v1610
    %v1763 = vpack.c.b16 %v1615, %v1611
    %v1764 = vpack.c.b16 %v1616, %v1612
    %v1765 = vpack.c.b16 %v1617, %v1613
    %v1766 = vpack.c.b16 %v1622, %v1618
    %v1767 = vpack.c.b16 %v1623, %v1619
    %v1768 = vpack.c.b16 %v1624, %v1620
    %v1769 = vpack.c.b16 %v1625, %v1621
    %v1770 = vpack.c.b16 %v1630, %v1626
    %v1771 = vpack.c.b16 %v1631, %v1627
    %v1772 = vpack.c.b16 %v1632, %v1628
    %v1773 = vpack.c.b16 %v1633, %v1629
    %v1774 = vpack.c.b16 %v1638, %v1634
    %v1775 = vpack.c.b16 %v1639, %v1635
    %v1776 = vpack.c.b16 %v1640, %v1636
    %v1777 = vpack.c.b16 %v1641, %v1637
    %v1778 = vpack.c.b16 %v1646, %v1642
    %v1779 = vpack.c.b16 %v1647, %v1643
    %v1780 = vpack.c.b16 %v1648, %v1644
    %v1781 = vpack.c.b16 %v1649, %v1645
    %v1782 = vpack.c.b16 %v1654, %v1650
    %v1783 = vpack.c.b16 %v1655, %v1651
    %v1784 = vpack.c.b16 %v1656, %v1652
    %v1785 = vpack.c.b16 %v1657, %v1653
    %1914 = vmatprep.subr.bf16.mxu0 %v1687
    %1915 = vmatpush1.bf16.msra.mxu0 %v1686
    %1916 = vmatprep.subr.bf16.mxu0 %v1683
    %1917 = vmatpush1.bf16.msra.mxu0 %v1682
    %1918 = vmatprep.subr.bf16.mxu0 %v1679
    %1919 = vmatpush1.bf16.msra.mxu0 %v1678
    %1920 = vmatprep.subr.bf16.mxu0 %v1675
    %1921 = vmatpush1.bf16.msra.mxu0 %v1674
    %1922 = vmatprep.subr.bf16.mxu0 %v1671
    %1923 = vmatpush1.bf16.msra.mxu0 %v1670
    %1924 = vmatprep.subr.bf16.mxu0 %v1667
    %1925 = vmatpush1.bf16.msra.mxu0 %v1666
    %1926 = vmatprep.subr.bf16.mxu0 %v1663
    %1927 = vmatpush1.bf16.msra.mxu0 %v1662
    %1928 = vmatprep.subr.bf16.mxu0 %v1659
    %1929 = vmatpush1.bf16.msra.mxu0 %v1658
    %1930 = vmatprep.subr.bf16.mxu0 %v1719
    %1931 = vmatpush2.bf16.msra.mxu0 %v1718
    %1932 = vmatprep.subr.bf16.mxu0 %v1715
    %1933 = vmatpush2.bf16.msra.mxu0 %v1714
    %1934 = vmatprep.subr.bf16.mxu0 %v1711
    %1935 = vmatpush2.bf16.msra.mxu0 %v1710
    %1936 = vmatprep.subr.bf16.mxu0 %v1707
    %1937 = vmatpush2.bf16.msra.mxu0 %v1706
    %1938 = vmatprep.subr.bf16.mxu0 %v1703
    %1939 = vmatpush2.bf16.msra.mxu0 %v1702
    %1940 = vmatprep.subr.bf16.mxu0 %v1699
    %1941 = vmatpush2.bf16.msra.mxu0 %v1698
    %1942 = vmatprep.subr.bf16.mxu0 %v1695
    %1943 = vmatpush2.bf16.msra.mxu0 %v1694
    %1944 = vmatprep.subr.bf16.mxu0 %v1691
    %1945 = vmatpush2.bf16.msra.mxu0 %v1690
    %1946 = vmatprep.mubr.bf16.mxu0 %v1119
    %1947 = vmatmul.mubr.bf16.gmra.mxu0 %v1118
    %v1948 = vpop.f32.mrf.mxu0
    %v1949 = vadd.f32 %v1257, %v1948
    %v1950 = vpop.f32.mrf.mxu0
    %v1951 = vadd.f32 %v1261, %v1950
    %v1952 = vpop.f32.mrf.mxu0
    %v1953 = vpop.f32.mrf.mxu0
    %1954 = vdwg.mxu0
    %1955 = vmatprep.subr.bf16.mxu0 %v1751
    %1956 = vmatpush1.bf16.msra.mxu0 %v1750
    %1957 = vmatprep.subr.bf16.mxu0 %v1747
    %1958 = vmatpush1.bf16.msra.mxu0 %v1746
    %1959 = vmatprep.subr.bf16.mxu0 %v1743
    %1960 = vmatpush1.bf16.msra.mxu0 %v1742
    %1961 = vmatprep.subr.bf16.mxu0 %v1739
    %1962 = vmatpush1.bf16.msra.mxu0 %v1738
    %1963 = vmatprep.subr.bf16.mxu0 %v1735
    %1964 = vmatpush1.bf16.msra.mxu0 %v1734
    %1965 = vmatprep.subr.bf16.mxu0 %v1731
    %1966 = vmatpush1.bf16.msra.mxu0 %v1730
    %1967 = vmatprep.subr.bf16.mxu0 %v1727
    %1968 = vmatpush1.bf16.msra.mxu0 %v1726
    %1969 = vmatprep.subr.bf16.mxu0 %v1723
    %1970 = vmatpush1.bf16.msra.mxu0 %v1722
    %1971 = vmatprep.subr.bf16.mxu0 %v1783
    %1972 = vmatpush2.bf16.msra.mxu0 %v1782
    %1973 = vmatprep.subr.bf16.mxu0 %v1779
    %1974 = vmatpush2.bf16.msra.mxu0 %v1778
    %1975 = vmatprep.subr.bf16.mxu0 %v1775
    %1976 = vmatpush2.bf16.msra.mxu0 %v1774
    %1977 = vmatprep.subr.bf16.mxu0 %v1771
    %1978 = vmatpush2.bf16.msra.mxu0 %v1770
    %1979 = vmatprep.subr.bf16.mxu0 %v1767
    %1980 = vmatpush2.bf16.msra.mxu0 %v1766
    %1981 = vmatprep.subr.bf16.mxu0 %v1763
    %1982 = vmatpush2.bf16.msra.mxu0 %v1762
    %1983 = vmatprep.subr.bf16.mxu0 %v1759
    %1984 = vmatpush2.bf16.msra.mxu0 %v1758
    %1985 = vmatprep.subr.bf16.mxu0 %v1755
    %1986 = vmatpush2.bf16.msra.mxu0 %v1754
    %1987 = vmatprep.mubr.bf16.mxu0 %v1121
    %1988 = vmatmul.mubr.bf16.gmra.mxu0 %v1120
    %v1989 = vpop.f32.mrf.mxu0
    %v1990 = vadd.f32 %v1949, %v1989
    %v1991 = vpop.f32.mrf.mxu0
    %v1992 = vadd.f32 %v1951, %v1991
    %v1993 = vpop.f32.mrf.mxu0
    %v1994 = vpop.f32.mrf.mxu0
    %1995 = vdwg.mxu0
    %1996 = vmatprep.subr.bf16.mxu0 %v1689
    %1997 = vmatpush1.bf16.msra.mxu0 %v1688
    %1998 = vmatprep.subr.bf16.mxu0 %v1685
    %1999 = vmatpush1.bf16.msra.mxu0 %v1684
    %2000 = vmatprep.subr.bf16.mxu0 %v1681
    %2001 = vmatpush1.bf16.msra.mxu0 %v1680
    %2002 = vmatprep.subr.bf16.mxu0 %v1677
    %2003 = vmatpush1.bf16.msra.mxu0 %v1676
    %2004 = vmatprep.subr.bf16.mxu0 %v1673
    %2005 = vmatpush1.bf16.msra.mxu0 %v1672
    %2006 = vmatprep.subr.bf16.mxu0 %v1669
    %2007 = vmatpush1.bf16.msra.mxu0 %v1668
    %2008 = vmatprep.subr.bf16.mxu0 %v1665
    %2009 = vmatpush1.bf16.msra.mxu0 %v1664
    %2010 = vmatprep.subr.bf16.mxu0 %v1661
    %2011 = vmatpush1.bf16.msra.mxu0 %v1660
    %2012 = vmatprep.subr.bf16.mxu0 %v1721
    %2013 = vmatpush2.bf16.msra.mxu0 %v1720
    %2014 = vmatprep.subr.bf16.mxu0 %v1717
    %2015 = vmatpush2.bf16.msra.mxu0 %v1716
    %2016 = vmatprep.subr.bf16.mxu0 %v1713
    %2017 = vmatpush2.bf16.msra.mxu0 %v1712
    %2018 = vmatprep.subr.bf16.mxu0 %v1709
    %2019 = vmatpush2.bf16.msra.mxu0 %v1708
    %2020 = vmatprep.subr.bf16.mxu0 %v1705
    %2021 = vmatpush2.bf16.msra.mxu0 %v1704
    %2022 = vmatprep.subr.bf16.mxu0 %v1701
    %2023 = vmatpush2.bf16.msra.mxu0 %v1700
    %2024 = vmatprep.subr.bf16.mxu0 %v1697
    %2025 = vmatpush2.bf16.msra.mxu0 %v1696
    %2026 = vmatprep.subr.bf16.mxu0 %v1693
    %2027 = vmatpush2.bf16.msra.mxu0 %v1692
    %2028 = vmatprep.mubr.bf16.mxu0 %v1119
    %2029 = vmatmul.mubr.bf16.gmra.mxu0 %v1118
    %v2030 = vpop.f32.mrf.mxu0
    %v2031 = vadd.f32 %v1265, %v2030
    %v2032 = vpop.f32.mrf.mxu0
    %v2033 = vadd.f32 %v1269, %v2032
    %v2034 = vpop.f32.mrf.mxu0
    %v2035 = vpop.f32.mrf.mxu0
    %2036 = vdwg.mxu0
    %2037 = vmatprep.subr.bf16.mxu0 %v1753
    %2038 = vmatpush1.bf16.msra.mxu0 %v1752
    %2039 = vmatprep.subr.bf16.mxu0 %v1749
    %2040 = vmatpush1.bf16.msra.mxu0 %v1748
    %2041 = vmatprep.subr.bf16.mxu0 %v1745
    %2042 = vmatpush1.bf16.msra.mxu0 %v1744
    %2043 = vmatprep.subr.bf16.mxu0 %v1741
    %2044 = vmatpush1.bf16.msra.mxu0 %v1740
    %2045 = vmatprep.subr.bf16.mxu0 %v1737
    %2046 = vmatpush1.bf16.msra.mxu0 %v1736
    %2047 = vmatprep.subr.bf16.mxu0 %v1733
    %2048 = vmatpush1.bf16.msra.mxu0 %v1732
    %2049 = vmatprep.subr.bf16.mxu0 %v1729
    %2050 = vmatpush1.bf16.msra.mxu0 %v1728
    %2051 = vmatprep.subr.bf16.mxu0 %v1725
    %2052 = vmatpush1.bf16.msra.mxu0 %v1724
    %2053 = vmatprep.subr.bf16.mxu0 %v1785
    %2054 = vmatpush2.bf16.msra.mxu0 %v1784
    %2055 = vmatprep.subr.bf16.mxu0 %v1781
    %2056 = vmatpush2.bf16.msra.mxu0 %v1780
    %2057 = vmatprep.subr.bf16.mxu0 %v1777
    %2058 = vmatpush2.bf16.msra.mxu0 %v1776
    %2059 = vmatprep.subr.bf16.mxu0 %v1773
    %2060 = vmatpush2.bf16.msra.mxu0 %v1772
    %2061 = vmatprep.subr.bf16.mxu0 %v1769
    %2062 = vmatpush2.bf16.msra.mxu0 %v1768
    %2063 = vmatprep.subr.bf16.mxu0 %v1765
    %2064 = vmatpush2.bf16.msra.mxu0 %v1764
    %2065 = vmatprep.subr.bf16.mxu0 %v1761
    %2066 = vmatpush2.bf16.msra.mxu0 %v1760
    %2067 = vmatprep.subr.bf16.mxu0 %v1757
    %2068 = vmatpush2.bf16.msra.mxu0 %v1756
    %2069 = vmatprep.mubr.bf16.mxu0 %v1121
    %2070 = vmatmul.mubr.bf16.gmra.mxu0 %v1120
    %v2071 = vpop.f32.mrf.mxu0
    %v2072 = vadd.f32 %v2031, %v2071
    %v2073 = vpop.f32.mrf.mxu0
    %v2074 = vadd.f32 %v2033, %v2073
    %v2075 = vpop.f32.mrf.mxu0
    %v2076 = vpop.f32.mrf.mxu0
    %2077 = vdwg.mxu0
    %vm2078 = vcmp.ge.f32.partialorder %v1990, 0.0
    %vm2079 = vcmp.ge.f32.partialorder %v1992, 0.0
    %vm2080 = vcmp.ge.f32.partialorder %v2072, 0.0
    %vm2081 = vcmp.ge.f32.partialorder %v2074, 0.0
    %v2082 = vmul.f32 %v1990, 0.2
    %v2083 = vmul.f32 %v1992, 0.2
    %v2084 = vmul.f32 %v2072, 0.2
    %v2085 = vmul.f32 %v2074, 0.2
    %v2086 = vsel %vm2078, %v1990, %v2082
    %v2087 = vsel %vm2079, %v1992, %v2083
    %v2088 = vsel %vm2080, %v2072, %v2084
    %v2089 = vsel %vm2081, %v2074, %v2085
    %v2090 = vpack.c.bf16 %v2086, %v2086
    %v2091 = vpack.c.bf16 %v2087, %v2087
    %v2092 = vpack.c.bf16 %v2088, %v2088
    %v2093 = vpack.c.bf16 %v2089, %v2089
    %v2094 = vld [vmem:[#allocation4] sm:$0xf]
    %v2095 = vld [vmem:[#allocation4 + $0x4] sm:$0xf]
    %v2096 = vld [vmem:[#allocation4 + $0x8] sm:$0xf]
    %v2097 = vld [vmem:[#allocation4 + $0xc] sm:$0xf]
    %v2098 = vld [vmem:[#allocation4 + $0x10] sm:$0xf]
    %v2099 = vld [vmem:[#allocation4 + $0x14] sm:$0xf]
    %v2100 = vld [vmem:[#allocation4 + $0x18] sm:$0xf]
    %v2101 = vld [vmem:[#allocation4 + $0x1c] sm:$0xf]
    %v2102 = vld [vmem:[#allocation4 + $0x20] sm:$0xf]
    %v2103 = vld [vmem:[#allocation4 + $0x24] sm:$0xf]
    %v2104 = vld [vmem:[#allocation4 + $0x28] sm:$0xf]
    %v2105 = vld [vmem:[#allocation4 + $0x2c] sm:$0xf]
    %v2106 = vld [vmem:[#allocation4 + $0x30] sm:$0xf]
    %v2107 = vld [vmem:[#allocation4 + $0x34] sm:$0xf]
    %v2108 = vld [vmem:[#allocation4 + $0x38] sm:$0xf]
    %v2109 = vld [vmem:[#allocation4 + $0x3c] sm:$0xf]
    %v2110 = vld [vmem:[#allocation4 + $0x40] sm:$0xf]
    %v2111 = vld [vmem:[#allocation4 + $0x44] sm:$0xf]
    %v2112 = vld [vmem:[#allocation4 + $0x48] sm:$0xf]
    %v2113 = vld [vmem:[#allocation4 + $0x4c] sm:$0xf]
    %v2114 = vld [vmem:[#allocation4 + $0x50] sm:$0xf]
    %v2115 = vld [vmem:[#allocation4 + $0x54] sm:$0xf]
    %v2116 = vld [vmem:[#allocation4 + $0x58] sm:$0xf]
    %v2117 = vld [vmem:[#allocation4 + $0x5c] sm:$0xf]
    %v2118 = vld [vmem:[#allocation4 + $0x60] sm:$0xf]
    %v2119 = vld [vmem:[#allocation4 + $0x64] sm:$0xf]
    %v2120 = vld [vmem:[#allocation4 + $0x68] sm:$0xf]
    %v2121 = vld [vmem:[#allocation4 + $0x6c] sm:$0xf]
    %v2122 = vld [vmem:[#allocation4 + $0x70] sm:$0xf]
    %v2123 = vld [vmem:[#allocation4 + $0x74] sm:$0xf]
    %v2124 = vld [vmem:[#allocation4 + $0x78] sm:$0xf]
    %v2125 = vld [vmem:[#allocation4 + $0x7c] sm:$0xf]
    %v2126 = vld [vmem:[#allocation4 + $0x80] sm:$0xf]
    %v2127 = vld [vmem:[#allocation4 + $0x84] sm:$0xf]
    %v2128 = vld [vmem:[#allocation4 + $0x88] sm:$0xf]
    %v2129 = vld [vmem:[#allocation4 + $0x8c] sm:$0xf]
    %v2130 = vld [vmem:[#allocation4 + $0x90] sm:$0xf]
    %v2131 = vld [vmem:[#allocation4 + $0x94] sm:$0xf]
    %v2132 = vld [vmem:[#allocation4 + $0x98] sm:$0xf]
    %v2133 = vld [vmem:[#allocation4 + $0x9c] sm:$0xf]
    %v2134 = vld [vmem:[#allocation4 + $0xa0] sm:$0xf]
    %v2135 = vld [vmem:[#allocation4 + $0xa4] sm:$0xf]
    %v2136 = vld [vmem:[#allocation4 + $0xa8] sm:$0xf]
    %v2137 = vld [vmem:[#allocation4 + $0xac] sm:$0xf]
    %v2138 = vld [vmem:[#allocation4 + $0xb0] sm:$0xf]
    %v2139 = vld [vmem:[#allocation4 + $0xb4] sm:$0xf]
    %v2140 = vld [vmem:[#allocation4 + $0xb8] sm:$0xf]
    %v2141 = vld [vmem:[#allocation4 + $0xbc] sm:$0xf]
    %v2142 = vld [vmem:[#allocation4 + $0xc0] sm:$0xf]
    %v2143 = vld [vmem:[#allocation4 + $0xc4] sm:$0xf]
    %v2144 = vld [vmem:[#allocation4 + $0xc8] sm:$0xf]
    %v2145 = vld [vmem:[#allocation4 + $0xcc] sm:$0xf]
    %v2146 = vld [vmem:[#allocation4 + $0xd0] sm:$0xf]
    %v2147 = vld [vmem:[#allocation4 + $0xd4] sm:$0xf]
    %v2148 = vld [vmem:[#allocation4 + $0xd8] sm:$0xf]
    %v2149 = vld [vmem:[#allocation4 + $0xdc] sm:$0xf]
    %v2150 = vld [vmem:[#allocation4 + $0xe0] sm:$0xf]
    %v2151 = vld [vmem:[#allocation4 + $0xe4] sm:$0xf]
    %v2152 = vld [vmem:[#allocation4 + $0xe8] sm:$0xf]
    %v2153 = vld [vmem:[#allocation4 + $0xec] sm:$0xf]
    %v2154 = vld [vmem:[#allocation4 + $0xf0] sm:$0xf]
    %v2155 = vld [vmem:[#allocation4 + $0xf4] sm:$0xf]
    %v2156 = vld [vmem:[#allocation4 + $0xf8] sm:$0xf]
    %v2157 = vld [vmem:[#allocation4 + $0xfc] sm:$0xf]
    %v2158 = vld [vmem:[%s4] sm:$0x1]
    %v2160 = vlaneseq
    %v2161 = vshrl.u32 %v2160, 7
    %v2162 = vsub.s32 0, %v2161
    %v2163 = vrot.slane %v2158, %v2162
    %v2229 = vunpack.c.l.b16 %v2094
    %v2230 = vunpack.c.l.b16 %v2095
    %v2231 = vunpack.c.l.b16 %v2096
    %v2232 = vunpack.c.l.b16 %v2097
    %v2233 = vunpack.c.l.b16 %v2098
    %v2234 = vunpack.c.l.b16 %v2099
    %v2235 = vunpack.c.l.b16 %v2100
    %v2236 = vunpack.c.l.b16 %v2101
    %v2237 = vunpack.c.l.b16 %v2102
    %v2238 = vunpack.c.l.b16 %v2103
    %v2239 = vunpack.c.l.b16 %v2104
    %v2240 = vunpack.c.l.b16 %v2105
    %v2241 = vunpack.c.l.b16 %v2106
    %v2242 = vunpack.c.l.b16 %v2107
    %v2243 = vunpack.c.l.b16 %v2108
    %v2244 = vunpack.c.l.b16 %v2109
    %v2245 = vunpack.c.l.b16 %v2110
    %v2246 = vunpack.c.l.b16 %v2111
    %v2247 = vunpack.c.l.b16 %v2112
    %v2248 = vunpack.c.l.b16 %v2113
    %v2249 = vunpack.c.l.b16 %v2114
    %v2250 = vunpack.c.l.b16 %v2115
    %v2251 = vunpack.c.l.b16 %v2116
    %v2252 = vunpack.c.l.b16 %v2117
    %v2253 = vunpack.c.l.b16 %v2118
    %v2254 = vunpack.c.l.b16 %v2119
    %v2255 = vunpack.c.l.b16 %v2120
    %v2256 = vunpack.c.l.b16 %v2121
    %v2257 = vunpack.c.l.b16 %v2122
    %v2258 = vunpack.c.l.b16 %v2123
    %v2259 = vunpack.c.l.b16 %v2124
    %v2260 = vunpack.c.l.b16 %v2125
    %v2261 = vunpack.c.l.b16 %v2126
    %v2262 = vunpack.c.l.b16 %v2127
    %v2263 = vunpack.c.l.b16 %v2128
    %v2264 = vunpack.c.l.b16 %v2129
    %v2265 = vunpack.c.l.b16 %v2130
    %v2266 = vunpack.c.l.b16 %v2131
    %v2267 = vunpack.c.l.b16 %v2132
    %v2268 = vunpack.c.l.b16 %v2133
    %v2269 = vunpack.c.l.b16 %v2134
    %v2270 = vunpack.c.l.b16 %v2135
    %v2271 = vunpack.c.l.b16 %v2136
    %v2272 = vunpack.c.l.b16 %v2137
    %v2273 = vunpack.c.l.b16 %v2138
    %v2274 = vunpack.c.l.b16 %v2139
    %v2275 = vunpack.c.l.b16 %v2140
    %v2276 = vunpack.c.l.b16 %v2141
    %v2277 = vunpack.c.l.b16 %v2142
    %v2278 = vunpack.c.l.b16 %v2143
    %v2279 = vunpack.c.l.b16 %v2144
    %v2280 = vunpack.c.l.b16 %v2145
    %v2281 = vunpack.c.l.b16 %v2146
    %v2282 = vunpack.c.l.b16 %v2147
    %v2283 = vunpack.c.l.b16 %v2148
    %v2284 = vunpack.c.l.b16 %v2149
    %v2285 = vunpack.c.l.b16 %v2150
    %v2286 = vunpack.c.l.b16 %v2151
    %v2287 = vunpack.c.l.b16 %v2152
    %v2288 = vunpack.c.l.b16 %v2153
    %v2289 = vunpack.c.l.b16 %v2154
    %v2290 = vunpack.c.l.b16 %v2155
    %v2291 = vunpack.c.l.b16 %v2156
    %v2292 = vunpack.c.l.b16 %v2157
    %v2293 = vpack.c.b16 %v2230, %v2229
    %v2294 = vpack.c.b16 %v2232, %v2231
    %v2295 = vpack.c.b16 %v2234, %v2233
    %v2296 = vpack.c.b16 %v2236, %v2235
    %v2297 = vpack.c.b16 %v2238, %v2237
    %v2298 = vpack.c.b16 %v2240, %v2239
    %v2299 = vpack.c.b16 %v2242, %v2241
    %v2300 = vpack.c.b16 %v2244, %v2243
    %v2301 = vpack.c.b16 %v2246, %v2245
    %v2302 = vpack.c.b16 %v2248, %v2247
    %v2303 = vpack.c.b16 %v2250, %v2249
    %v2304 = vpack.c.b16 %v2252, %v2251
    %v2305 = vpack.c.b16 %v2254, %v2253
    %v2306 = vpack.c.b16 %v2256, %v2255
    %v2307 = vpack.c.b16 %v2258, %v2257
    %v2308 = vpack.c.b16 %v2260, %v2259
    %v2309 = vpack.c.b16 %v2262, %v2261
    %v2310 = vpack.c.b16 %v2264, %v2263
    %v2311 = vpack.c.b16 %v2266, %v2265
    %v2312 = vpack.c.b16 %v2268, %v2267
    %v2313 = vpack.c.b16 %v2270, %v2269
    %v2314 = vpack.c.b16 %v2272, %v2271
    %v2315 = vpack.c.b16 %v2274, %v2273
    %v2316 = vpack.c.b16 %v2276, %v2275
    %v2317 = vpack.c.b16 %v2278, %v2277
    %v2318 = vpack.c.b16 %v2280, %v2279
    %v2319 = vpack.c.b16 %v2282, %v2281
    %v2320 = vpack.c.b16 %v2284, %v2283
    %v2321 = vpack.c.b16 %v2286, %v2285
    %v2322 = vpack.c.b16 %v2288, %v2287
    %v2323 = vpack.c.b16 %v2290, %v2289
    %v2324 = vpack.c.b16 %v2292, %v2291
    %2357 = vmatprep.subr.bf16.mxu0 0
    %2358 = vmatpush1.bf16.msra.mxu0 %v2300
    %2359 = vmatprep.subr.bf16.mxu0 0
    %2360 = vmatpush1.bf16.msra.mxu0 %v2299
    %2361 = vmatprep.subr.bf16.mxu0 0
    %2362 = vmatpush1.bf16.msra.mxu0 %v2298
    %2363 = vmatprep.subr.bf16.mxu0 0
    %2364 = vmatpush1.bf16.msra.mxu0 %v2297
    %2365 = vmatprep.subr.bf16.mxu0 0
    %2366 = vmatpush1.bf16.msra.mxu0 %v2296
    %2367 = vmatprep.subr.bf16.mxu0 0
    %2368 = vmatpush1.bf16.msra.mxu0 %v2295
    %2369 = vmatprep.subr.bf16.mxu0 0
    %2370 = vmatpush1.bf16.msra.mxu0 %v2294
    %2371 = vmatprep.subr.bf16.mxu0 0
    %2372 = vmatpush1.bf16.msra.mxu0 %v2293
    %2373 = vmatprep.subr.bf16.mxu0 0
    %2374 = vmatpush2.bf16.msra.mxu0 %v2308
    %2375 = vmatprep.subr.bf16.mxu0 0
    %2376 = vmatpush2.bf16.msra.mxu0 %v2307
    %2377 = vmatprep.subr.bf16.mxu0 0
    %2378 = vmatpush2.bf16.msra.mxu0 %v2306
    %2379 = vmatprep.subr.bf16.mxu0 0
    %2380 = vmatpush2.bf16.msra.mxu0 %v2305
    %2381 = vmatprep.subr.bf16.mxu0 0
    %2382 = vmatpush2.bf16.msra.mxu0 %v2304
    %2383 = vmatprep.subr.bf16.mxu0 0
    %2384 = vmatpush2.bf16.msra.mxu0 %v2303
    %2385 = vmatprep.subr.bf16.mxu0 0
    %2386 = vmatpush2.bf16.msra.mxu0 %v2302
    %2387 = vmatprep.subr.bf16.mxu0 0
    %2388 = vmatpush2.bf16.msra.mxu0 %v2301
    %2389 = vmatprep.mubr.bf16.mxu0 %v2091
    %2390 = vmatmul.mubr.bf16.gmra.mxu0 %v2090
    %v2391 = vpop.f32.mrf.mxu0
    %v2392 = vadd.f32 %v2163, %v2391
    %v2393 = vpop.f32.mrf.mxu0
    %v2394 = vpop.f32.mrf.mxu0
    %v2395 = vpop.f32.mrf.mxu0
    %2396 = vdwg.mxu0
    %2397 = vmatprep.subr.bf16.mxu0 0
    %2398 = vmatpush1.bf16.msra.mxu0 %v2316
    %2399 = vmatprep.subr.bf16.mxu0 0
    %2400 = vmatpush1.bf16.msra.mxu0 %v2315
    %2401 = vmatprep.subr.bf16.mxu0 0
    %2402 = vmatpush1.bf16.msra.mxu0 %v2314
    %2403 = vmatprep.subr.bf16.mxu0 0
    %2404 = vmatpush1.bf16.msra.mxu0 %v2313
    %2405 = vmatprep.subr.bf16.mxu0 0
    %2406 = vmatpush1.bf16.msra.mxu0 %v2312
    %2407 = vmatprep.subr.bf16.mxu0 0
    %2408 = vmatpush1.bf16.msra.mxu0 %v2311
    %2409 = vmatprep.subr.bf16.mxu0 0
    %2410 = vmatpush1.bf16.msra.mxu0 %v2310
    %2411 = vmatprep.subr.bf16.mxu0 0
    %2412 = vmatpush1.bf16.msra.mxu0 %v2309
    %2413 = vmatprep.subr.bf16.mxu0 0
    %2414 = vmatpush2.bf16.msra.mxu0 %v2324
    %2415 = vmatprep.subr.bf16.mxu0 0
    %2416 = vmatpush2.bf16.msra.mxu0 %v2323
    %2417 = vmatprep.subr.bf16.mxu0 0
    %2418 = vmatpush2.bf16.msra.mxu0 %v2322
    %2419 = vmatprep.subr.bf16.mxu0 0
    %2420 = vmatpush2.bf16.msra.mxu0 %v2321
    %2421 = vmatprep.subr.bf16.mxu0 0
    %2422 = vmatpush2.bf16.msra.mxu0 %v2320
    %2423 = vmatprep.subr.bf16.mxu0 0
    %2424 = vmatpush2.bf16.msra.mxu0 %v2319
    %2425 = vmatprep.subr.bf16.mxu0 0
    %2426 = vmatpush2.bf16.msra.mxu0 %v2318
    %2427 = vmatprep.subr.bf16.mxu0 0
    %2428 = vmatpush2.bf16.msra.mxu0 %v2317
    %2429 = vmatprep.mubr.bf16.mxu0 %v2093
    %2430 = vmatmul.mubr.bf16.gmra.mxu0 %v2092
    %v2431 = vpop.f32.mrf.mxu0
    %v2432 = vadd.f32 %v2392, %v2431
    %v2433 = vpop.f32.mrf.mxu0
    %v2434 = vpop.f32.mrf.mxu0
    %v2435 = vpop.f32.mrf.mxu0
    %2436 = vdwg.mxu0
    %v2437 = vld [vmem:[#allocation9] sm:$0xf]
    %v2438 = vld [vmem:[#allocation9 + $0x4] sm:$0xf]
    %v2439 = vld [vmem:[#allocation9 + $0x8] sm:$0xf]
    %v2440 = vld [vmem:[#allocation9 + $0xc] sm:$0xf]
    %v2441 = vld [vmem:[#allocation9 + $0x10] sm:$0xf]
    %v2442 = vld [vmem:[#allocation9 + $0x14] sm:$0xf]
    %v2443 = vld [vmem:[#allocation9 + $0x18] sm:$0xf]
    %v2444 = vld [vmem:[#allocation9 + $0x1c] sm:$0xf]
    %v2445 = vld [vmem:[#allocation9 + $0x20] sm:$0xf]
    %v2446 = vld [vmem:[#allocation9 + $0x24] sm:$0xf]
    %v2447 = vld [vmem:[#allocation9 + $0x28] sm:$0xf]
    %v2448 = vld [vmem:[#allocation9 + $0x2c] sm:$0xf]
    %v2449 = vld [vmem:[#allocation9 + $0x30] sm:$0xf]
    %v2450 = vld [vmem:[#allocation9 + $0x34] sm:$0xf]
    %v2451 = vld [vmem:[#allocation9 + $0x38] sm:$0xf]
    %v2452 = vld [vmem:[#allocation9 + $0x3c] sm:$0xf]
    %v2453 = vld [vmem:[#allocation9 + $0x40] sm:$0xf]
    %v2454 = vld [vmem:[#allocation9 + $0x44] sm:$0xf]
    %v2455 = vld [vmem:[#allocation9 + $0x48] sm:$0xf]
    %v2456 = vld [vmem:[#allocation9 + $0x4c] sm:$0xf]
    %v2457 = vld [vmem:[#allocation9 + $0x50] sm:$0xf]
    %v2458 = vld [vmem:[#allocation9 + $0x54] sm:$0xf]
    %v2459 = vld [vmem:[#allocation9 + $0x58] sm:$0xf]
    %v2460 = vld [vmem:[#allocation9 + $0x5c] sm:$0xf]
    %v2461 = vld [vmem:[#allocation9 + $0x60] sm:$0xf]
    %v2462 = vld [vmem:[#allocation9 + $0x64] sm:$0xf]
    %v2463 = vld [vmem:[#allocation9 + $0x68] sm:$0xf]
    %v2464 = vld [vmem:[#allocation9 + $0x6c] sm:$0xf]
    %v2465 = vld [vmem:[#allocation9 + $0x70] sm:$0xf]
    %v2466 = vld [vmem:[#allocation9 + $0x74] sm:$0xf]
    %v2467 = vld [vmem:[#allocation9 + $0x78] sm:$0xf]
    %v2468 = vld [vmem:[#allocation9 + $0x7c] sm:$0xf]
    %v2469 = vld [vmem:[#allocation9 + $0x80] sm:$0xf]
    %v2470 = vld [vmem:[#allocation9 + $0x84] sm:$0xf]
    %v2471 = vld [vmem:[#allocation9 + $0x88] sm:$0xf]
    %v2472 = vld [vmem:[#allocation9 + $0x8c] sm:$0xf]
    %v2473 = vld [vmem:[#allocation9 + $0x90] sm:$0xf]
    %v2474 = vld [vmem:[#allocation9 + $0x94] sm:$0xf]
    %v2475 = vld [vmem:[#allocation9 + $0x98] sm:$0xf]
    %v2476 = vld [vmem:[#allocation9 + $0x9c] sm:$0xf]
    %v2477 = vld [vmem:[#allocation9 + $0xa0] sm:$0xf]
    %v2478 = vld [vmem:[#allocation9 + $0xa4] sm:$0xf]
    %v2479 = vld [vmem:[#allocation9 + $0xa8] sm:$0xf]
    %v2480 = vld [vmem:[#allocation9 + $0xac] sm:$0xf]
    %v2481 = vld [vmem:[#allocation9 + $0xb0] sm:$0xf]
    %v2482 = vld [vmem:[#allocation9 + $0xb4] sm:$0xf]
    %v2483 = vld [vmem:[#allocation9 + $0xb8] sm:$0xf]
    %v2484 = vld [vmem:[#allocation9 + $0xbc] sm:$0xf]
    %v2485 = vld [vmem:[#allocation9 + $0xc0] sm:$0xf]
    %v2486 = vld [vmem:[#allocation9 + $0xc4] sm:$0xf]
    %v2487 = vld [vmem:[#allocation9 + $0xc8] sm:$0xf]
    %v2488 = vld [vmem:[#allocation9 + $0xcc] sm:$0xf]
    %v2489 = vld [vmem:[#allocation9 + $0xd0] sm:$0xf]
    %v2490 = vld [vmem:[#allocation9 + $0xd4] sm:$0xf]
    %v2491 = vld [vmem:[#allocation9 + $0xd8] sm:$0xf]
    %v2492 = vld [vmem:[#allocation9 + $0xdc] sm:$0xf]
    %v2493 = vld [vmem:[#allocation9 + $0xe0] sm:$0xf]
    %v2494 = vld [vmem:[#allocation9 + $0xe4] sm:$0xf]
    %v2495 = vld [vmem:[#allocation9 + $0xe8] sm:$0xf]
    %v2496 = vld [vmem:[#allocation9 + $0xec] sm:$0xf]
    %v2497 = vld [vmem:[#allocation9 + $0xf0] sm:$0xf]
    %v2498 = vld [vmem:[#allocation9 + $0xf4] sm:$0xf]
    %v2499 = vld [vmem:[#allocation9 + $0xf8] sm:$0xf]
    %v2500 = vld [vmem:[#allocation9 + $0xfc] sm:$0xf]
    %v2501 = vld [vmem:[%s10] sm:$0x1]
    %v2503 = vlaneseq
    %v2504 = vshrl.u32 %v2503, 7
    %v2505 = vsub.s32 0, %v2504
    %v2506 = vrot.slane %v2501, %v2505
    %v2572 = vunpack.c.l.b16 %v2437
    %v2573 = vunpack.c.l.b16 %v2438
    %v2574 = vunpack.c.l.b16 %v2439
    %v2575 = vunpack.c.l.b16 %v2440
    %v2576 = vunpack.c.l.b16 %v2441
    %v2577 = vunpack.c.l.b16 %v2442
    %v2578 = vunpack.c.l.b16 %v2443
    %v2579 = vunpack.c.l.b16 %v2444
    %v2580 = vunpack.c.l.b16 %v2445
    %v2581 = vunpack.c.l.b16 %v2446
    %v2582 = vunpack.c.l.b16 %v2447
    %v2583 = vunpack.c.l.b16 %v2448
    %v2584 = vunpack.c.l.b16 %v2449
    %v2585 = vunpack.c.l.b16 %v2450
    %v2586 = vunpack.c.l.b16 %v2451
    %v2587 = vunpack.c.l.b16 %v2452
    %v2588 = vunpack.c.l.b16 %v2453
    %v2589 = vunpack.c.l.b16 %v2454
    %v2590 = vunpack.c.l.b16 %v2455
    %v2591 = vunpack.c.l.b16 %v2456
    %v2592 = vunpack.c.l.b16 %v2457
    %v2593 = vunpack.c.l.b16 %v2458
    %v2594 = vunpack.c.l.b16 %v2459
    %v2595 = vunpack.c.l.b16 %v2460
    %v2596 = vunpack.c.l.b16 %v2461
    %v2597 = vunpack.c.l.b16 %v2462
    %v2598 = vunpack.c.l.b16 %v2463
    %v2599 = vunpack.c.l.b16 %v2464
    %v2600 = vunpack.c.l.b16 %v2465
    %v2601 = vunpack.c.l.b16 %v2466
    %v2602 = vunpack.c.l.b16 %v2467
    %v2603 = vunpack.c.l.b16 %v2468
    %v2604 = vunpack.c.l.b16 %v2469
    %v2605 = vunpack.c.l.b16 %v2470
    %v2606 = vunpack.c.l.b16 %v2471
    %v2607 = vunpack.c.l.b16 %v2472
    %v2608 = vunpack.c.l.b16 %v2473
    %v2609 = vunpack.c.l.b16 %v2474
    %v2610 = vunpack.c.l.b16 %v2475
    %v2611 = vunpack.c.l.b16 %v2476
    %v2612 = vunpack.c.l.b16 %v2477
    %v2613 = vunpack.c.l.b16 %v2478
    %v2614 = vunpack.c.l.b16 %v2479
    %v2615 = vunpack.c.l.b16 %v2480
    %v2616 = vunpack.c.l.b16 %v2481
    %v2617 = vunpack.c.l.b16 %v2482
    %v2618 = vunpack.c.l.b16 %v2483
    %v2619 = vunpack.c.l.b16 %v2484
    %v2620 = vunpack.c.l.b16 %v2485
    %v2621 = vunpack.c.l.b16 %v2486
    %v2622 = vunpack.c.l.b16 %v2487
    %v2623 = vunpack.c.l.b16 %v2488
    %v2624 = vunpack.c.l.b16 %v2489
    %v2625 = vunpack.c.l.b16 %v2490
    %v2626 = vunpack.c.l.b16 %v2491
    %v2627 = vunpack.c.l.b16 %v2492
    %v2628 = vunpack.c.l.b16 %v2493
    %v2629 = vunpack.c.l.b16 %v2494
    %v2630 = vunpack.c.l.b16 %v2495
    %v2631 = vunpack.c.l.b16 %v2496
    %v2632 = vunpack.c.l.b16 %v2497
    %v2633 = vunpack.c.l.b16 %v2498
    %v2634 = vunpack.c.l.b16 %v2499
    %v2635 = vunpack.c.l.b16 %v2500
    %v2636 = vpack.c.b16 %v2573, %v2572
    %v2637 = vpack.c.b16 %v2575, %v2574
    %v2638 = vpack.c.b16 %v2577, %v2576
    %v2639 = vpack.c.b16 %v2579, %v2578
    %v2640 = vpack.c.b16 %v2581, %v2580
    %v2641 = vpack.c.b16 %v2583, %v2582
    %v2642 = vpack.c.b16 %v2585, %v2584
    %v2643 = vpack.c.b16 %v2587, %v2586
    %v2644 = vpack.c.b16 %v2589, %v2588
    %v2645 = vpack.c.b16 %v2591, %v2590
    %v2646 = vpack.c.b16 %v2593, %v2592
    %v2647 = vpack.c.b16 %v2595, %v2594
    %v2648 = vpack.c.b16 %v2597, %v2596
    %v2649 = vpack.c.b16 %v2599, %v2598
    %v2650 = vpack.c.b16 %v2601, %v2600
    %v2651 = vpack.c.b16 %v2603, %v2602
    %v2652 = vpack.c.b16 %v2605, %v2604
    %v2653 = vpack.c.b16 %v2607, %v2606
    %v2654 = vpack.c.b16 %v2609, %v2608
    %v2655 = vpack.c.b16 %v2611, %v2610
    %v2656 = vpack.c.b16 %v2613, %v2612
    %v2657 = vpack.c.b16 %v2615, %v2614
    %v2658 = vpack.c.b16 %v2617, %v2616
    %v2659 = vpack.c.b16 %v2619, %v2618
    %v2660 = vpack.c.b16 %v2621, %v2620
    %v2661 = vpack.c.b16 %v2623, %v2622
    %v2662 = vpack.c.b16 %v2625, %v2624
    %v2663 = vpack.c.b16 %v2627, %v2626
    %v2664 = vpack.c.b16 %v2629, %v2628
    %v2665 = vpack.c.b16 %v2631, %v2630
    %v2666 = vpack.c.b16 %v2633, %v2632
    %v2667 = vpack.c.b16 %v2635, %v2634
    %2700 = vmatprep.subr.bf16.mxu0 0
    %2701 = vmatpush1.bf16.msra.mxu0 %v2643
    %2702 = vmatprep.subr.bf16.mxu0 0
    %2703 = vmatpush1.bf16.msra.mxu0 %v2642
    %2704 = vmatprep.subr.bf16.mxu0 0
    %2705 = vmatpush1.bf16.msra.mxu0 %v2641
    %2706 = vmatprep.subr.bf16.mxu0 0
    %2707 = vmatpush1.bf16.msra.mxu0 %v2640
    %2708 = vmatprep.subr.bf16.mxu0 0
    %2709 = vmatpush1.bf16.msra.mxu0 %v2639
    %2710 = vmatprep.subr.bf16.mxu0 0
    %2711 = vmatpush1.bf16.msra.mxu0 %v2638
    %2712 = vmatprep.subr.bf16.mxu0 0
    %2713 = vmatpush1.bf16.msra.mxu0 %v2637
    %2714 = vmatprep.subr.bf16.mxu0 0
    %2715 = vmatpush1.bf16.msra.mxu0 %v2636
    %2716 = vmatprep.subr.bf16.mxu0 0
    %2717 = vmatpush2.bf16.msra.mxu0 %v2651
    %2718 = vmatprep.subr.bf16.mxu0 0
    %2719 = vmatpush2.bf16.msra.mxu0 %v2650
    %2720 = vmatprep.subr.bf16.mxu0 0
    %2721 = vmatpush2.bf16.msra.mxu0 %v2649
    %2722 = vmatprep.subr.bf16.mxu0 0
    %2723 = vmatpush2.bf16.msra.mxu0 %v2648
    %2724 = vmatprep.subr.bf16.mxu0 0
    %2725 = vmatpush2.bf16.msra.mxu0 %v2647
    %2726 = vmatprep.subr.bf16.mxu0 0
    %2727 = vmatpush2.bf16.msra.mxu0 %v2646
    %2728 = vmatprep.subr.bf16.mxu0 0
    %2729 = vmatpush2.bf16.msra.mxu0 %v2645
    %2730 = vmatprep.subr.bf16.mxu0 0
    %2731 = vmatpush2.bf16.msra.mxu0 %v2644
    %2732 = vmatprep.mubr.bf16.mxu0 %v2091
    %2733 = vmatmul.mubr.bf16.gmra.mxu0 %v2090
    %v2734 = vpop.f32.mrf.mxu0
    %v2735 = vadd.f32 %v2506, %v2734
    %v2736 = vpop.f32.mrf.mxu0
    %v2737 = vpop.f32.mrf.mxu0
    %v2738 = vpop.f32.mrf.mxu0
    %2739 = vdwg.mxu0
    %2740 = vmatprep.subr.bf16.mxu0 0
    %2741 = vmatpush1.bf16.msra.mxu0 %v2659
    %2742 = vmatprep.subr.bf16.mxu0 0
    %2743 = vmatpush1.bf16.msra.mxu0 %v2658
    %2744 = vmatprep.subr.bf16.mxu0 0
    %2745 = vmatpush1.bf16.msra.mxu0 %v2657
    %2746 = vmatprep.subr.bf16.mxu0 0
    %2747 = vmatpush1.bf16.msra.mxu0 %v2656
    %2748 = vmatprep.subr.bf16.mxu0 0
    %2749 = vmatpush1.bf16.msra.mxu0 %v2655
    %2750 = vmatprep.subr.bf16.mxu0 0
    %2751 = vmatpush1.bf16.msra.mxu0 %v2654
    %2752 = vmatprep.subr.bf16.mxu0 0
    %2753 = vmatpush1.bf16.msra.mxu0 %v2653
    %2754 = vmatprep.subr.bf16.mxu0 0
    %2755 = vmatpush1.bf16.msra.mxu0 %v2652
    %2756 = vmatprep.subr.bf16.mxu0 0
    %2757 = vmatpush2.bf16.msra.mxu0 %v2667
    %2758 = vmatprep.subr.bf16.mxu0 0
    %2759 = vmatpush2.bf16.msra.mxu0 %v2666
    %2760 = vmatprep.subr.bf16.mxu0 0
    %2761 = vmatpush2.bf16.msra.mxu0 %v2665
    %2762 = vmatprep.subr.bf16.mxu0 0
    %2763 = vmatpush2.bf16.msra.mxu0 %v2664
    %2764 = vmatprep.subr.bf16.mxu0 0
    %2765 = vmatpush2.bf16.msra.mxu0 %v2663
    %2766 = vmatprep.subr.bf16.mxu0 0
    %2767 = vmatpush2.bf16.msra.mxu0 %v2662
    %2768 = vmatprep.subr.bf16.mxu0 0
    %2769 = vmatpush2.bf16.msra.mxu0 %v2661
    %2770 = vmatprep.subr.bf16.mxu0 0
    %2771 = vmatpush2.bf16.msra.mxu0 %v2660
    %2772 = vmatprep.mubr.bf16.mxu0 %v2093
    %2773 = vmatmul.mubr.bf16.gmra.mxu0 %v2092
    %v2774 = vpop.f32.mrf.mxu0
    %v2775 = vadd.f32 %v2735, %v2774
    %v2776 = vpop.f32.mrf.mxu0
    %v2777 = vpop.f32.mrf.mxu0
    %v2778 = vpop.f32.mrf.mxu0
    %2779 = vdwg.mxu0
    %v2780 = vmul.f32 %v2432, %v2432
    %v2781 = vld [vmem:[%s7] sm:$0xff]
    %v2782 = vld [vmem:[%s7 + $0x8] sm:$0xff]
    %v2783 = vld [vmem:[%s7 + $0x10] sm:$0xff]
    %v2784 = vld [vmem:[%s7 + $0x18] sm:$0xff]
    %v2785 = vld [vmem:[%s7 + $0x20] sm:$0xff]
    %v2786 = vld [vmem:[%s7 + $0x28] sm:$0xff]
    %v2787 = vld [vmem:[%s7 + $0x30] sm:$0xff]
    %v2788 = vld [vmem:[%s7 + $0x38] sm:$0xff]
    %vm2789 = vcmask 523264
    %v2791 = vsel %vm2789, %v2780, 0
    %2793 = vmatprep.subr.mxu0 0.0
    %2794 = vmatpush1.msra.mxu0 0.0
    %2795 = vmatprep.subr.mxu0 0.0
    %2796 = vmatpush1.msra.mxu0 0.0
    %2797 = vmatprep.subr.mxu0 0.0
    %2798 = vmatpush1.msra.mxu0 0.0
    %2799 = vmatprep.subr.mxu0 0.0
    %2800 = vmatpush1.msra.mxu0 0.0
    %2801 = vmatprep.subr.mxu0 0.0
    %2802 = vmatpush1.msra.mxu0 0.0
    %2803 = vmatprep.subr.mxu0 0.0
    %2804 = vmatpush1.msra.mxu0 0.0
    %2805 = vmatprep.subr.mxu0 0.0
    %2806 = vmatpush1.msra.mxu0 0.0
    %2807 = vmatprep.subr.mxu0 0.0
    %2808 = vmatpush1.msra.mxu0 0.0
    %2809 = vmatprep.subr.mxu0 0.0
    %2810 = vmatpush1.msra.mxu0 %v2788
    %2811 = vmatprep.subr.mxu0 0.0
    %2812 = vmatpush1.msra.mxu0 %v2787
    %2813 = vmatprep.subr.mxu0 0.0
    %2814 = vmatpush1.msra.mxu0 %v2786
    %2815 = vmatprep.subr.mxu0 0.0
    %2816 = vmatpush1.msra.mxu0 %v2785
    %2817 = vmatprep.subr.mxu0 0.0
    %2818 = vmatpush1.msra.mxu0 %v2784
    %2819 = vmatprep.subr.mxu0 0.0
    %2820 = vmatpush1.msra.mxu0 %v2783
    %2821 = vmatprep.subr.mxu0 0.0
    %2822 = vmatpush1.msra.mxu0 %v2782
    %2823 = vmatprep.subr.mxu0 0.0
    %2824 = vmatpush1.msra.mxu0 %v2781
    %2825 = vmatprep.subr.mxu0 0.0
    %2826 = vmatpush2.msra.mxu0 0.0
    %2827 = vmatprep.subr.mxu0 0.0
    %2828 = vmatpush2.msra.mxu0 0.0
    %2829 = vmatprep.subr.mxu0 0.0
    %2830 = vmatpush2.msra.mxu0 0.0
    %2831 = vmatprep.subr.mxu0 0.0
    %2832 = vmatpush2.msra.mxu0 0.0
    %2833 = vmatprep.subr.mxu0 0.0
    %2834 = vmatpush2.msra.mxu0 0.0
    %2835 = vmatprep.subr.mxu0 0.0
    %2836 = vmatpush2.msra.mxu0 0.0
    %2837 = vmatprep.subr.mxu0 0.0
    %2838 = vmatpush2.msra.mxu0 0.0
    %2839 = vmatprep.subr.mxu0 0.0
    %2840 = vmatpush2.msra.mxu0 0.0
    %2841 = vmatprep.subr.mxu0 0.0
    %2842 = vmatpush2.msra.mxu0 0.0
    %2843 = vmatprep.subr.mxu0 0.0
    %2844 = vmatpush2.msra.mxu0 0.0
    %2845 = vmatprep.subr.mxu0 0.0
    %2846 = vmatpush2.msra.mxu0 0.0
    %2847 = vmatprep.subr.mxu0 0.0
    %2848 = vmatpush2.msra.mxu0 0.0
    %2849 = vmatprep.subr.mxu0 0.0
    %2850 = vmatpush2.msra.mxu0 0.0
    %2851 = vmatprep.subr.mxu0 0.0
    %2852 = vmatpush2.msra.mxu0 0.0
    %2853 = vmatprep.subr.mxu0 0.0
    %2854 = vmatpush2.msra.mxu0 0.0
    %2855 = vmatprep.subr.mxu0 0.0
    %2856 = vmatpush2.msra.mxu0 0.0
    %2857 = vmatprep.mubr.f32.mxu0 0.0
    %2858 = vmatmul.mubr.f32.gmra.mxu0 %v2791
    %v2859 = vpop.f32.mrf.mxu0
    %v2860 = vadd.f32 1e-08, %v2859
    %v2861 = vpop.f32.mrf.mxu0
    %2862 = vdwg.mxu0
    %v2863 = vrsqrt.pop %v2860
    %2865 = vrot.lane.b32.xlu0 %v2432, 64
    %v2866 = vpop.permute.xlu0 %2865
    %v2868 = vsel %vm2789, %v2432, %v2866
    %v2869 = vld [vmem:[#allocation6] sm:$0xff]
    %v2870 = vld [vmem:[#allocation6 + $0x8] sm:$0xff]
    %v2871 = vld [vmem:[#allocation6 + $0x10] sm:$0xf]
    %v2872 = vld [vmem:[#allocation6 + $0x14] sm:$0xff]
    %v2873 = vld [vmem:[#allocation6 + $0x1c] sm:$0xff]
    %v2874 = vld [vmem:[#allocation6 + $0x24] sm:$0xf]
    %v2875 = vunpack.c.l.bf16 %v2869
    %v2876 = vunpack.c.h.bf16 %v2869
    %v2877 = vunpack.c.l.bf16 %v2870
    %v2878 = vunpack.c.h.bf16 %v2870
    %v2879 = vunpack.c.l.bf16 %v2871
    %v2880 = vunpack.c.l.bf16 %v2872
    %v2881 = vunpack.c.h.bf16 %v2872
    %v2882 = vunpack.c.l.bf16 %v2873
    %v2883 = vunpack.c.h.bf16 %v2873
    %v2884 = vunpack.c.l.bf16 %v2874
    %v2886 = vcombine.low %v2868, %v2868
    %v2887 = vcombine.high %v2868, %v2868
    %v2888 = vcombine.high %v2432, %v2432
    %v2890 = vunpack.c.l.s4 1966171168
    %v2891 = vunpack.c.0.s8 %v2890
    %v2892 = vlaneseq
    %v2893 = vshrl.u32 %v2892, 7
    %v2894 = vsub.s32 %v2891, %v2893
    %v2895 = vrot.slane %v2886, %v2894
    %v2897 = vunpack.c.l.s4 1966171168
    %v2898 = vunpack.c.0.s8 %v2897
    %v2899 = vlaneseq
    %v2900 = vshrl.u32 %v2899, 7
    %v2901 = vsub.s32 %v2898, %v2900
    %v2902 = vrot.slane %v2887, %v2901
    %v2904 = vunpack.c.l.s4 1966171168
    %v2905 = vunpack.c.0.s8 %v2904
    %v2906 = vlaneseq
    %v2907 = vshrl.u32 %v2906, 7
    %v2908 = vsub.s32 %v2905, %v2907
    %v2909 = vrot.slane %v2432, %v2908
    %v2911 = vunpack.c.l.s4 1966171168
    %v2912 = vunpack.c.0.s8 %v2911
    %v2913 = vlaneseq
    %v2914 = vshrl.u32 %v2913, 7
    %v2915 = vsub.s32 %v2912, %v2914
    %v2916 = vrot.slane %v2888, %v2915
    %v2917 = vcombine.low %v2895, %v2895
    %v2918 = vcombine.high %v2895, %v2895
    %v2919 = vcombine.low %v2902, %v2902
    %v2920 = vcombine.high %v2902, %v2902
    %v2921 = vcombine.high %v2909, %v2909
    %v2922 = vcombine.high %v2916, %v2916
    %v2924 = vunpack.c.l.s4 1966171168
    %v2925 = vunpack.c.0.s8 %v2924
    %v2926 = vlaneseq
    %v2927 = vshrl.u32 %v2926, 7
    %v2928 = vsub.s32 %v2925, %v2927
    %v2929 = vrot.slane %v2917, %v2928
    %v2931 = vunpack.c.l.s4 1966171168
    %v2932 = vunpack.c.0.s8 %v2931
    %v2933 = vlaneseq
    %v2934 = vshrl.u32 %v2933, 7
    %v2935 = vsub.s32 %v2932, %v2934
    %v2936 = vrot.slane %v2919, %v2935
    %v2938 = vunpack.c.l.s4 1966171168
    %v2939 = vunpack.c.0.s8 %v2938
    %v2940 = vlaneseq
    %v2941 = vshrl.u32 %v2940, 7
    %v2942 = vsub.s32 %v2939, %v2941
    %v2943 = vrot.slane %v2918, %v2942
    %v2945 = vunpack.c.l.s4 1966171168
    %v2946 = vunpack.c.0.s8 %v2945
    %v2947 = vlaneseq
    %v2948 = vshrl.u32 %v2947, 7
    %v2949 = vsub.s32 %v2946, %v2948
    %v2950 = vrot.slane %v2920, %v2949
    %v2952 = vunpack.c.l.s4 1966171168
    %v2953 = vunpack.c.0.s8 %v2952
    %v2954 = vlaneseq
    %v2955 = vshrl.u32 %v2954, 7
    %v2956 = vsub.s32 %v2953, %v2955
    %v2957 = vrot.slane %v2909, %v2956
    %v2959 = vunpack.c.l.s4 1966171168
    %v2960 = vunpack.c.0.s8 %v2959
    %v2961 = vlaneseq
    %v2962 = vshrl.u32 %v2961, 7
    %v2963 = vsub.s32 %v2960, %v2962
    %v2964 = vrot.slane %v2916, %v2963
    %v2966 = vunpack.c.l.s4 1966171168
    %v2967 = vunpack.c.0.s8 %v2966
    %v2968 = vlaneseq
    %v2969 = vshrl.u32 %v2968, 7
    %v2970 = vsub.s32 %v2967, %v2969
    %v2971 = vrot.slane %v2921, %v2970
    %v2973 = vunpack.c.l.s4 1966171168
    %v2974 = vunpack.c.0.s8 %v2973
    %v2975 = vlaneseq
    %v2976 = vshrl.u32 %v2975, 7
    %v2977 = vsub.s32 %v2974, %v2976
    %v2978 = vrot.slane %v2922, %v2977
    %v2979 = vcombine.low %v2929, %v2957
    %v2980 = vcombine.high %v2929, %v2957
    %v2981 = vcombine.low %v2936, %v2964
    %v2982 = vcombine.high %v2936, %v2964
    %v2983 = vcombine.low %v2943, %v2971
    %v2984 = vcombine.high %v2943, %v2971
    %v2985 = vcombine.low %v2950, %v2978
    %v2986 = vcombine.high %v2950, %v2978
    %v2987 = vlaneseq
    %v2988 = vshrl.u32 %v2987, 7
    %v2989 = vsub.s32 0, %v2988
    %v2990 = vrot.slane %v2979, %v2989
    %v2991 = vlaneseq
    %v2992 = vshrl.u32 %v2991, 7
    %v2993 = vsub.s32 1, %v2992
    %v2994 = vrot.slane %v2979, %v2993
    %v2995 = vlaneseq
    %v2996 = vshrl.u32 %v2995, 7
    %v2997 = vsub.s32 2, %v2996
    %v2998 = vrot.slane %v2979, %v2997
    %v2999 = vlaneseq
    %v3000 = vshrl.u32 %v2999, 7
    %v3001 = vsub.s32 3, %v3000
    %v3002 = vrot.slane %v2979, %v3001
    %v3003 = vlaneseq
    %v3004 = vshrl.u32 %v3003, 7
    %v3005 = vsub.s32 4, %v3004
    %v3006 = vrot.slane %v2979, %v3005
    %v3007 = vlaneseq
    %v3008 = vshrl.u32 %v3007, 7
    %v3009 = vsub.s32 0, %v3008
    %v3010 = vrot.slane %v2983, %v3009
    %v3011 = vlaneseq
    %v3012 = vshrl.u32 %v3011, 7
    %v3013 = vsub.s32 1, %v3012
    %v3014 = vrot.slane %v2983, %v3013
    %v3015 = vlaneseq
    %v3016 = vshrl.u32 %v3015, 7
    %v3017 = vsub.s32 2, %v3016
    %v3018 = vrot.slane %v2983, %v3017
    %v3019 = vlaneseq
    %v3020 = vshrl.u32 %v3019, 7
    %v3021 = vsub.s32 3, %v3020
    %v3022 = vrot.slane %v2983, %v3021
    %v3023 = vlaneseq
    %v3024 = vshrl.u32 %v3023, 7
    %v3025 = vsub.s32 4, %v3024
    %v3026 = vrot.slane %v2983, %v3025
    %v3027 = vlaneseq
    %v3028 = vshrl.u32 %v3027, 7
    %v3029 = vsub.s32 0, %v3028
    %v3030 = vrot.slane %v2980, %v3029
    %v3031 = vlaneseq
    %v3032 = vshrl.u32 %v3031, 7
    %v3033 = vsub.s32 1, %v3032
    %v3034 = vrot.slane %v2980, %v3033
    %v3035 = vlaneseq
    %v3036 = vshrl.u32 %v3035, 7
    %v3037 = vsub.s32 2, %v3036
    %v3038 = vrot.slane %v2980, %v3037
    %v3039 = vlaneseq
    %v3040 = vshrl.u32 %v3039, 7
    %v3041 = vsub.s32 3, %v3040
    %v3042 = vrot.slane %v2980, %v3041
    %v3043 = vlaneseq
    %v3044 = vshrl.u32 %v3043, 7
    %v3045 = vsub.s32 4, %v3044
    %v3046 = vrot.slane %v2980, %v3045
    %v3047 = vlaneseq
    %v3048 = vshrl.u32 %v3047, 7
    %v3049 = vsub.s32 0, %v3048
    %v3050 = vrot.slane %v2984, %v3049
    %v3051 = vlaneseq
    %v3052 = vshrl.u32 %v3051, 7
    %v3053 = vsub.s32 1, %v3052
    %v3054 = vrot.slane %v2984, %v3053
    %v3055 = vlaneseq
    %v3056 = vshrl.u32 %v3055, 7
    %v3057 = vsub.s32 2, %v3056
    %v3058 = vrot.slane %v2984, %v3057
    %v3059 = vlaneseq
    %v3060 = vshrl.u32 %v3059, 7
    %v3061 = vsub.s32 3, %v3060
    %v3062 = vrot.slane %v2984, %v3061
    %v3063 = vlaneseq
    %v3064 = vshrl.u32 %v3063, 7
    %v3065 = vsub.s32 4, %v3064
    %v3066 = vrot.slane %v2984, %v3065
    %v3067 = vlaneseq
    %v3068 = vshrl.u32 %v3067, 7
    %v3069 = vsub.s32 0, %v3068
    %v3070 = vrot.slane %v2981, %v3069
    %v3071 = vlaneseq
    %v3072 = vshrl.u32 %v3071, 7
    %v3073 = vsub.s32 1, %v3072
    %v3074 = vrot.slane %v2981, %v3073
    %v3075 = vlaneseq
    %v3076 = vshrl.u32 %v3075, 7
    %v3077 = vsub.s32 2, %v3076
    %v3078 = vrot.slane %v2981, %v3077
    %v3079 = vlaneseq
    %v3080 = vshrl.u32 %v3079, 7
    %v3081 = vsub.s32 3, %v3080
    %v3082 = vrot.slane %v2981, %v3081
    %v3083 = vlaneseq
    %v3084 = vshrl.u32 %v3083, 7
    %v3085 = vsub.s32 4, %v3084
    %v3086 = vrot.slane %v2981, %v3085
    %v3087 = vlaneseq
    %v3088 = vshrl.u32 %v3087, 7
    %v3089 = vsub.s32 0, %v3088
    %v3090 = vrot.slane %v2985, %v3089
    %v3091 = vlaneseq
    %v3092 = vshrl.u32 %v3091, 7
    %v3093 = vsub.s32 1, %v3092
    %v3094 = vrot.slane %v2985, %v3093
    %v3095 = vlaneseq
    %v3096 = vshrl.u32 %v3095, 7
    %v3097 = vsub.s32 2, %v3096
    %v3098 = vrot.slane %v2985, %v3097
    %v3099 = vlaneseq
    %v3100 = vshrl.u32 %v3099, 7
    %v3101 = vsub.s32 3, %v3100
    %v3102 = vrot.slane %v2985, %v3101
    %v3103 = vlaneseq
    %v3104 = vshrl.u32 %v3103, 7
    %v3105 = vsub.s32 4, %v3104
    %v3106 = vrot.slane %v2985, %v3105
    %v3107 = vlaneseq
    %v3108 = vshrl.u32 %v3107, 7
    %v3109 = vsub.s32 0, %v3108
    %v3110 = vrot.slane %v2982, %v3109
    %v3111 = vlaneseq
    %v3112 = vshrl.u32 %v3111, 7
    %v3113 = vsub.s32 1, %v3112
    %v3114 = vrot.slane %v2982, %v3113
    %v3115 = vlaneseq
    %v3116 = vshrl.u32 %v3115, 7
    %v3117 = vsub.s32 2, %v3116
    %v3118 = vrot.slane %v2982, %v3117
    %v3119 = vlaneseq
    %v3120 = vshrl.u32 %v3119, 7
    %v3121 = vsub.s32 3, %v3120
    %v3122 = vrot.slane %v2982, %v3121
    %v3123 = vlaneseq
    %v3124 = vshrl.u32 %v3123, 7
    %v3125 = vsub.s32 4, %v3124
    %v3126 = vrot.slane %v2982, %v3125
    %v3127 = vlaneseq
    %v3128 = vshrl.u32 %v3127, 7
    %v3129 = vsub.s32 0, %v3128
    %v3130 = vrot.slane %v2986, %v3129
    %v3131 = vlaneseq
    %v3132 = vshrl.u32 %v3131, 7
    %v3133 = vsub.s32 1, %v3132
    %v3134 = vrot.slane %v2986, %v3133
    %v3135 = vlaneseq
    %v3136 = vshrl.u32 %v3135, 7
    %v3137 = vsub.s32 2, %v3136
    %v3138 = vrot.slane %v2986, %v3137
    %v3139 = vlaneseq
    %v3140 = vshrl.u32 %v3139, 7
    %v3141 = vsub.s32 3, %v3140
    %v3142 = vrot.slane %v2986, %v3141
    %v3143 = vlaneseq
    %v3144 = vshrl.u32 %v3143, 7
    %v3145 = vsub.s32 4, %v3144
    %v3146 = vrot.slane %v2986, %v3145
    %v3187 = vmul.f32 %v2875, %v2990
    %v3188 = vmul.f32 %v2876, %v2994
    %v3189 = vmul.f32 %v2877, %v2998
    %v3190 = vmul.f32 %v2878, %v3002
    %v3191 = vmul.f32 %v2879, %v3006
    %v3192 = vmul.f32 %v2880, %v2990
    %v3193 = vmul.f32 %v2881, %v2994
    %v3194 = vmul.f32 %v2882, %v2998
    %v3195 = vmul.f32 %v2883, %v3002
    %v3196 = vmul.f32 %v2884, %v3006
    %v3197 = vmul.f32 %v2875, %v3010
    %v3198 = vmul.f32 %v2876, %v3014
    %v3199 = vmul.f32 %v2877, %v3018
    %v3200 = vmul.f32 %v2878, %v3022
    %v3201 = vmul.f32 %v2879, %v3026
    %v3202 = vmul.f32 %v2880, %v3010
    %v3203 = vmul.f32 %v2881, %v3014
    %v3204 = vmul.f32 %v2882, %v3018
    %v3205 = vmul.f32 %v2883, %v3022
    %v3206 = vmul.f32 %v2884, %v3026
    %v3207 = vmul.f32 %v2875, %v3030
    %v3208 = vmul.f32 %v2876, %v3034
    %v3209 = vmul.f32 %v2877, %v3038
    %v3210 = vmul.f32 %v2878, %v3042
    %v3211 = vmul.f32 %v2879, %v3046
    %v3212 = vmul.f32 %v2880, %v3030
    %v3213 = vmul.f32 %v2881, %v3034
    %v3214 = vmul.f32 %v2882, %v3038
    %v3215 = vmul.f32 %v2883, %v3042
    %v3216 = vmul.f32 %v2884, %v3046
    %v3217 = vmul.f32 %v2875, %v3050
    %v3218 = vmul.f32 %v2876, %v3054
    %v3219 = vmul.f32 %v2877, %v3058
    %v3220 = vmul.f32 %v2878, %v3062
    %v3221 = vmul.f32 %v2879, %v3066
    %v3222 = vmul.f32 %v2880, %v3050
    %v3223 = vmul.f32 %v2881, %v3054
    %v3224 = vmul.f32 %v2882, %v3058
    %v3225 = vmul.f32 %v2883, %v3062
    %v3226 = vmul.f32 %v2884, %v3066
    %v3227 = vmul.f32 %v2875, %v3070
    %v3228 = vmul.f32 %v2876, %v3074
    %v3229 = vmul.f32 %v2877, %v3078
    %v3230 = vmul.f32 %v2878, %v3082
    %v3231 = vmul.f32 %v2879, %v3086
    %v3232 = vmul.f32 %v2880, %v3070
    %v3233 = vmul.f32 %v2881, %v3074
    %v3234 = vmul.f32 %v2882, %v3078
    %v3235 = vmul.f32 %v2883, %v3082
    %v3236 = vmul.f32 %v2884, %v3086
    %v3237 = vmul.f32 %v2875, %v3090
    %v3238 = vmul.f32 %v2876, %v3094
    %v3239 = vmul.f32 %v2877, %v3098
    %v3240 = vmul.f32 %v2878, %v3102
    %v3241 = vmul.f32 %v2879, %v3106
    %v3242 = vmul.f32 %v2880, %v3090
    %v3243 = vmul.f32 %v2881, %v3094
    %v3244 = vmul.f32 %v2882, %v3098
    %v3245 = vmul.f32 %v2883, %v3102
    %v3246 = vmul.f32 %v2884, %v3106
    %v3247 = vmul.f32 %v2875, %v3110
    %v3248 = vmul.f32 %v2876, %v3114
    %v3249 = vmul.f32 %v2877, %v3118
    %v3250 = vmul.f32 %v2878, %v3122
    %v3251 = vmul.f32 %v2879, %v3126
    %v3252 = vmul.f32 %v2880, %v3110
    %v3253 = vmul.f32 %v2881, %v3114
    %v3254 = vmul.f32 %v2882, %v3118
    %v3255 = vmul.f32 %v2883, %v3122
    %v3256 = vmul.f32 %v2884, %v3126
    %v3257 = vmul.f32 %v2875, %v3130
    %v3258 = vmul.f32 %v2876, %v3134
    %v3259 = vmul.f32 %v2877, %v3138
    %v3260 = vmul.f32 %v2878, %v3142
    %v3261 = vmul.f32 %v2879, %v3146
    %v3262 = vmul.f32 %v2880, %v3130
    %v3263 = vmul.f32 %v2881, %v3134
    %v3264 = vmul.f32 %v2882, %v3138
    %v3265 = vmul.f32 %v2883, %v3142
    %v3266 = vmul.f32 %v2884, %v3146
    %v3267 = vpack.c.bf16 %v3192, %v3187
    %v3268 = vpack.c.bf16 %v3193, %v3188
    %v3269 = vpack.c.bf16 %v3194, %v3189
    %v3270 = vpack.c.bf16 %v3195, %v3190
    %v3271 = vpack.c.bf16 %v3196, %v3191
    %v3272 = vpack.c.bf16 %v3202, %v3197
    %v3273 = vpack.c.bf16 %v3203, %v3198
    %v3274 = vpack.c.bf16 %v3204, %v3199
    %v3275 = vpack.c.bf16 %v3205, %v3200
    %v3276 = vpack.c.bf16 %v3206, %v3201
    %v3277 = vpack.c.bf16 %v3212, %v3207
    %v3278 = vpack.c.bf16 %v3213, %v3208
    %v3279 = vpack.c.bf16 %v3214, %v3209
    %v3280 = vpack.c.bf16 %v3215, %v3210
    %v3281 = vpack.c.bf16 %v3216, %v3211
    %v3282 = vpack.c.bf16 %v3222, %v3217
    %v3283 = vpack.c.bf16 %v3223, %v3218
    %v3284 = vpack.c.bf16 %v3224, %v3219
    %v3285 = vpack.c.bf16 %v3225, %v3220
    %v3286 = vpack.c.bf16 %v3226, %v3221
    %v3287 = vpack.c.bf16 %v3232, %v3227
    %v3288 = vpack.c.bf16 %v3233, %v3228
    %v3289 = vpack.c.bf16 %v3234, %v3229
    %v3290 = vpack.c.bf16 %v3235, %v3230
    %v3291 = vpack.c.bf16 %v3236, %v3231
    %v3292 = vpack.c.bf16 %v3242, %v3237
    %v3293 = vpack.c.bf16 %v3243, %v3238
    %v3294 = vpack.c.bf16 %v3244, %v3239
    %v3295 = vpack.c.bf16 %v3245, %v3240
    %v3296 = vpack.c.bf16 %v3246, %v3241
    %v3297 = vpack.c.bf16 %v3252, %v3247
    %v3298 = vpack.c.bf16 %v3253, %v3248
    %v3299 = vpack.c.bf16 %v3254, %v3249
    %v3300 = vpack.c.bf16 %v3255, %v3250
    %v3301 = vpack.c.bf16 %v3256, %v3251
    %v3302 = vpack.c.bf16 %v3262, %v3257
    %v3303 = vpack.c.bf16 %v3263, %v3258
    %v3304 = vpack.c.bf16 %v3264, %v3259
    %v3305 = vpack.c.bf16 %v3265, %v3260
    %v3306 = vpack.c.bf16 %v3266, %v3261
    %v3307 = vld [vmem:[#allocation7] sm:$0xf]
    %v3308 = vld [vmem:[#allocation7 + $0x4] sm:$0xf]
    %v3309 = vld [vmem:[#allocation7 + $0x8] sm:$0xf]
    %v3310 = vld [vmem:[#allocation7 + $0xc] sm:$0xf]
    %v3311 = vld [vmem:[#allocation7 + $0x10] sm:$0xf]
    %v3312 = vld [vmem:[#allocation7 + $0x14] sm:$0xf]
    %v3313 = vld [vmem:[#allocation7 + $0x18] sm:$0xf]
    %v3314 = vld [vmem:[#allocation7 + $0x1c] sm:$0xf]
    %v3315 = vld [vmem:[#allocation7 + $0x20] sm:$0xf]
    %v3316 = vld [vmem:[#allocation7 + $0x24] sm:$0xf]
    %v3317 = vld [vmem:[#allocation7 + $0x28] sm:$0xf]
    %v3318 = vld [vmem:[#allocation7 + $0x2c] sm:$0xf]
    %v3319 = vld [vmem:[#allocation7 + $0x30] sm:$0xf]
    %v3320 = vld [vmem:[#allocation7 + $0x34] sm:$0xf]
    %v3321 = vld [vmem:[#allocation7 + $0x38] sm:$0xf]
    %v3322 = vld [vmem:[#allocation7 + $0x3c] sm:$0xf]
    %v3323 = vld [vmem:[#allocation7 + $0x40] sm:$0xf]
    %v3324 = vld [vmem:[#allocation7 + $0x44] sm:$0xf]
    %v3325 = vld [vmem:[#allocation7 + $0x48] sm:$0xf]
    %v3326 = vld [vmem:[#allocation7 + $0x4c] sm:$0xf]
    %v3327 = vld [vmem:[#allocation7 + $0x50] sm:$0xf]
    %v3328 = vld [vmem:[#allocation7 + $0x54] sm:$0xf]
    %v3329 = vld [vmem:[#allocation7 + $0x58] sm:$0xf]
    %v3330 = vld [vmem:[#allocation7 + $0x5c] sm:$0xf]
    %v3331 = vld [vmem:[#allocation7 + $0x60] sm:$0xf]
    %v3332 = vld [vmem:[#allocation7 + $0x64] sm:$0xf]
    %v3333 = vld [vmem:[#allocation7 + $0x68] sm:$0xf]
    %v3334 = vld [vmem:[#allocation7 + $0x6c] sm:$0xf]
    %v3335 = vld [vmem:[#allocation7 + $0x70] sm:$0xf]
    %v3336 = vld [vmem:[#allocation7 + $0x74] sm:$0xf]
    %v3337 = vld [vmem:[#allocation7 + $0x78] sm:$0xf]
    %v3338 = vld [vmem:[#allocation7 + $0x7c] sm:$0xf]
    %v3339 = vld [vmem:[#allocation7 + $0x80] sm:$0xf]
    %v3340 = vld [vmem:[#allocation7 + $0x84] sm:$0xf]
    %v3341 = vld [vmem:[#allocation7 + $0x88] sm:$0xf]
    %v3342 = vld [vmem:[#allocation7 + $0x8c] sm:$0xf]
    %v3343 = vld [vmem:[#allocation7 + $0x90] sm:$0xf]
    %v3344 = vld [vmem:[#allocation7 + $0x94] sm:$0xf]
    %v3345 = vld [vmem:[#allocation7 + $0x98] sm:$0xf]
    %v3346 = vld [vmem:[#allocation7 + $0x9c] sm:$0xf]
    %v3347 = vld [vmem:[#allocation7 + $0xa0] sm:$0xf]
    %v3348 = vld [vmem:[#allocation7 + $0xa4] sm:$0xf]
    %v3349 = vld [vmem:[#allocation7 + $0xa8] sm:$0xf]
    %v3350 = vld [vmem:[#allocation7 + $0xac] sm:$0xf]
    %v3351 = vld [vmem:[#allocation7 + $0xb0] sm:$0xf]
    %v3352 = vld [vmem:[#allocation7 + $0xb4] sm:$0xf]
    %v3353 = vld [vmem:[#allocation7 + $0xb8] sm:$0xf]
    %v3354 = vld [vmem:[#allocation7 + $0xbc] sm:$0xf]
    %v3355 = vld [vmem:[#allocation7 + $0xc0] sm:$0xf]
    %v3356 = vld [vmem:[#allocation7 + $0xc4] sm:$0xf]
    %v3357 = vld [vmem:[#allocation7 + $0xc8] sm:$0xf]
    %v3358 = vld [vmem:[#allocation7 + $0xcc] sm:$0xf]
    %v3359 = vld [vmem:[#allocation7 + $0xd0] sm:$0xf]
    %v3360 = vld [vmem:[#allocation7 + $0xd4] sm:$0xf]
    %v3361 = vld [vmem:[#allocation7 + $0xd8] sm:$0xf]
    %v3362 = vld [vmem:[#allocation7 + $0xdc] sm:$0xf]
    %v3363 = vld [vmem:[#allocation7 + $0xe0] sm:$0xf]
    %v3364 = vld [vmem:[#allocation7 + $0xe4] sm:$0xf]
    %v3365 = vld [vmem:[#allocation7 + $0xe8] sm:$0xf]
    %v3366 = vld [vmem:[#allocation7 + $0xec] sm:$0xf]
    %v3367 = vld [vmem:[#allocation7 + $0xf0] sm:$0xf]
    %v3368 = vld [vmem:[#allocation7 + $0xf4] sm:$0xf]
    %v3369 = vld [vmem:[#allocation7 + $0xf8] sm:$0xf]
    %v3370 = vld [vmem:[#allocation7 + $0xfc] sm:$0xf]
    %v3371 = vld [vmem:[#allocation7 + $0x100] sm:$0xf]
    %v3372 = vld [vmem:[#allocation7 + $0x104] sm:$0xf]
    %v3373 = vld [vmem:[#allocation7 + $0x108] sm:$0xf]
    %v3374 = vld [vmem:[#allocation7 + $0x10c] sm:$0xf]
    %v3375 = vld [vmem:[#allocation7 + $0x110] sm:$0xf]
    %v3376 = vld [vmem:[#allocation7 + $0x114] sm:$0xf]
    %v3377 = vld [vmem:[#allocation7 + $0x118] sm:$0xf]
    %v3378 = vld [vmem:[#allocation7 + $0x11c] sm:$0xf]
    %v3451 = vunpack.c.l.b16 %v3307
    %v3452 = vunpack.c.l.b16 %v3308
    %v3453 = vunpack.c.l.b16 %v3309
    %v3454 = vunpack.c.l.b16 %v3310
    %v3455 = vunpack.c.l.b16 %v3311
    %v3456 = vunpack.c.l.b16 %v3312
    %v3457 = vunpack.c.l.b16 %v3313
    %v3458 = vunpack.c.l.b16 %v3314
    %v3459 = vunpack.c.l.b16 %v3315
    %v3460 = vunpack.c.l.b16 %v3316
    %v3461 = vunpack.c.l.b16 %v3317
    %v3462 = vunpack.c.l.b16 %v3318
    %v3463 = vunpack.c.l.b16 %v3319
    %v3464 = vunpack.c.l.b16 %v3320
    %v3465 = vunpack.c.l.b16 %v3321
    %v3466 = vunpack.c.l.b16 %v3322
    %v3467 = vunpack.c.l.b16 %v3323
    %v3468 = vunpack.c.l.b16 %v3324
    %v3469 = vunpack.c.l.b16 %v3325
    %v3470 = vunpack.c.l.b16 %v3326
    %v3471 = vunpack.c.l.b16 %v3327
    %v3472 = vunpack.c.l.b16 %v3328
    %v3473 = vunpack.c.l.b16 %v3329
    %v3474 = vunpack.c.l.b16 %v3330
    %v3475 = vunpack.c.l.b16 %v3331
    %v3476 = vunpack.c.l.b16 %v3332
    %v3477 = vunpack.c.l.b16 %v3333
    %v3478 = vunpack.c.l.b16 %v3334
    %v3479 = vunpack.c.l.b16 %v3335
    %v3480 = vunpack.c.l.b16 %v3336
    %v3481 = vunpack.c.l.b16 %v3337
    %v3482 = vunpack.c.l.b16 %v3338
    %v3483 = vunpack.c.l.b16 %v3339
    %v3484 = vunpack.c.l.b16 %v3340
    %v3485 = vunpack.c.l.b16 %v3341
    %v3486 = vunpack.c.l.b16 %v3342
    %v3487 = vunpack.c.l.b16 %v3343
    %v3488 = vunpack.c.l.b16 %v3344
    %v3489 = vunpack.c.l.b16 %v3345
    %v3490 = vunpack.c.l.b16 %v3346
    %v3491 = vunpack.c.l.b16 %v3347
    %v3492 = vunpack.c.l.b16 %v3348
    %v3493 = vunpack.c.l.b16 %v3349
    %v3494 = vunpack.c.l.b16 %v3350
    %v3495 = vunpack.c.l.b16 %v3351
    %v3496 = vunpack.c.l.b16 %v3352
    %v3497 = vunpack.c.l.b16 %v3353
    %v3498 = vunpack.c.l.b16 %v3354
    %v3499 = vunpack.c.l.b16 %v3355
    %v3500 = vunpack.c.l.b16 %v3356
    %v3501 = vunpack.c.l.b16 %v3357
    %v3502 = vunpack.c.l.b16 %v3358
    %v3503 = vunpack.c.l.b16 %v3359
    %v3504 = vunpack.c.l.b16 %v3360
    %v3505 = vunpack.c.l.b16 %v3361
    %v3506 = vunpack.c.l.b16 %v3362
    %v3507 = vunpack.c.l.b16 %v3363
    %v3508 = vunpack.c.l.b16 %v3364
    %v3509 = vunpack.c.l.b16 %v3365
    %v3510 = vunpack.c.l.b16 %v3366
    %v3511 = vunpack.c.l.b16 %v3367
    %v3512 = vunpack.c.l.b16 %v3368
    %v3513 = vunpack.c.l.b16 %v3369
    %v3514 = vunpack.c.l.b16 %v3370
    %v3515 = vunpack.c.l.b16 %v3371
    %v3516 = vunpack.c.l.b16 %v3372
    %v3517 = vunpack.c.l.b16 %v3373
    %v3518 = vunpack.c.l.b16 %v3374
    %v3519 = vunpack.c.l.b16 %v3375
    %v3520 = vunpack.c.l.b16 %v3376
    %v3521 = vunpack.c.l.b16 %v3377
    %v3522 = vunpack.c.l.b16 %v3378
    %v3523 = vpack.c.b16 %v3452, %v3451
    %v3524 = vpack.c.b16 %v3454, %v3453
    %v3525 = vpack.c.b16 %v3456, %v3455
    %v3526 = vpack.c.b16 %v3458, %v3457
    %v3527 = vpack.c.b16 %v3460, %v3459
    %v3528 = vpack.c.b16 %v3462, %v3461
    %v3529 = vpack.c.b16 %v3464, %v3463
    %v3530 = vpack.c.b16 %v3466, %v3465
    %v3531 = vpack.c.b16 %v3468, %v3467
    %v3532 = vpack.c.b16 %v3470, %v3469
    %v3533 = vpack.c.b16 %v3472, %v3471
    %v3534 = vpack.c.b16 %v3474, %v3473
    %v3535 = vpack.c.b16 %v3476, %v3475
    %v3536 = vpack.c.b16 %v3478, %v3477
    %v3537 = vpack.c.b16 %v3480, %v3479
    %v3538 = vpack.c.b16 %v3482, %v3481
    %v3539 = vpack.c.b16 %v3484, %v3483
    %v3540 = vpack.c.b16 %v3486, %v3485
    %v3541 = vpack.c.b16 %v3488, %v3487
    %v3542 = vpack.c.b16 %v3490, %v3489
    %v3543 = vpack.c.b16 %v3492, %v3491
    %v3544 = vpack.c.b16 %v3494, %v3493
    %v3545 = vpack.c.b16 %v3496, %v3495
    %v3546 = vpack.c.b16 %v3498, %v3497
    %v3547 = vpack.c.b16 %v3500, %v3499
    %v3548 = vpack.c.b16 %v3502, %v3501
    %v3549 = vpack.c.b16 %v3504, %v3503
    %v3550 = vpack.c.b16 %v3506, %v3505
    %v3551 = vpack.c.b16 %v3508, %v3507
    %v3552 = vpack.c.b16 %v3510, %v3509
    %v3553 = vpack.c.b16 %v3512, %v3511
    %v3554 = vpack.c.b16 %v3514, %v3513
    %v3555 = vpack.c.b16 %v3516, %v3515
    %v3556 = vpack.c.b16 %v3518, %v3517
    %v3557 = vpack.c.b16 %v3520, %v3519
    %v3558 = vpack.c.b16 %v3522, %v3521
    %v3596 = vsel %vm2789, %v3271, 0
    %v3599 = vsel %vm2789, %v3276, 0
    %v3602 = vsel %vm2789, %v3281, 0
    %v3605 = vsel %vm2789, %v3286, 0
    %v3608 = vsel %vm2789, %v3291, 0
    %v3611 = vsel %vm2789, %v3296, 0
    %v3614 = vsel %vm2789, %v3301, 0
    %v3617 = vsel %vm2789, %v3306, 0
    %3619 = vmatprep.subr.bf16.mxu0 0
    %3620 = vmatpush1.bf16.msra.mxu0 %v3530
    %3621 = vmatprep.subr.bf16.mxu0 0
    %3622 = vmatpush1.bf16.msra.mxu0 %v3529
    %3623 = vmatprep.subr.bf16.mxu0 0
    %3624 = vmatpush1.bf16.msra.mxu0 %v3528
    %3625 = vmatprep.subr.bf16.mxu0 0
    %3626 = vmatpush1.bf16.msra.mxu0 %v3527
    %3627 = vmatprep.subr.bf16.mxu0 0
    %3628 = vmatpush1.bf16.msra.mxu0 %v3526
    %3629 = vmatprep.subr.bf16.mxu0 0
    %3630 = vmatpush1.bf16.msra.mxu0 %v3525
    %3631 = vmatprep.subr.bf16.mxu0 0
    %3632 = vmatpush1.bf16.msra.mxu0 %v3524
    %3633 = vmatprep.subr.bf16.mxu0 0
    %3634 = vmatpush1.bf16.msra.mxu0 %v3523
    %3635 = vmatprep.subr.bf16.mxu0 0
    %3636 = vmatpush2.bf16.msra.mxu0 %v3538
    %3637 = vmatprep.subr.bf16.mxu0 0
    %3638 = vmatpush2.bf16.msra.mxu0 %v3537
    %3639 = vmatprep.subr.bf16.mxu0 0
    %3640 = vmatpush2.bf16.msra.mxu0 %v3536
    %3641 = vmatprep.subr.bf16.mxu0 0
    %3642 = vmatpush2.bf16.msra.mxu0 %v3535
    %3643 = vmatprep.subr.bf16.mxu0 0
    %3644 = vmatpush2.bf16.msra.mxu0 %v3534
    %3645 = vmatprep.subr.bf16.mxu0 0
    %3646 = vmatpush2.bf16.msra.mxu0 %v3533
    %3647 = vmatprep.subr.bf16.mxu0 0
    %3648 = vmatpush2.bf16.msra.mxu0 %v3532
    %3649 = vmatprep.subr.bf16.mxu0 0
    %3650 = vmatpush2.bf16.msra.mxu0 %v3531
    %3651 = vmatprep.mubr.bf16.mxu0 %v3268
    %3652 = vmatmul.mubr.bf16.gmra.mxu0 %v3267
    %v3653 = vpop.f32.mrf.mxu0
    %v3654 = vadd.f32 0.0, %v3653
    %v3655 = vpop.f32.mrf.mxu0
    %v3656 = vpop.f32.mrf.mxu0
    %v3657 = vadd.f32 0.0, %v3656
    %v3658 = vpop.f32.mrf.mxu0
    %3659 = vmatprep.mubr.bf16.mxu0 %v3273
    %3660 = vmatmul.mubr.bf16.gmra.mxu0 %v3272
    %v3661 = vpop.f32.mrf.mxu0
    %v3662 = vadd.f32 0.0, %v3661
    %v3663 = vpop.f32.mrf.mxu0
    %v3664 = vpop.f32.mrf.mxu0
    %v3665 = vadd.f32 0.0, %v3664
    %v3666 = vpop.f32.mrf.mxu0
    %3667 = vmatprep.mubr.bf16.mxu0 %v3278
    %3668 = vmatmul.mubr.bf16.gmra.mxu0 %v3277
    %v3669 = vpop.f32.mrf.mxu0
    %v3670 = vadd.f32 0.0, %v3669
    %v3671 = vpop.f32.mrf.mxu0
    %v3672 = vpop.f32.mrf.mxu0
    %v3673 = vadd.f32 0.0, %v3672
    %v3674 = vpop.f32.mrf.mxu0
    %3675 = vmatprep.mubr.bf16.mxu0 %v3283
    %3676 = vmatmul.mubr.bf16.gmra.mxu0 %v3282
    %v3677 = vpop.f32.mrf.mxu0
    %v3678 = vadd.f32 0.0, %v3677
    %v3679 = vpop.f32.mrf.mxu0
    %v3680 = vpop.f32.mrf.mxu0
    %v3681 = vadd.f32 0.0, %v3680
    %v3682 = vpop.f32.mrf.mxu0
    %3683 = vmatprep.mubr.bf16.mxu0 %v3288
    %3684 = vmatmul.mubr.bf16.gmra.mxu0 %v3287
    %v3685 = vpop.f32.mrf.mxu0
    %v3686 = vadd.f32 0.0, %v3685
    %v3687 = vpop.f32.mrf.mxu0
    %v3688 = vpop.f32.mrf.mxu0
    %v3689 = vadd.f32 0.0, %v3688
    %v3690 = vpop.f32.mrf.mxu0
    %3691 = vmatprep.mubr.bf16.mxu0 %v3293
    %3692 = vmatmul.mubr.bf16.gmra.mxu0 %v3292
    %v3693 = vpop.f32.mrf.mxu0
    %v3694 = vadd.f32 0.0, %v3693
    %v3695 = vpop.f32.mrf.mxu0
    %v3696 = vpop.f32.mrf.mxu0
    %v3697 = vadd.f32 0.0, %v3696
    %v3698 = vpop.f32.mrf.mxu0
    %3699 = vmatprep.mubr.bf16.mxu0 %v3298
    %3700 = vmatmul.mubr.bf16.gmra.mxu0 %v3297
    %v3701 = vpop.f32.mrf.mxu0
    %v3702 = vadd.f32 0.0, %v3701
    %v3703 = vpop.f32.mrf.mxu0
    %v3704 = vpop.f32.mrf.mxu0
    %v3705 = vadd.f32 0.0, %v3704
    %v3706 = vpop.f32.mrf.mxu0
    %3707 = vmatprep.mubr.bf16.mxu0 %v3303
    %3708 = vmatmul.mubr.bf16.gmra.mxu0 %v3302
    %v3709 = vpop.f32.mrf.mxu0
    %v3710 = vadd.f32 0.0, %v3709
    %v3711 = vpop.f32.mrf.mxu0
    %v3712 = vpop.f32.mrf.mxu0
    %v3713 = vadd.f32 0.0, %v3712
    %v3714 = vpop.f32.mrf.mxu0
    %3715 = vdwg.mxu0
    %3716 = vmatprep.subr.bf16.mxu0 0
    %3717 = vmatpush1.bf16.msra.mxu0 %v3546
    %3718 = vmatprep.subr.bf16.mxu0 0
    %3719 = vmatpush1.bf16.msra.mxu0 %v3545
    %3720 = vmatprep.subr.bf16.mxu0 0
    %3721 = vmatpush1.bf16.msra.mxu0 %v3544
    %3722 = vmatprep.subr.bf16.mxu0 0
    %3723 = vmatpush1.bf16.msra.mxu0 %v3543
    %3724 = vmatprep.subr.bf16.mxu0 0
    %3725 = vmatpush1.bf16.msra.mxu0 %v3542
    %3726 = vmatprep.subr.bf16.mxu0 0
    %3727 = vmatpush1.bf16.msra.mxu0 %v3541
    %3728 = vmatprep.subr.bf16.mxu0 0
    %3729 = vmatpush1.bf16.msra.mxu0 %v3540
    %3730 = vmatprep.subr.bf16.mxu0 0
    %3731 = vmatpush1.bf16.msra.mxu0 %v3539
    %3732 = vmatprep.subr.bf16.mxu0 0
    %3733 = vmatpush2.bf16.msra.mxu0 %v3554
    %3734 = vmatprep.subr.bf16.mxu0 0
    %3735 = vmatpush2.bf16.msra.mxu0 %v3553
    %3736 = vmatprep.subr.bf16.mxu0 0
    %3737 = vmatpush2.bf16.msra.mxu0 %v3552
    %3738 = vmatprep.subr.bf16.mxu0 0
    %3739 = vmatpush2.bf16.msra.mxu0 %v3551
    %3740 = vmatprep.subr.bf16.mxu0 0
    %3741 = vmatpush2.bf16.msra.mxu0 %v3550
    %3742 = vmatprep.subr.bf16.mxu0 0
    %3743 = vmatpush2.bf16.msra.mxu0 %v3549
    %3744 = vmatprep.subr.bf16.mxu0 0
    %3745 = vmatpush2.bf16.msra.mxu0 %v3548
    %3746 = vmatprep.subr.bf16.mxu0 0
    %3747 = vmatpush2.bf16.msra.mxu0 %v3547
    %3748 = vmatprep.mubr.bf16.mxu0 %v3270
    %3749 = vmatmul.mubr.bf16.gmra.mxu0 %v3269
    %v3750 = vpop.f32.mrf.mxu0
    %v3751 = vadd.f32 %v3654, %v3750
    %v3752 = vpop.f32.mrf.mxu0
    %v3753 = vpop.f32.mrf.mxu0
    %v3754 = vadd.f32 %v3657, %v3753
    %v3755 = vpop.f32.mrf.mxu0
    %3756 = vmatprep.mubr.bf16.mxu0 %v3275
    %3757 = vmatmul.mubr.bf16.gmra.mxu0 %v3274
    %v3758 = vpop.f32.mrf.mxu0
    %v3759 = vadd.f32 %v3662, %v3758
    %v3760 = vpop.f32.mrf.mxu0
    %v3761 = vpop.f32.mrf.mxu0
    %v3762 = vadd.f32 %v3665, %v3761
    %v3763 = vpop.f32.mrf.mxu0
    %3764 = vmatprep.mubr.bf16.mxu0 %v3280
    %3765 = vmatmul.mubr.bf16.gmra.mxu0 %v3279
    %v3766 = vpop.f32.mrf.mxu0
    %v3767 = vadd.f32 %v3670, %v3766
    %v3768 = vpop.f32.mrf.mxu0
    %v3769 = vpop.f32.mrf.mxu0
    %v3770 = vadd.f32 %v3673, %v3769
    %v3771 = vpop.f32.mrf.mxu0
    %3772 = vmatprep.mubr.bf16.mxu0 %v3285
    %3773 = vmatmul.mubr.bf16.gmra.mxu0 %v3284
    %v3774 = vpop.f32.mrf.mxu0
    %v3775 = vadd.f32 %v3678, %v3774
    %v3776 = vpop.f32.mrf.mxu0
    %v3777 = vpop.f32.mrf.mxu0
    %v3778 = vadd.f32 %v3681, %v3777
    %v3779 = vpop.f32.mrf.mxu0
    %3780 = vmatprep.mubr.bf16.mxu0 %v3290
    %3781 = vmatmul.mubr.bf16.gmra.mxu0 %v3289
    %v3782 = vpop.f32.mrf.mxu0
    %v3783 = vadd.f32 %v3686, %v3782
    %v3784 = vpop.f32.mrf.mxu0
    %v3785 = vpop.f32.mrf.mxu0
    %v3786 = vadd.f32 %v3689, %v3785
    %v3787 = vpop.f32.mrf.mxu0
    %3788 = vmatprep.mubr.bf16.mxu0 %v3295
    %3789 = vmatmul.mubr.bf16.gmra.mxu0 %v3294
    %v3790 = vpop.f32.mrf.mxu0
    %v3791 = vadd.f32 %v3694, %v3790
    %v3792 = vpop.f32.mrf.mxu0
    %v3793 = vpop.f32.mrf.mxu0
    %v3794 = vadd.f32 %v3697, %v3793
    %v3795 = vpop.f32.mrf.mxu0
    %3796 = vmatprep.mubr.bf16.mxu0 %v3300
    %3797 = vmatmul.mubr.bf16.gmra.mxu0 %v3299
    %v3798 = vpop.f32.mrf.mxu0
    %v3799 = vadd.f32 %v3702, %v3798
    %v3800 = vpop.f32.mrf.mxu0
    %v3801 = vpop.f32.mrf.mxu0
    %v3802 = vadd.f32 %v3705, %v3801
    %v3803 = vpop.f32.mrf.mxu0
    %3804 = vmatprep.mubr.bf16.mxu0 %v3305
    %3805 = vmatmul.mubr.bf16.gmra.mxu0 %v3304
    %v3806 = vpop.f32.mrf.mxu0
    %v3807 = vadd.f32 %v3710, %v3806
    %v3808 = vpop.f32.mrf.mxu0
    %v3809 = vpop.f32.mrf.mxu0
    %v3810 = vadd.f32 %v3713, %v3809
    %v3811 = vpop.f32.mrf.mxu0
    %3812 = vdwg.mxu0
    %3813 = vmatprep.subr.bf16.mxu0 0
    %3814 = vmatpush1.bf16.msra.mxu0 0
    %3815 = vmatprep.subr.bf16.mxu0 0
    %3816 = vmatpush1.bf16.msra.mxu0 0
    %3817 = vmatprep.subr.bf16.mxu0 0
    %3818 = vmatpush1.bf16.msra.mxu0 0
    %3819 = vmatprep.subr.bf16.mxu0 0
    %3820 = vmatpush1.bf16.msra.mxu0 0
    %3821 = vmatprep.subr.bf16.mxu0 0
    %3822 = vmatpush1.bf16.msra.mxu0 %v3558
    %3823 = vmatprep.subr.bf16.mxu0 0
    %3824 = vmatpush1.bf16.msra.mxu0 %v3557
    %3825 = vmatprep.subr.bf16.mxu0 0
    %3826 = vmatpush1.bf16.msra.mxu0 %v3556
    %3827 = vmatprep.subr.bf16.mxu0 0
    %3828 = vmatpush1.bf16.msra.mxu0 %v3555
    %3829 = vmatprep.subr.bf16.mxu0 0
    %3830 = vmatpush2.bf16.msra.mxu0 0
    %3831 = vmatprep.subr.bf16.mxu0 0
    %3832 = vmatpush2.bf16.msra.mxu0 0
    %3833 = vmatprep.subr.bf16.mxu0 0
    %3834 = vmatpush2.bf16.msra.mxu0 0
    %3835 = vmatprep.subr.bf16.mxu0 0
    %3836 = vmatpush2.bf16.msra.mxu0 0
    %3837 = vmatprep.subr.bf16.mxu0 0
    %3838 = vmatpush2.bf16.msra.mxu0 0
    %3839 = vmatprep.subr.bf16.mxu0 0
    %3840 = vmatpush2.bf16.msra.mxu0 0
    %3841 = vmatprep.subr.bf16.mxu0 0
    %3842 = vmatpush2.bf16.msra.mxu0 0
    %3843 = vmatprep.subr.bf16.mxu0 0
    %3844 = vmatpush2.bf16.msra.mxu0 0
    %3845 = vmatprep.mubr.bf16.mxu0 0
    %3846 = vmatmul.mubr.bf16.gmra.mxu0 %v3596
    %v3847 = vpop.f32.mrf.mxu0
    %v3848 = vadd.f32 %v3751, %v3847
    %v3849 = vpop.f32.mrf.mxu0
    %v3850 = vpop.f32.mrf.mxu0
    %v3851 = vadd.f32 %v3754, %v3850
    %v3852 = vpop.f32.mrf.mxu0
    %3853 = vmatprep.mubr.bf16.mxu0 0
    %3854 = vmatmul.mubr.bf16.gmra.mxu0 %v3599
    %v3855 = vpop.f32.mrf.mxu0
    %v3856 = vadd.f32 %v3759, %v3855
    %v3857 = vpop.f32.mrf.mxu0
    %v3858 = vpop.f32.mrf.mxu0
    %v3859 = vadd.f32 %v3762, %v3858
    %v3860 = vpop.f32.mrf.mxu0
    %3861 = vmatprep.mubr.bf16.mxu0 0
    %3862 = vmatmul.mubr.bf16.gmra.mxu0 %v3602
    %v3863 = vpop.f32.mrf.mxu0
    %v3864 = vadd.f32 %v3767, %v3863
    %v3865 = vpop.f32.mrf.mxu0
    %v3866 = vpop.f32.mrf.mxu0
    %v3867 = vadd.f32 %v3770, %v3866
    %v3868 = vpop.f32.mrf.mxu0
    %3869 = vmatprep.mubr.bf16.mxu0 0
    %3870 = vmatmul.mubr.bf16.gmra.mxu0 %v3605
    %v3871 = vpop.f32.mrf.mxu0
    %v3872 = vadd.f32 %v3775, %v3871
    %v3873 = vpop.f32.mrf.mxu0
    %v3874 = vpop.f32.mrf.mxu0
    %v3875 = vadd.f32 %v3778, %v3874
    %v3876 = vpop.f32.mrf.mxu0
    %3877 = vmatprep.mubr.bf16.mxu0 0
    %3878 = vmatmul.mubr.bf16.gmra.mxu0 %v3608
    %v3879 = vpop.f32.mrf.mxu0
    %v3880 = vadd.f32 %v3783, %v3879
    %v3881 = vpop.f32.mrf.mxu0
    %v3882 = vpop.f32.mrf.mxu0
    %v3883 = vadd.f32 %v3786, %v3882
    %v3884 = vpop.f32.mrf.mxu0
    %3885 = vmatprep.mubr.bf16.mxu0 0
    %3886 = vmatmul.mubr.bf16.gmra.mxu0 %v3611
    %v3887 = vpop.f32.mrf.mxu0
    %v3888 = vadd.f32 %v3791, %v3887
    %v3889 = vpop.f32.mrf.mxu0
    %v3890 = vpop.f32.mrf.mxu0
    %v3891 = vadd.f32 %v3794, %v3890
    %v3892 = vpop.f32.mrf.mxu0
    %3893 = vmatprep.mubr.bf16.mxu0 0
    %3894 = vmatmul.mubr.bf16.gmra.mxu0 %v3614
    %v3895 = vpop.f32.mrf.mxu0
    %v3896 = vadd.f32 %v3799, %v3895
    %v3897 = vpop.f32.mrf.mxu0
    %v3898 = vpop.f32.mrf.mxu0
    %v3899 = vadd.f32 %v3802, %v3898
    %v3900 = vpop.f32.mrf.mxu0
    %3901 = vmatprep.mubr.bf16.mxu0 0
    %3902 = vmatmul.mubr.bf16.gmra.mxu0 %v3617
    %v3903 = vpop.f32.mrf.mxu0
    %v3904 = vadd.f32 %v3807, %v3903
    %v3905 = vpop.f32.mrf.mxu0
    %v3906 = vpop.f32.mrf.mxu0
    %v3907 = vadd.f32 %v3810, %v3906
    %v3908 = vpop.f32.mrf.mxu0
    %3909 = vdwg.mxu0
    %v3911 = vcombine.high %v2863, %v2863
    %v3913 = vunpack.c.l.s4 1966171168
    %v3914 = vunpack.c.0.s8 %v3913
    %v3915 = vlaneseq
    %v3916 = vshrl.u32 %v3915, 7
    %v3917 = vsub.s32 %v3914, %v3916
    %v3918 = vrot.slane %v2863, %v3917
    %v3920 = vunpack.c.l.s4 1966171168
    %v3921 = vunpack.c.0.s8 %v3920
    %v3922 = vlaneseq
    %v3923 = vshrl.u32 %v3922, 7
    %v3924 = vsub.s32 %v3921, %v3923
    %v3925 = vrot.slane %v3911, %v3924
    %v3926 = vcombine.high %v3918, %v3918
    %v3927 = vcombine.high %v3925, %v3925
    %v3929 = vunpack.c.l.s4 1966171168
    %v3930 = vunpack.c.0.s8 %v3929
    %v3931 = vlaneseq
    %v3932 = vshrl.u32 %v3931, 7
    %v3933 = vsub.s32 %v3930, %v3932
    %v3934 = vrot.slane %v3918, %v3933
    %v3936 = vunpack.c.l.s4 1966171168
    %v3937 = vunpack.c.0.s8 %v3936
    %v3938 = vlaneseq
    %v3939 = vshrl.u32 %v3938, 7
    %v3940 = vsub.s32 %v3937, %v3939
    %v3941 = vrot.slane %v3925, %v3940
    %v3943 = vunpack.c.l.s4 1966171168
    %v3944 = vunpack.c.0.s8 %v3943
    %v3945 = vlaneseq
    %v3946 = vshrl.u32 %v3945, 7
    %v3947 = vsub.s32 %v3944, %v3946
    %v3948 = vrot.slane %v3926, %v3947
    %v3950 = vunpack.c.l.s4 1966171168
    %v3951 = vunpack.c.0.s8 %v3950
    %v3952 = vlaneseq
    %v3953 = vshrl.u32 %v3952, 7
    %v3954 = vsub.s32 %v3951, %v3953
    %v3955 = vrot.slane %v3927, %v3954
    %v3956 = vcombine.high %v3934, %v3934
    %v3957 = vcombine.high %v3941, %v3941
    %v3958 = vcombine.high %v3948, %v3948
    %v3959 = vcombine.high %v3955, %v3955
    %v3960 = vlaneseq
    %v3961 = vshrl.u32 %v3960, 7
    %v3962 = vsub.s32 0, %v3961
    %v3963 = vrot.slane %v3934, %v3962
    %v3964 = vlaneseq
    %v3965 = vshrl.u32 %v3964, 7
    %v3966 = vsub.s32 0, %v3965
    %v3967 = vrot.slane %v3948, %v3966
    %v3968 = vlaneseq
    %v3969 = vshrl.u32 %v3968, 7
    %v3970 = vsub.s32 0, %v3969
    %v3971 = vrot.slane %v3956, %v3970
    %v3972 = vlaneseq
    %v3973 = vshrl.u32 %v3972, 7
    %v3974 = vsub.s32 0, %v3973
    %v3975 = vrot.slane %v3958, %v3974
    %v3976 = vlaneseq
    %v3977 = vshrl.u32 %v3976, 7
    %v3978 = vsub.s32 0, %v3977
    %v3979 = vrot.slane %v3941, %v3978
    %v3980 = vlaneseq
    %v3981 = vshrl.u32 %v3980, 7
    %v3982 = vsub.s32 0, %v3981
    %v3983 = vrot.slane %v3955, %v3982
    %v3984 = vlaneseq
    %v3985 = vshrl.u32 %v3984, 7
    %v3986 = vsub.s32 0, %v3985
    %v3987 = vrot.slane %v3957, %v3986
    %v3988 = vlaneseq
    %v3989 = vshrl.u32 %v3988, 7
    %v3990 = vsub.s32 0, %v3989
    %v3991 = vrot.slane %v3959, %v3990
    %v4000 = vmul.f32 %v3848, %v3963
    %v4001 = vmul.f32 %v3851, %v3963
    %v4002 = vmul.f32 %v3856, %v3967
    %v4003 = vmul.f32 %v3859, %v3967
    %v4004 = vmul.f32 %v3864, %v3971
    %v4005 = vmul.f32 %v3867, %v3971
    %v4006 = vmul.f32 %v3872, %v3975
    %v4007 = vmul.f32 %v3875, %v3975
    %v4008 = vmul.f32 %v3880, %v3979
    %v4009 = vmul.f32 %v3883, %v3979
    %v4010 = vmul.f32 %v3888, %v3983
    %v4011 = vmul.f32 %v3891, %v3983
    %v4012 = vmul.f32 %v3896, %v3987
    %v4013 = vmul.f32 %v3899, %v3987
    %v4014 = vmul.f32 %v3904, %v3991
    %v4015 = vmul.f32 %v3907, %v3991
    %v4016 = vld [vmem:[%s8] sm:$0x1]
    %v4018 = vlaneseq
    %v4019 = vshrl.u32 %v4018, 7
    %v4020 = vsub.s32 0, %v4019
    %v4021 = vrot.slane %v4016, %v4020
    %v4023 = vadd.f32 %v4000, %v4021
    %v4024 = vadd.f32 %v4001, %v4021
    %v4025 = vadd.f32 %v4002, %v4021
    %v4026 = vadd.f32 %v4003, %v4021
    %v4027 = vadd.f32 %v4004, %v4021
    %v4028 = vadd.f32 %v4005, %v4021
    %v4029 = vadd.f32 %v4006, %v4021
    %v4030 = vadd.f32 %v4007, %v4021
    %v4031 = vadd.f32 %v4008, %v4021
    %v4032 = vadd.f32 %v4009, %v4021
    %v4033 = vadd.f32 %v4010, %v4021
    %v4034 = vadd.f32 %v4011, %v4021
    %v4035 = vadd.f32 %v4012, %v4021
    %v4036 = vadd.f32 %v4013, %v4021
    %v4037 = vadd.f32 %v4014, %v4021
    %v4038 = vadd.f32 %v4015, %v4021
    %vm4039 = vcmp.ge.f32.partialorder %v4023, 0.0
    %vm4040 = vcmp.ge.f32.partialorder %v4024, 0.0
    %vm4041 = vcmp.ge.f32.partialorder %v4025, 0.0
    %vm4042 = vcmp.ge.f32.partialorder %v4026, 0.0
    %vm4043 = vcmp.ge.f32.partialorder %v4027, 0.0
    %vm4044 = vcmp.ge.f32.partialorder %v4028, 0.0
    %vm4045 = vcmp.ge.f32.partialorder %v4029, 0.0
    %vm4046 = vcmp.ge.f32.partialorder %v4030, 0.0
    %vm4047 = vcmp.ge.f32.partialorder %v4031, 0.0
    %vm4048 = vcmp.ge.f32.partialorder %v4032, 0.0
    %vm4049 = vcmp.ge.f32.partialorder %v4033, 0.0
    %vm4050 = vcmp.ge.f32.partialorder %v4034, 0.0
    %vm4051 = vcmp.ge.f32.partialorder %v4035, 0.0
    %vm4052 = vcmp.ge.f32.partialorder %v4036, 0.0
    %vm4053 = vcmp.ge.f32.partialorder %v4037, 0.0
    %vm4054 = vcmp.ge.f32.partialorder %v4038, 0.0
    %v4055 = vmul.f32 %v4023, 0.2
    %v4056 = vmul.f32 %v4024, 0.2
    %v4057 = vmul.f32 %v4025, 0.2
    %v4058 = vmul.f32 %v4026, 0.2
    %v4059 = vmul.f32 %v4027, 0.2
    %v4060 = vmul.f32 %v4028, 0.2
    %v4061 = vmul.f32 %v4029, 0.2
    %v4062 = vmul.f32 %v4030, 0.2
    %v4063 = vmul.f32 %v4031, 0.2
    %v4064 = vmul.f32 %v4032, 0.2
    %v4065 = vmul.f32 %v4033, 0.2
    %v4066 = vmul.f32 %v4034, 0.2
    %v4067 = vmul.f32 %v4035, 0.2
    %v4068 = vmul.f32 %v4036, 0.2
    %v4069 = vmul.f32 %v4037, 0.2
    %v4070 = vmul.f32 %v4038, 0.2
    %v4071 = vsel %vm4039, %v4023, %v4055
    %v4072 = vsel %vm4040, %v4024, %v4056
    %v4073 = vsel %vm4041, %v4025, %v4057
    %v4074 = vsel %vm4042, %v4026, %v4058
    %v4075 = vsel %vm4043, %v4027, %v4059
    %v4076 = vsel %vm4044, %v4028, %v4060
    %v4077 = vsel %vm4045, %v4029, %v4061
    %v4078 = vsel %vm4046, %v4030, %v4062
    %v4079 = vsel %vm4047, %v4031, %v4063
    %v4080 = vsel %vm4048, %v4032, %v4064
    %v4081 = vsel %vm4049, %v4033, %v4065
    %v4082 = vsel %vm4050, %v4034, %v4066
    %v4083 = vsel %vm4051, %v4035, %v4067
    %v4084 = vsel %vm4052, %v4036, %v4068
    %v4085 = vsel %vm4053, %v4037, %v4069
    %v4086 = vsel %vm4054, %v4038, %v4070
    %v4088 = vcombine.high %v2775, %v2775
    %v4090 = vunpack.c.l.s4 1966171168
    %v4091 = vunpack.c.0.s8 %v4090
    %v4092 = vlaneseq
    %v4093 = vshrl.u32 %v4092, 7
    %v4094 = vsub.s32 %v4091, %v4093
    %v4095 = vrot.slane %v2775, %v4094
    %v4097 = vunpack.c.l.s4 1966171168
    %v4098 = vunpack.c.0.s8 %v4097
    %v4099 = vlaneseq
    %v4100 = vshrl.u32 %v4099, 7
    %v4101 = vsub.s32 %v4098, %v4100
    %v4102 = vrot.slane %v4088, %v4101
    %v4103 = vcombine.high %v4095, %v4095
    %v4104 = vcombine.high %v4102, %v4102
    %v4106 = vunpack.c.l.s4 1966171168
    %v4107 = vunpack.c.0.s8 %v4106
    %v4108 = vlaneseq
    %v4109 = vshrl.u32 %v4108, 7
    %v4110 = vsub.s32 %v4107, %v4109
    %v4111 = vrot.slane %v4095, %v4110
    %v4113 = vunpack.c.l.s4 1966171168
    %v4114 = vunpack.c.0.s8 %v4113
    %v4115 = vlaneseq
    %v4116 = vshrl.u32 %v4115, 7
    %v4117 = vsub.s32 %v4114, %v4116
    %v4118 = vrot.slane %v4102, %v4117
    %v4120 = vunpack.c.l.s4 1966171168
    %v4121 = vunpack.c.0.s8 %v4120
    %v4122 = vlaneseq
    %v4123 = vshrl.u32 %v4122, 7
    %v4124 = vsub.s32 %v4121, %v4123
    %v4125 = vrot.slane %v4103, %v4124
    %v4127 = vunpack.c.l.s4 1966171168
    %v4128 = vunpack.c.0.s8 %v4127
    %v4129 = vlaneseq
    %v4130 = vshrl.u32 %v4129, 7
    %v4131 = vsub.s32 %v4128, %v4130
    %v4132 = vrot.slane %v4104, %v4131
    %v4133 = vcombine.high %v4111, %v4111
    %v4134 = vcombine.high %v4118, %v4118
    %v4135 = vcombine.high %v4125, %v4125
    %v4136 = vcombine.high %v4132, %v4132
    %v4137 = vlaneseq
    %v4138 = vshrl.u32 %v4137, 7
    %v4139 = vsub.s32 0, %v4138
    %v4140 = vrot.slane %v4111, %v4139
    %v4141 = vlaneseq
    %v4142 = vshrl.u32 %v4141, 7
    %v4143 = vsub.s32 0, %v4142
    %v4144 = vrot.slane %v4125, %v4143
    %v4145 = vlaneseq
    %v4146 = vshrl.u32 %v4145, 7
    %v4147 = vsub.s32 0, %v4146
    %v4148 = vrot.slane %v4133, %v4147
    %v4149 = vlaneseq
    %v4150 = vshrl.u32 %v4149, 7
    %v4151 = vsub.s32 0, %v4150
    %v4152 = vrot.slane %v4135, %v4151
    %v4153 = vlaneseq
    %v4154 = vshrl.u32 %v4153, 7
    %v4155 = vsub.s32 0, %v4154
    %v4156 = vrot.slane %v4118, %v4155
    %v4157 = vlaneseq
    %v4158 = vshrl.u32 %v4157, 7
    %v4159 = vsub.s32 0, %v4158
    %v4160 = vrot.slane %v4132, %v4159
    %v4161 = vlaneseq
    %v4162 = vshrl.u32 %v4161, 7
    %v4163 = vsub.s32 0, %v4162
    %v4164 = vrot.slane %v4134, %v4163
    %v4165 = vlaneseq
    %v4166 = vshrl.u32 %v4165, 7
    %v4167 = vsub.s32 0, %v4166
    %v4168 = vrot.slane %v4136, %v4167
    %v4177 = vmul.f32 %v4071, %v4140
    %v4178 = vmul.f32 %v4072, %v4140
    %v4179 = vmul.f32 %v4073, %v4144
    %v4180 = vmul.f32 %v4074, %v4144
    %v4181 = vmul.f32 %v4075, %v4148
    %v4182 = vmul.f32 %v4076, %v4148
    %v4183 = vmul.f32 %v4077, %v4152
    %v4184 = vmul.f32 %v4078, %v4152
    %v4185 = vmul.f32 %v4079, %v4156
    %v4186 = vmul.f32 %v4080, %v4156
    %v4187 = vmul.f32 %v4081, %v4160
    %v4188 = vmul.f32 %v4082, %v4160
    %v4189 = vmul.f32 %v4083, %v4164
    %v4190 = vmul.f32 %v4084, %v4164
    %v4191 = vmul.f32 %v4085, %v4168
    %v4192 = vmul.f32 %v4086, %v4168
    %v4193 = vpack.c.bf16 %v4178, %v4177
    %v4194 = vpack.c.bf16 %v4180, %v4179
    %v4195 = vpack.c.bf16 %v4182, %v4181
    %v4196 = vpack.c.bf16 %v4184, %v4183
    %v4197 = vpack.c.bf16 %v4186, %v4185
    %v4198 = vpack.c.bf16 %v4188, %v4187
    %v4199 = vpack.c.bf16 %v4190, %v4189
    %v4200 = vpack.c.bf16 %v4192, %v4191
    %v4201 = vld [vmem:[#allocation10] sm:$0xf]
    %v4202 = vld [vmem:[#allocation10 + $0x4] sm:$0xf]
    %v4203 = vld [vmem:[#allocation10 + $0x8] sm:$0xf]
    %v4204 = vld [vmem:[#allocation10 + $0xc] sm:$0xf]
    %v4205 = vld [vmem:[#allocation10 + $0x10] sm:$0xf]
    %v4206 = vld [vmem:[#allocation10 + $0x14] sm:$0xf]
    %v4207 = vld [vmem:[#allocation10 + $0x18] sm:$0xf]
    %v4208 = vld [vmem:[#allocation10 + $0x1c] sm:$0xf]
    %v4209 = vld [vmem:[%s12] sm:$0x1]
    %v4211 = vlaneseq
    %v4212 = vshrl.u32 %v4211, 7
    %v4213 = vsub.s32 0, %v4212
    %v4214 = vrot.slane %v4209, %v4213
    %v4224 = vunpack.c.l.b16 %v4201
    %v4225 = vunpack.c.l.b16 %v4202
    %v4226 = vunpack.c.l.b16 %v4203
    %v4227 = vunpack.c.l.b16 %v4204
    %v4228 = vunpack.c.l.b16 %v4205
    %v4229 = vunpack.c.l.b16 %v4206
    %v4230 = vunpack.c.l.b16 %v4207
    %v4231 = vunpack.c.l.b16 %v4208
    %v4232 = vpack.c.b16 %v4225, %v4224
    %v4233 = vpack.c.b16 %v4227, %v4226
    %v4234 = vpack.c.b16 %v4229, %v4228
    %v4235 = vpack.c.b16 %v4231, %v4230
    %v4241 = vsel %vm2789, %v4193, 0
    %v4244 = vsel %vm2789, %v4194, 0
    %v4247 = vsel %vm2789, %v4195, 0
    %v4250 = vsel %vm2789, %v4196, 0
    %v4253 = vsel %vm2789, %v4197, 0
    %v4256 = vsel %vm2789, %v4198, 0
    %v4259 = vsel %vm2789, %v4199, 0
    %v4262 = vsel %vm2789, %v4200, 0
    %4264 = vmatprep.subr.bf16.mxu0 0
    %4265 = vmatpush1.bf16.msra.mxu0 0
    %4266 = vmatprep.subr.bf16.mxu0 0
    %4267 = vmatpush1.bf16.msra.mxu0 0
    %4268 = vmatprep.subr.bf16.mxu0 0
    %4269 = vmatpush1.bf16.msra.mxu0 0
    %4270 = vmatprep.subr.bf16.mxu0 0
    %4271 = vmatpush1.bf16.msra.mxu0 0
    %4272 = vmatprep.subr.bf16.mxu0 0
    %4273 = vmatpush1.bf16.msra.mxu0 %v4235
    %4274 = vmatprep.subr.bf16.mxu0 0
    %4275 = vmatpush1.bf16.msra.mxu0 %v4234
    %4276 = vmatprep.subr.bf16.mxu0 0
    %4277 = vmatpush1.bf16.msra.mxu0 %v4233
    %4278 = vmatprep.subr.bf16.mxu0 0
    %4279 = vmatpush1.bf16.msra.mxu0 %v4232
    %4280 = vmatprep.subr.bf16.mxu0 0
    %4281 = vmatpush2.bf16.msra.mxu0 0
    %4282 = vmatprep.subr.bf16.mxu0 0
    %4283 = vmatpush2.bf16.msra.mxu0 0
    %4284 = vmatprep.subr.bf16.mxu0 0
    %4285 = vmatpush2.bf16.msra.mxu0 0
    %4286 = vmatprep.subr.bf16.mxu0 0
    %4287 = vmatpush2.bf16.msra.mxu0 0
    %4288 = vmatprep.subr.bf16.mxu0 0
    %4289 = vmatpush2.bf16.msra.mxu0 0
    %4290 = vmatprep.subr.bf16.mxu0 0
    %4291 = vmatpush2.bf16.msra.mxu0 0
    %4292 = vmatprep.subr.bf16.mxu0 0
    %4293 = vmatpush2.bf16.msra.mxu0 0
    %4294 = vmatprep.subr.bf16.mxu0 0
    %4295 = vmatpush2.bf16.msra.mxu0 0
    %4296 = vmatprep.mubr.bf16.mxu0 0
    %4297 = vmatmul.mubr.bf16.gmra.mxu0 %v4241
    %v4298 = vpop.f32.mrf.mxu0
    %v4299 = vadd.f32 %v4214, %v4298
    %v4300 = vpop.f32.mrf.mxu0
    %v4301 = vpop.f32.mrf.mxu0
    %v4302 = vadd.f32 %v4214, %v4301
    %v4303 = vpop.f32.mrf.mxu0
    %4304 = vmatprep.mubr.bf16.mxu0 0
    %4305 = vmatmul.mubr.bf16.gmra.mxu0 %v4244
    %v4306 = vpop.f32.mrf.mxu0
    %v4307 = vadd.f32 %v4214, %v4306
    %v4308 = vpop.f32.mrf.mxu0
    %v4309 = vpop.f32.mrf.mxu0
    %v4310 = vadd.f32 %v4214, %v4309
    %v4311 = vpop.f32.mrf.mxu0
    %4312 = vmatprep.mubr.bf16.mxu0 0
    %4313 = vmatmul.mubr.bf16.gmra.mxu0 %v4247
    %v4314 = vpop.f32.mrf.mxu0
    %v4315 = vadd.f32 %v4214, %v4314
    %v4316 = vpop.f32.mrf.mxu0
    %v4317 = vpop.f32.mrf.mxu0
    %v4318 = vadd.f32 %v4214, %v4317
    %v4319 = vpop.f32.mrf.mxu0
    %4320 = vmatprep.mubr.bf16.mxu0 0
    %4321 = vmatmul.mubr.bf16.gmra.mxu0 %v4250
    %v4322 = vpop.f32.mrf.mxu0
    %v4323 = vadd.f32 %v4214, %v4322
    %v4324 = vpop.f32.mrf.mxu0
    %v4325 = vpop.f32.mrf.mxu0
    %v4326 = vadd.f32 %v4214, %v4325
    %v4327 = vpop.f32.mrf.mxu0
    %4328 = vmatprep.mubr.bf16.mxu0 0
    %4329 = vmatmul.mubr.bf16.gmra.mxu0 %v4253
    %v4330 = vpop.f32.mrf.mxu0
    %v4331 = vadd.f32 %v4214, %v4330
    %v4332 = vpop.f32.mrf.mxu0
    %v4333 = vpop.f32.mrf.mxu0
    %v4334 = vadd.f32 %v4214, %v4333
    %v4335 = vpop.f32.mrf.mxu0
    %4336 = vmatprep.mubr.bf16.mxu0 0
    %4337 = vmatmul.mubr.bf16.gmra.mxu0 %v4256
    %v4338 = vpop.f32.mrf.mxu0
    %v4339 = vadd.f32 %v4214, %v4338
    %v4340 = vpop.f32.mrf.mxu0
    %v4341 = vpop.f32.mrf.mxu0
    %v4342 = vadd.f32 %v4214, %v4341
    %v4343 = vpop.f32.mrf.mxu0
    %4344 = vmatprep.mubr.bf16.mxu0 0
    %4345 = vmatmul.mubr.bf16.gmra.mxu0 %v4259
    %v4346 = vpop.f32.mrf.mxu0
    %v4347 = vadd.f32 %v4214, %v4346
    %v4348 = vpop.f32.mrf.mxu0
    %v4349 = vpop.f32.mrf.mxu0
    %v4350 = vadd.f32 %v4214, %v4349
    %v4351 = vpop.f32.mrf.mxu0
    %4352 = vmatprep.mubr.bf16.mxu0 0
    %4353 = vmatmul.mubr.bf16.gmra.mxu0 %v4262
    %v4354 = vpop.f32.mrf.mxu0
    %v4355 = vadd.f32 %v4214, %v4354
    %v4356 = vpop.f32.mrf.mxu0
    %v4357 = vpop.f32.mrf.mxu0
    %v4358 = vadd.f32 %v4214, %v4357
    %v4359 = vpop.f32.mrf.mxu0
    %4360 = vdwg.mxu0
    %4361 = vst [vmem:[%s13] sm:$0xff] %v4299
    %4362 = vst [vmem:[%s13 + $0x8] sm:$0xff] %v4302
    %4363 = vst [vmem:[%s13 + $0x10] sm:$0xff] %v4307
    %4364 = vst [vmem:[%s13 + $0x18] sm:$0xff] %v4310
    %4365 = vst [vmem:[%s13 + $0x20] sm:$0xff] %v4315
    %4366 = vst [vmem:[%s13 + $0x28] sm:$0xff] %v4318
    %4367 = vst [vmem:[%s13 + $0x30] sm:$0xff] %v4323
    %4368 = vst [vmem:[%s13 + $0x38] sm:$0xff] %v4326
    %4369 = vst [vmem:[%s13 + $0x40] sm:$0xff] %v4331
    %4370 = vst [vmem:[%s13 + $0x48] sm:$0xff] %v4334
    %4371 = vst [vmem:[%s13 + $0x50] sm:$0xff] %v4339
    %4372 = vst [vmem:[%s13 + $0x58] sm:$0xff] %v4342
    %4373 = vst [vmem:[%s13 + $0x60] sm:$0xff] %v4347
    %4374 = vst [vmem:[%s13 + $0x68] sm:$0xff] %v4350
    %4375 = vst [vmem:[%s13 + $0x70] sm:$0xff] %v4355
    %4376 = vst [vmem:[%s13 + $0x78] sm:$0xff] %v4358
    // Predicated region
    $region78: #{_lambda_.1} parent=1 // pred_check
      _
    $region79: #{_lambda_.1} parent=1 // pred_check_branch
      %4378 = sbr.rel (0) target = $region81
    $region80: #{_lambda_.1} parent=1 // pred_region
      _
    $region81: #{_lambda_.1} parent=1 // pred_fallthru
      _
    // Predicated region
    $region82: #{_lambda_.1} parent=1 // pred_check
      _
    $region83: #{_lambda_.1} parent=1 // pred_check_branch
      %4380 = sbr.rel (0) target = $region85
    $region84: #{_lambda_.1} parent=1 // pred_region
      _
    $region85: #{_lambda_.1} parent=1 // pred_fallthru
      _
    %4381 = vsyncpa [#allocation3], 1
    %4382 = vsyncpa [#allocation5], 1
    %4383 = vsyncpa [#allocation8], 1
    %4384 = vsyncpa [#allocation11], 1

</llo_original>
